<compile_context>
chip_gen: v6e
topology: v6e:2x2x1
jax: 0.10.0
libtpu: 0.0.40
codegen_flags: <defaults>
</compile_context>

<pallas_src>
import functools

import jax
import jax.numpy as jnp
from jax import lax
from jax.experimental import pallas as pl
from jax.experimental.pallas import tpu as pltpu

_LANE = 128


def _conv_bn_relu_kernel(x_ref, w_ref, scale_ref, bias_ref, o_ref,
                         xpad_ref, patch_ref,
                         *, TH, Wo, H, W, Cin, Cout, K, K_pad, KH, KW, pad):
    """One (batch, output-row-tile) per grid step.

    x_ref:     (1, H, W, Cin)        unpadded NHWC image (bf16), resident across row tiles
    w_ref:     (K_pad, Cout)         conv weights, tap-major, K zero-padded (bf16, VMEM resident)
    scale_ref: (1, Cout)             folded BN scale (f32, VMEM resident)
    bias_ref:  (1, Cout)             folded BN bias  (f32, VMEM resident)
    o_ref:     (1, TH, Wo, Cout)     output row tile (bf16)
    xpad_ref:  (Hp_alloc, Wp, Cin)   zero-padded image scratch (bf16), built at r == 0
    patch_ref: (TH, Wo, K_pad)       im2col scratch (bf16)
    """
    r = pl.program_id(1)

    @pl.when(r == 0)
    def _init():
        # Build the spatially zero-padded image once per batch in VMEM
        # (removes the wrapper-side jnp.pad HBM round trip of the input).
        if pad > 0 or xpad_ref.shape[0] > H:
            xpad_ref[...] = jnp.zeros_like(xpad_ref)
        xpad_ref[pad:pad + H, pad:pad + W, :] = x_ref[0]
        if K_pad > K:
            # Zero padded-K columns once so stale VMEM never reaches the matmul.
            patch_ref[:, :, K:] = jnp.zeros((TH, Wo, K_pad - K), patch_ref.dtype)

    row0 = pl.multiple_of(r * TH, TH)

    # im2col: gather the KH*KW shifted windows into the bf16 scratch (one band
    # load per kh, no per-tap reshape) so the conv is a single fused-K matmul.
    for kh in range(KH):
        band = xpad_ref[pl.ds(row0 + kh, TH), :, :]          # (TH, Wp, Cin) bf16
        for kw in range(KW):
            t = kh * KW + kw
            patch_ref[:, :, t * Cin:(t + 1) * Cin] = band[:, kw:kw + Wo, :]

    # Single MXU matmul: bf16 inputs, f32 accumulate.
    acc = jnp.dot(patch_ref[...].reshape(TH * Wo, K_pad), w_ref[...],
                  preferred_element_type=jnp.float32)        # (TH*Wo, Cout)

    # Folded BatchNorm (inference) + ReLU epilogue in f32, stored as bf16.
    y = jnp.maximum(acc * scale_ref[...] + bias_ref[...], 0.0)
    o_ref[0] = y.reshape(TH, Wo, Cout).astype(o_ref.dtype)


def basic_conv2d(x_nchw, weight, gamma, beta, running_mean, running_var,
                 *, padding=1, eps=1e-5, max_tile_pixels=1024):
    """Forward pass of BasicConv2d. x_nchw: (N, Cin, H, W). weight: (Cout, Cin, KH, KW)."""
    N, Cin, H, W = x_nchw.shape
    Cout, Cin_w, KH, KW = weight.shape
    assert Cin_w == Cin

    pad = int(padding)
    Hp, Wp = H + 2 * pad, W + 2 * pad
    Ho, Wo = Hp - KH + 1, Wp - KW + 1                        # stride 1

    K = KH * KW * Cin
    K_pad = ((K + _LANE - 1) // _LANE) * _LANE

    # Large row tiles (amortize per-grid-step overhead); no divisibility requirement.
    TH = max(1, min(Ho, max_tile_pixels // max(1, Wo)))
    n_row_tiles = pl.cdiv(Ho, TH)
    Hp_alloc = n_row_tiles * TH + KH - 1                     # >= Hp; covers ragged last tile

    # Glue: NCHW -> NHWC (channels on lanes), bf16 activations. No spatial pad here.
    x_nhwc = jnp.transpose(x_nchw, (0, 2, 3, 1)).astype(jnp.bfloat16)

    # Weights: (Cout, Cin, KH, KW) -> (K_pad, Cout), tap-major, zero-padded K, bf16.
    w_mat = jnp.transpose(weight, (2, 3, 1, 0)).reshape(K, Cout)
    w_mat = jnp.pad(w_mat, ((0, K_pad - K), (0, 0))).astype(jnp.bfloat16)

    # Fold BatchNorm (inference) into per-channel scale/bias (kept in f32).
    inv_std = 1.0 / jnp.sqrt(running_var.astype(jnp.float32) + eps)
    scale1d = gamma.astype(jnp.float32) * inv_std
    bias1d = beta.astype(jnp.float32) - running_mean.astype(jnp.float32) * scale1d
    scale = scale1d.reshape(1, Cout)
    bias = bias1d.reshape(1, Cout)

    kernel = functools.partial(
        _conv_bn_relu_kernel, TH=TH, Wo=Wo, H=H, W=W, Cin=Cin, Cout=Cout,
        K=K, K_pad=K_pad, KH=KH, KW=KW, pad=pad)

    # VMEM budget from actual footprint (+headroom), min 32 MiB, capped at 96 MiB
    # (v5e/v6e: 128 MiB physical; keep headroom for v7x's 64 MiB).
    b = 2  # bf16 bytes
    need = (2 * H * W * Cin * b              # x block (double-buffered)
            + Hp_alloc * Wp * Cin * b        # padded-image scratch
            + TH * Wo * K_pad * b            # im2col scratch
            + K_pad * Cout * b               # weights (single-buffered VMEM resident)
            + 2 * Cout * 4                   # BN scale / bias
            + 2 * TH * Wo * Cout * b)        # output block (double-buffered)
    vmem_limit = int(min(max(2 * need + (4 << 20), 32 << 20), 96 << 20))

    out_nhwc = pl.pallas_call(
        kernel,
        out_shape=jax.ShapeDtypeStruct((N, Ho, Wo, Cout), jnp.bfloat16),
        grid_spec=pltpu.PrefetchScalarGridSpec(
            num_scalar_prefetch=0,
            grid=(N, n_row_tiles),
            in_specs=[
                # Whole (unpadded) NHWC image per batch; block index does not
                # depend on the row-tile axis, so it stays VMEM-resident.
                pl.BlockSpec((1, H, W, Cin), lambda n, r: (n, 0, 0, 0)),
                # Constant operands: whole-array VMEM residents (single-buffered).
                pl.BlockSpec(memory_space=pltpu.MemorySpace.VMEM),
                pl.BlockSpec(memory_space=pltpu.MemorySpace.VMEM),
                pl.BlockSpec(memory_space=pltpu.MemorySpace.VMEM),
            ],
            out_specs=pl.BlockSpec((1, TH, Wo, Cout), lambda n, r: (n, r, 0, 0)),
            scratch_shapes=[
                pltpu.VMEM((Hp_alloc, Wp, Cin), jnp.bfloat16),   # padded image
                pltpu.VMEM((TH, Wo, K_pad), jnp.bfloat16),       # im2col patch
            ],
        ),
        compiler_params=pltpu.CompilerParams(
            # Row-tile axis is "arbitrary": the padded-image scratch is built at
            # r == 0 and reused across the row tiles of the same batch.
            dimension_semantics=("parallel", "arbitrary"),
            vmem_limit_bytes=vmem_limit,
        ),
    )(x_nhwc, w_mat, scale, bias)

    # Glue: NHWC -> NCHW, cast to f32 to match the PyTorch module's output dtype.
    # (A full network would keep consuming the bf16 NHWC kernel output directly.)
    return jnp.transpose(out_nhwc, (0, 3, 1, 2)).astype(jnp.float32)


def _reference(x_nchw, weight, gamma, beta, running_mean, running_var, *, padding=1, eps=1e-5):
    y = lax.conv_general_dilated(
        x_nchw.astype(jnp.float32), weight.astype(jnp.float32),
        window_strides=(1, 1), padding=[(padding, padding), (padding, padding)],
        dimension_numbers=("NCHW", "OIHW", "NCHW"),
        precision=lax.Precision.HIGHEST)
    inv_std = 1.0 / jnp.sqrt(running_var + eps)
    y = (y - running_mean[None, :, None, None]) * inv_std[None, :, None, None]
    y = y * gamma[None, :, None, None] + beta[None, :, None, None]
    return jnp.maximum(y, 0.0)


if __name__ == "__main__":
    key = jax.random.PRNGKey(0)
    k_x, k_w, k_g, k_b, k_m, k_v = jax.random.split(key, 6)

    N, Cin, Cout, H, W, K = 2, 4, 8, 16, 16, 3

    x = jax.random.normal(k_x, (N, Cin, H, W), dtype=jnp.float32)
    weight = jax.random.normal(k_w, (Cout, Cin, K, K), dtype=jnp.float32) * 0.1
    gamma = 1.0 + 0.1 * jax.random.normal(k_g, (Cout,), dtype=jnp.float32)
    beta = 0.1 * jax.random.normal(k_b, (Cout,), dtype=jnp.float32)
    running_mean = 0.1 * jax.random.normal(k_m, (Cout,), dtype=jnp.float32)
    running_var = jnp.abs(1.0 + 0.1 * jax.random.normal(k_v, (Cout,), dtype=jnp.float32))

    out = basic_conv2d(x, weight, gamma, beta, running_mean, running_var, padding=1)
    out = jax.block_until_ready(out)

    ref = _reference(x, weight, gamma, beta, running_mean, running_var, padding=1)
    assert out.shape == (N, Cout, H, W)
    # Tolerance accounts for bf16 activations/weights feeding the MXU and the
    # bf16 output store (f32 accumulate + f32 BN/ReLU epilogue kept in-kernel).
    assert jnp.allclose(out, ref, atol=4e-2, rtol=4e-2)

    print("KERNEL_OK")
</pallas_src>

<mosaic_0001>
module attributes {stable_mosaic.version = 11 : i64} {
  func.func @_conv_bn_relu_kernel(%arg0: i32, %arg1: i32, %arg2: memref<1x16x16x4xbf16, #tpu.memory_space<vmem>>, %arg3: memref<128x8xbf16, #tpu.memory_space<vmem>>, %arg4: memref<1x8xf32, #tpu.memory_space<vmem>>, %arg5: memref<1x8xf32, #tpu.memory_space<vmem>>, %arg6: memref<1x16x16x8xbf16, #tpu.memory_space<vmem>>, %arg7: memref<18x18x4xbf16, #tpu.memory_space<vmem>>, %arg8: memref<16x16x128xbf16, #tpu.memory_space<vmem>>) attributes {dimension_semantics = [#tpu.dimension_semantics<parallel>, #tpu.dimension_semantics<arbitrary>], iteration_bounds = array<i64: 2, 1>, scalar_prefetch = 0 : i64, scratch_operands = 2 : i64, tpu.core_type = #tpu.core_type<tc>, window_params = [{transform_indices = @transform_0, window_bounds = array<i64: 1, 16, 16, 4>}, {pipeline_mode = #tpu.pipeline_mode<synchronous>, transform_indices = @transform_1, window_bounds = array<i64: 128, 8>}, {pipeline_mode = #tpu.pipeline_mode<synchronous>, transform_indices = @transform_2, window_bounds = array<i64: 1, 8>}, {pipeline_mode = #tpu.pipeline_mode<synchronous>, transform_indices = @transform_3, window_bounds = array<i64: 1, 8>}, {transform_indices = @transform_4, window_bounds = array<i64: 1, 16, 16, 8>}]} {
    %c0_i32 = arith.constant 0 : i32
    %0 = arith.cmpi eq, %arg1, %c0_i32 : i32
    %1 = arith.extui %0 : i1 to i32
    %c0_i32_0 = arith.constant 0 : i32
    %2 = arith.cmpi ne, %1, %c0_i32_0 : i32
    scf.if %2 {
      %cst_40 = arith.constant 0.000000e+00 : bf16
      %49 = vector.broadcast %cst_40 : bf16 to vector<18x18x4xbf16>
      %c0_41 = arith.constant 0 : index
      %c0_42 = arith.constant 0 : index
      %c0_43 = arith.constant 0 : index
      %50 = vector.load %arg7[%c0_41, %c0_42, %c0_43] : memref<18x18x4xbf16, #tpu.memory_space<vmem>>, vector<18x18x4xbf16>
      tpu.vector_store %arg7[%c0_41, %c0_42, %c0_43], %49 {strides = array<i32>} : memref<18x18x4xbf16, #tpu.memory_space<vmem>>, vector<18x18x4xbf16>,
      %c0_44 = arith.constant 0 : index
      %c0_45 = arith.constant 0 : index
      %c0_46 = arith.constant 0 : index
      %c0_47 = arith.constant 0 : index
      %51 = vector.load %arg2[%c0_44, %c0_45, %c0_46, %c0_47] : memref<1x16x16x4xbf16, #tpu.memory_space<vmem>>, vector<1x16x16x4xbf16>
      %52 = vector.shape_cast %51 : vector<1x16x16x4xbf16> to vector<16x16x4xbf16>
      %c1 = arith.constant 1 : index
      %c1_48 = arith.constant 1 : index
      %c0_49 = arith.constant 0 : index
      %53 = vector.load %arg7[%c1, %c1_48, %c0_49] : memref<18x18x4xbf16, #tpu.memory_space<vmem>>, vector<16x16x4xbf16>
      tpu.vector_store %arg7[%c1, %c1_48, %c0_49], %52 {strides = array<i32>} : memref<18x18x4xbf16, #tpu.memory_space<vmem>>, vector<16x16x4xbf16>,
      %cst_50 = arith.constant 0.000000e+00 : bf16
      %54 = vector.broadcast %cst_50 : bf16 to vector<16x16x92xbf16>
      %c0_51 = arith.constant 0 : index
      %c0_52 = arith.constant 0 : index
      %c36 = arith.constant 36 : index
      %55 = vector.load %arg8[%c0_51, %c0_52, %c36] : memref<16x16x128xbf16, #tpu.memory_space<vmem>>, vector<16x16x92xbf16>
      tpu.vector_store %arg8[%c0_51, %c0_52, %c36], %54 {strides = array<i32>} : memref<16x16x128xbf16, #tpu.memory_space<vmem>>, vector<16x16x92xbf16>,
    } else {
    }
    %c16_i32 = arith.constant 16 : i32
    %3 = arith.muli %arg1, %c16_i32 : i32
    %4 = tpu.assume_multiple %3, 16 : i32
    %c0_i32_1 = arith.constant 0 : i32
    %5 = arith.addi %4, %c0_i32_1 : i32
    %6 = arith.index_cast %5 : i32 to index
    %c0 = arith.constant 0 : index
    %c0_2 = arith.constant 0 : index
    %7 = vector.load %arg7[%6, %c0, %c0_2] : memref<18x18x4xbf16, #tpu.memory_space<vmem>>, vector<16x18x4xbf16>
    %8 = vector.extract_strided_slice %7 {offsets = [0, 0, 0], sizes = [16, 16, 4], strides = [1, 1, 1]} : vector<16x18x4xbf16> to vector<16x16x4xbf16>
    %c0_3 = arith.constant 0 : index
    %c0_4 = arith.constant 0 : index
    %c0_5 = arith.constant 0 : index
    %9 = vector.load %arg8[%c0_3, %c0_4, %c0_5] : memref<16x16x128xbf16, #tpu.memory_space<vmem>>, vector<16x16x4xbf16>
    tpu.vector_store %arg8[%c0_3, %c0_4, %c0_5], %8 {strides = array<i32>} : memref<16x16x128xbf16, #tpu.memory_space<vmem>>, vector<16x16x4xbf16>,
    %10 = vector.extract_strided_slice %7 {offsets = [0, 1, 0], sizes = [16, 16, 4], strides = [1, 1, 1]} : vector<16x18x4xbf16> to vector<16x16x4xbf16>
    %c0_6 = arith.constant 0 : index
    %c0_7 = arith.constant 0 : index
    %c4 = arith.constant 4 : index
    %11 = vector.load %arg8[%c0_6, %c0_7, %c4] : memref<16x16x128xbf16, #tpu.memory_space<vmem>>, vector<16x16x4xbf16>
    tpu.vector_store %arg8[%c0_6, %c0_7, %c4], %10 {strides = array<i32>} : memref<16x16x128xbf16, #tpu.memory_space<vmem>>, vector<16x16x4xbf16>,
    %12 = vector.extract_strided_slice %7 {offsets = [0, 2, 0], sizes = [16, 16, 4], strides = [1, 1, 1]} : vector<16x18x4xbf16> to vector<16x16x4xbf16>
    %c0_8 = arith.constant 0 : index
    %c0_9 = arith.constant 0 : index
    %c8 = arith.constant 8 : index
    %13 = vector.load %arg8[%c0_8, %c0_9, %c8] : memref<16x16x128xbf16, #tpu.memory_space<vmem>>, vector<16x16x4xbf16>
    tpu.vector_store %arg8[%c0_8, %c0_9, %c8], %12 {strides = array<i32>} : memref<16x16x128xbf16, #tpu.memory_space<vmem>>, vector<16x16x4xbf16>,
    %c1_i32 = arith.constant 1 : i32
    %14 = arith.addi %4, %c1_i32 : i32
    %15 = arith.index_cast %14 : i32 to index
    %c0_10 = arith.constant 0 : index
    %c0_11 = arith.constant 0 : index
    %16 = vector.load %arg7[%15, %c0_10, %c0_11] : memref<18x18x4xbf16, #tpu.memory_space<vmem>>, vector<16x18x4xbf16>
    %17 = vector.extract_strided_slice %16 {offsets = [0, 0, 0], sizes = [16, 16, 4], strides = [1, 1, 1]} : vector<16x18x4xbf16> to vector<16x16x4xbf16>
    %c0_12 = arith.constant 0 : index
    %c0_13 = arith.constant 0 : index
    %c12 = arith.constant 12 : index
    %18 = vector.load %arg8[%c0_12, %c0_13, %c12] : memref<16x16x128xbf16, #tpu.memory_space<vmem>>, vector<16x16x4xbf16>
    tpu.vector_store %arg8[%c0_12, %c0_13, %c12], %17 {strides = array<i32>} : memref<16x16x128xbf16, #tpu.memory_space<vmem>>, vector<16x16x4xbf16>,
    %19 = vector.extract_strided_slice %16 {offsets = [0, 1, 0], sizes = [16, 16, 4], strides = [1, 1, 1]} : vector<16x18x4xbf16> to vector<16x16x4xbf16>
    %c0_14 = arith.constant 0 : index
    %c0_15 = arith.constant 0 : index
    %c16 = arith.constant 16 : index
    %20 = vector.load %arg8[%c0_14, %c0_15, %c16] : memref<16x16x128xbf16, #tpu.memory_space<vmem>>, vector<16x16x4xbf16>
    tpu.vector_store %arg8[%c0_14, %c0_15, %c16], %19 {strides = array<i32>} : memref<16x16x128xbf16, #tpu.memory_space<vmem>>, vector<16x16x4xbf16>,
    %21 = vector.extract_strided_slice %16 {offsets = [0, 2, 0], sizes = [16, 16, 4], strides = [1, 1, 1]} : vector<16x18x4xbf16> to vector<16x16x4xbf16>
    %c0_16 = arith.constant 0 : index
    %c0_17 = arith.constant 0 : index
    %c20 = arith.constant 20 : index
    %22 = vector.load %arg8[%c0_16, %c0_17, %c20] : memref<16x16x128xbf16, #tpu.memory_space<vmem>>, vector<16x16x4xbf16>
    tpu.vector_store %arg8[%c0_16, %c0_17, %c20], %21 {strides = array<i32>} : memref<16x16x128xbf16, #tpu.memory_space<vmem>>, vector<16x16x4xbf16>,
    %c2_i32 = arith.constant 2 : i32
    %23 = arith.addi %4, %c2_i32 : i32
    %24 = arith.index_cast %23 : i32 to index
    %c0_18 = arith.constant 0 : index
    %c0_19 = arith.constant 0 : index
    %25 = vector.load %arg7[%24, %c0_18, %c0_19] : memref<18x18x4xbf16, #tpu.memory_space<vmem>>, vector<16x18x4xbf16>
    %26 = vector.extract_strided_slice %25 {offsets = [0, 0, 0], sizes = [16, 16, 4], strides = [1, 1, 1]} : vector<16x18x4xbf16> to vector<16x16x4xbf16>
    %c0_20 = arith.constant 0 : index
    %c0_21 = arith.constant 0 : index
    %c24 = arith.constant 24 : index
    %27 = vector.load %arg8[%c0_20, %c0_21, %c24] : memref<16x16x128xbf16, #tpu.memory_space<vmem>>, vector<16x16x4xbf16>
    tpu.vector_store %arg8[%c0_20, %c0_21, %c24], %26 {strides = array<i32>} : memref<16x16x128xbf16, #tpu.memory_space<vmem>>, vector<16x16x4xbf16>,
    %28 = vector.extract_strided_slice %25 {offsets = [0, 1, 0], sizes = [16, 16, 4], strides = [1, 1, 1]} : vector<16x18x4xbf16> to vector<16x16x4xbf16>
    %c0_22 = arith.constant 0 : index
    %c0_23 = arith.constant 0 : index
    %c28 = arith.constant 28 : index
    %29 = vector.load %arg8[%c0_22, %c0_23, %c28] : memref<16x16x128xbf16, #tpu.memory_space<vmem>>, vector<16x16x4xbf16>
    tpu.vector_store %arg8[%c0_22, %c0_23, %c28], %28 {strides = array<i32>} : memref<16x16x128xbf16, #tpu.memory_space<vmem>>, vector<16x16x4xbf16>,
    %30 = vector.extract_strided_slice %25 {offsets = [0, 2, 0], sizes = [16, 16, 4], strides = [1, 1, 1]} : vector<16x18x4xbf16> to vector<16x16x4xbf16>
    %c0_24 = arith.constant 0 : index
    %c0_25 = arith.constant 0 : index
    %c32 = arith.constant 32 : index
    %31 = vector.load %arg8[%c0_24, %c0_25, %c32] : memref<16x16x128xbf16, #tpu.memory_space<vmem>>, vector<16x16x4xbf16>
    tpu.vector_store %arg8[%c0_24, %c0_25, %c32], %30 {strides = array<i32>} : memref<16x16x128xbf16, #tpu.memory_space<vmem>>, vector<16x16x4xbf16>,
    %c0_26 = arith.constant 0 : index
    %c0_27 = arith.constant 0 : index
    %c0_28 = arith.constant 0 : index
    %32 = vector.load %arg8[%c0_26, %c0_27, %c0_28] : memref<16x16x128xbf16, #tpu.memory_space<vmem>>, vector<16x16x128xbf16>
    %33 = vector.shape_cast %32 : vector<16x16x128xbf16> to vector<256x128xbf16>
    %c0_29 = arith.constant 0 : index
    %c0_30 = arith.constant 0 : index
    %34 = vector.load %arg3[%c0_29, %c0_30] : memref<128x8xbf16, #tpu.memory_space<vmem>>, vector<128x8xbf16>
    %cst = arith.constant dense<0.000000e+00> : vector<256x8xf32>
    %35 = tpu.matmul %33, %34, %cst {dimension_numbers = #tpu.dot_dimension_numbers<[1], [0], [0], [1], [0, 0, 1, 1], [], []>} : vector<256x128xbf16>, vector<128x8xbf16>, vector<256x8xf32> -> vector<256x8xf32>
    %c0_31 = arith.constant 0 : index
    %c0_32 = arith.constant 0 : index
    %36 = vector.load %arg4[%c0_31, %c0_32] : memref<1x8xf32, #tpu.memory_space<vmem>>, vector<1x8xf32>
    %37 = vector.broadcast %36 : vector<1x8xf32> to vector<256x8xf32>
    %38 = arith.mulf %35, %37 : vector<256x8xf32>
    %c0_33 = arith.constant 0 : index
    %c0_34 = arith.constant 0 : index
    %39 = vector.load %arg5[%c0_33, %c0_34] : memref<1x8xf32, #tpu.memory_space<vmem>>, vector<1x8xf32>
    %40 = vector.broadcast %39 : vector<1x8xf32> to vector<256x8xf32>
    %41 = arith.addf %38, %40 : vector<256x8xf32>
    %cst_35 = arith.constant 0.000000e+00 : f32
    %42 = vector.broadcast %cst_35 : f32 to vector<256x8xf32>
    %43 = arith.maximumf %41, %42 : vector<256x8xf32>
    %44 = vector.shape_cast %43 : vector<256x8xf32> to vector<16x16x8xf32>
    %45 = arith.truncf %44 : vector<16x16x8xf32> to vector<16x16x8xbf16>
    %c0_36 = arith.constant 0 : index
    %c0_37 = arith.constant 0 : index
    %c0_38 = arith.constant 0 : index
    %c0_39 = arith.constant 0 : index
    %46 = vector.load %arg6[%c0_36, %c0_37, %c0_38, %c0_39] : memref<1x16x16x8xbf16, #tpu.memory_space<vmem>>, vector<1x16x16x8xbf16>
    %47 = vector.shape_cast %46 : vector<1x16x16x8xbf16> to vector<16x16x8xbf16>
    %48 = vector.shape_cast %45 : vector<16x16x8xbf16> to vector<1x16x16x8xbf16>
    tpu.vector_store %arg6[%c0_36, %c0_37, %c0_38, %c0_39], %48 {strides = array<i32>} : memref<1x16x16x8xbf16, #tpu.memory_space<vmem>>, vector<1x16x16x8xbf16>,
    return
  }
  func.func @transform_0(%arg0: i32, %arg1: i32) -> (i32, i32, i32, i32) {
    %c0_i32 = arith.constant 0 : i32
    %c0_i32_0 = arith.constant 0 : i32
    %c0_i32_1 = arith.constant 0 : i32
    %c0_i32_2 = arith.constant 0 : i32
    return %arg0, %c0_i32, %c0_i32_0, %c0_i32_1 : i32, i32, i32, i32
  }
  func.func @transform_1(%arg0: i32, %arg1: i32) -> (i32, i32) {
    %c0_i32 = arith.constant 0 : i32
    %c0_i32_0 = arith.constant 0 : i32
    %c0_i32_1 = arith.constant 0 : i32
    return %c0_i32, %c0_i32_0 : i32, i32
  }
  func.func @transform_2(%arg0: i32, %arg1: i32) -> (i32, i32) {
    %c0_i32 = arith.constant 0 : i32
    %c0_i32_0 = arith.constant 0 : i32
    %c0_i32_1 = arith.constant 0 : i32
    return %c0_i32, %c0_i32_0 : i32, i32
  }
  func.func @transform_3(%arg0: i32, %arg1: i32) -> (i32, i32) {
    %c0_i32 = arith.constant 0 : i32
    %c0_i32_0 = arith.constant 0 : i32
    %c0_i32_1 = arith.constant 0 : i32
    return %c0_i32, %c0_i32_0 : i32, i32
  }
  func.func @transform_4(%arg0: i32, %arg1: i32) -> (i32, i32, i32, i32) {
    %c0_i32 = arith.constant 0 : i32
    %c0_i32_0 = arith.constant 0 : i32
    %c0_i32_1 = arith.constant 0 : i32
    return %arg0, %arg1, %c0_i32, %c0_i32_0 : i32, i32, i32, i32
  }
}

</mosaic_0001>

<llo_original>
// kernel: tpu_custom_call.1
$region0: #{tpu_custom_call.1}
  #allocation0 [shape = 'u32[]', space=smem, size = 0x4, offset = 0x4, fixed_abs, tag = 'smem constant byte address 0x4 - core index']
  #allocation1 [shape = 'u32[144,128]{1,0:T(1,128)}', space=vmem, size = 0x12000, scoped, tag = 'internal scratch']
  #allocation2 [shape = 'bf16[18,18,4]{2,1,0:T(8,128)(2,1)}', space=vmem, size = 0x1b000, scoped, tag = 'scratch operand']
  #allocation3 [shape = 'bf16[16,16,128]{2,1,0:T(8,128)(2,1)}', space=vmem, size = 0x10000, scoped, tag = 'scratch operand']
  %s0 = inlined_call_operand.vmem [shape: bf16[2,16,16,4], index: 0, kind: input, shape index: {}]
  %s1 = inlined_call_operand.vmem [shape: bf16[128,8], index: 1, kind: input, shape index: {}]
  %s2 = inlined_call_operand.vmem [shape: f32[1,8], index: 2, kind: input, shape index: {}]
  %s3 = inlined_call_operand.vmem [shape: f32[1,8], index: 3, kind: input, shape index: {}]
  %s4 = inlined_call_operand.vmem [shape: bf16[2,16,16,8], index: 4, kind: output, shape index: {}]
  %s5 = sld [smem:[#allocation0]]
  $region53: #{tpu_custom_call.1} parent=0
    _
  %s7 = ssub.s32 1, %s5
  %s8 = scalar_select 0, %s7, %s5
  loop: start=0, step=1, limit=4
  $region2: #{tpu_custom_call.1} parent=0 // loop_pre_header
    _
  $region3: #{tpu_custom_call.1} parent=0 // loop_header
    %s10 = sphi 0, %s14
    %p11 = scmp.ge.s32.totalorder %s10, 4
    %s17 = sphi 0, %s29
    %s18 = sphi 0, %s25
    %s19 = sphi 0, %s17
    %s20 = sphi 0, %s18
    %s21 = sphi 0, %s19
    %s22 = sphi 0, %s20
    %s32 = sphi 0, %s34
    %s35 = sphi 0, %s32
    %s36 = sphi 0, %s35
    %s52 = sphi 0, %s36
    %s56 = sphi 0, %s56
    %s58 = sphi 0, %s56
    %s59 = sphi 0, %s58
    %s73 = sphi 0, %s59
    %s77 = sphi 0, %s77
    %s79 = sphi 0, %s77
    %s80 = sphi 0, %s79
    %s94 = sphi 0, %s80
    %s98 = sphi 0, %s98
    %s100 = sphi 0, %s98
    %s101 = sphi 0, %s100
    %s115 = sphi 0, %s101
    %s123 = sphi 0, %s125
    %s126 = sphi 0, %s123
    %s127 = sphi 0, %s126
    %s143 = sphi 0, %s127
  $region4: #{tpu_custom_call.1} parent=0 // loop_header_branch
    %13 = sbr.rel (%p11) target = $region8
  $region5: #{tpu_custom_call.1} parent=0 // loop_body
    %s15 = ssub.s32 %s10, 1
    %s16 = ssub.s32 %s10, 2
    %s23 = sadd.s32 1, %s18
    %p24 = scmp.ge.s32.totalorder %s23, 1
    %s25 = scalar_select %p24, 0, %s23
    %s26 = sadd.s32 1, %s17
    %s27 = scalar_select %p24, %s26, %s17
    %p28 = scmp.ge.s32.totalorder %s27, 2
    %s29 = scalar_select %p28, 0, %s27
    %s30 = ssub.s32 %s17, %s29
    %p31 = scmp.eq.s32.totalorder %s30, 0
    %s33 = sadd.s32 %s32, 1
    %s34 = scalar_select %p31, %s32, %s33
    %p37 = pneg %p31
    %p38 = scmp.eq.s32.totalorder %s10, 1
    %p39 = por %p37, %p38
    %p40 = scmp.ne.s32.totalorder %s32, %s35
    %p41 = scmp.eq.s32.totalorder %s10, 0
    %p42 = por %p40, %p41
    %p43 = scmp.ne.s32.totalorder %s32, %s35
    %p44 = scmp.eq.s32.totalorder %s15, 1
    %p45 = por %p43, %p44
    %p46 = scmp.ne.s32.totalorder %s35, %s36
    %p47 = scmp.eq.s32.totalorder %s15, 0
    %p48 = por %p46, %p47
    %p49 = scmp.ne.s32.totalorder %s35, %s36
    %p50 = scmp.eq.s32.totalorder %s16, 1
    %p51 = por %p49, %p50
    %p53 = scmp.ne.s32.totalorder %s36, %s52
    %p54 = scmp.eq.s32.totalorder %s16, 0
    %p55 = por %p53, %p54
    %s57 = sadd.s32 %s56, 1
    %p60 = scmp.eq.s32.totalorder %s10, 1
    %p61 = scmp.ne.s32.totalorder %s56, %s58
    %p62 = scmp.eq.s32.totalorder %s10, 0
    %p63 = por %p61, %p62
    %p64 = scmp.ne.s32.totalorder %s56, %s58
    %p65 = scmp.eq.s32.totalorder %s15, 1
    %p66 = por %p64, %p65
    %p67 = scmp.ne.s32.totalorder %s58, %s59
    %p68 = scmp.eq.s32.totalorder %s15, 0
    %p69 = por %p67, %p68
    %p70 = scmp.ne.s32.totalorder %s58, %s59
    %p71 = scmp.eq.s32.totalorder %s16, 1
    %p72 = por %p70, %p71
    %p74 = scmp.ne.s32.totalorder %s59, %s73
    %p75 = scmp.eq.s32.totalorder %s16, 0
    %p76 = por %p74, %p75
    %s78 = sadd.s32 %s77, 1
    %p81 = scmp.eq.s32.totalorder %s10, 1
    %p82 = scmp.ne.s32.totalorder %s77, %s79
    %p83 = scmp.eq.s32.totalorder %s10, 0
    %p84 = por %p82, %p83
    %p85 = scmp.ne.s32.totalorder %s77, %s79
    %p86 = scmp.eq.s32.totalorder %s15, 1
    %p87 = por %p85, %p86
    %p88 = scmp.ne.s32.totalorder %s79, %s80
    %p89 = scmp.eq.s32.totalorder %s15, 0
    %p90 = por %p88, %p89
    %p91 = scmp.ne.s32.totalorder %s79, %s80
    %p92 = scmp.eq.s32.totalorder %s16, 1
    %p93 = por %p91, %p92
    %p95 = scmp.ne.s32.totalorder %s80, %s94
    %p96 = scmp.eq.s32.totalorder %s16, 0
    %p97 = por %p95, %p96
    %s99 = sadd.s32 %s98, 1
    %p102 = scmp.eq.s32.totalorder %s10, 1
    %p103 = scmp.ne.s32.totalorder %s98, %s100
    %p104 = scmp.eq.s32.totalorder %s10, 0
    %p105 = por %p103, %p104
    %p106 = scmp.ne.s32.totalorder %s98, %s100
    %p107 = scmp.eq.s32.totalorder %s15, 1
    %p108 = por %p106, %p107
    %p109 = scmp.ne.s32.totalorder %s100, %s101
    %p110 = scmp.eq.s32.totalorder %s15, 0
    %p111 = por %p109, %p110
    %p112 = scmp.ne.s32.totalorder %s100, %s101
    %p113 = scmp.eq.s32.totalorder %s16, 1
    %p114 = por %p112, %p113
    %p116 = scmp.ne.s32.totalorder %s101, %s115
    %p117 = scmp.eq.s32.totalorder %s16, 0
    %p118 = por %p116, %p117
    %s119 = ssub.s32 %s17, %s29
    %s120 = ssub.s32 %s18, %s25
    %s121 = sor.u32 %s119, %s120
    %p122 = scmp.eq.s32.totalorder %s121, 0
    %s124 = sadd.s32 %s123, 1
    %s125 = scalar_select %p122, %s123, %s124
    %p128 = pneg %p122
    %p129 = scmp.eq.s32.totalorder %s10, 1
    %p130 = por %p128, %p129
    %p131 = scmp.ne.s32.totalorder %s123, %s126
    %p132 = scmp.eq.s32.totalorder %s10, 0
    %p133 = por %p131, %p132
    %p134 = scmp.ne.s32.totalorder %s123, %s126
    %p135 = scmp.eq.s32.totalorder %s15, 1
    %p136 = por %p134, %p135
    %p137 = scmp.ne.s32.totalorder %s126, %s127
    %p138 = scmp.eq.s32.totalorder %s15, 0
    %p139 = por %p137, %p138
    %p140 = scmp.ne.s32.totalorder %s126, %s127
    %p141 = scmp.eq.s32.totalorder %s16, 1
    %p142 = por %p140, %p141
    %p144 = scmp.ne.s32.totalorder %s127, %s143
    %p145 = scmp.eq.s32.totalorder %s16, 0
    %p146 = por %p144, %p145
    %p147 = scmp.le.s32.totalorder 1, %s10
    %p148 = scmp.lt.s32.totalorder %s10, 3
    %p149 = pnand %p147, %p148
    %p150 = pneg %p149
    // Predicated region
    $region9: #{tpu_custom_call.1} parent=5 // pred_check
      _
    $region10: #{tpu_custom_call.1} parent=5 // pred_check_branch
      %152 = sbr.rel (%p149) target = $region12
    $region11: #{tpu_custom_call.1} parent=5 // pred_region
      %s153 = ssub.s32 %s10, 1
      // Predicated region
      $region13: #{tpu_custom_call.1} parent=11 // pred_check
        %p154 = pneg %p69
      $region14: #{tpu_custom_call.1} parent=11 // pred_check_branch
        %156 = sbr.rel (%p154) target = $region16
      $region15: #{tpu_custom_call.1} parent=11 // pred_region
        _
      $region16: #{tpu_custom_call.1} parent=11 // pred_fallthru
        _
      // Predicated region
      $region17: #{tpu_custom_call.1} parent=11 // pred_check
        %p157 = pneg %p90
      $region18: #{tpu_custom_call.1} parent=11 // pred_check_branch
        %159 = sbr.rel (%p157) target = $region20
      $region19: #{tpu_custom_call.1} parent=11 // pred_region
        _
      $region20: #{tpu_custom_call.1} parent=11 // pred_fallthru
        _
      // Predicated region
      $region21: #{tpu_custom_call.1} parent=11 // pred_check
        %p160 = pneg %p111
      $region22: #{tpu_custom_call.1} parent=11 // pred_check_branch
        %162 = sbr.rel (%p160) target = $region24
      $region23: #{tpu_custom_call.1} parent=11 // pred_region
        _
      $region24: #{tpu_custom_call.1} parent=11 // pred_fallthru
        _
    $region12: #{tpu_custom_call.1} parent=5 // pred_fallthru
      _
    %p163 = scmp.lt.s32.totalorder %s10, 2
    // Predicated region
    $region25: #{tpu_custom_call.1} parent=5 // pred_check
      %p164 = pneg %p163
    $region26: #{tpu_custom_call.1} parent=5 // pred_check_branch
      %166 = sbr.rel (%p164) target = $region28
    $region27: #{tpu_custom_call.1} parent=5 // pred_region
      // Predicated region
      $region29: #{tpu_custom_call.1} parent=27 // pred_check
        %p167 = pneg %p42
      $region30: #{tpu_custom_call.1} parent=27 // pred_check_branch
        %169 = sbr.rel (%p167) target = $region32
      $region31: #{tpu_custom_call.1} parent=27 // pred_region
        %p170 = scmp.lt.s32.totalorder %s17, 1
        %s171 = scalar_select %p170, %s17, 1
        %s172 = smul.addr %s171, 32
        %s173 = smul.addr %s172, 4
        %s174 = scalar_lea.vmem %s0, %s173
      $region32: #{tpu_custom_call.1} parent=27 // pred_fallthru
        _
    $region28: #{tpu_custom_call.1} parent=5 // pred_fallthru
      _
    %p175 = scmp.le.s32.totalorder 1, %s10
    %p176 = scmp.lt.s32.totalorder %s10, 3
    %p177 = pnand %p175, %p176
    %p178 = pneg %p177
    // Predicated region
    $region33: #{tpu_custom_call.1} parent=5 // pred_check
      _
    $region34: #{tpu_custom_call.1} parent=5 // pred_check_branch
      %180 = sbr.rel (%p177) target = $region36
    $region35: #{tpu_custom_call.1} parent=5 // pred_region
      %s181 = ssub.s32 %s10, 1
      %p182 = scmp.lt.s32.totalorder %s19, 1
      %s183 = scalar_select %p182, %s19, 1
      %s184 = smul.addr %s183, 32
      %s185 = smul.addr %s184, 4
      %s186 = scalar_lea.vmem %s0, %s185
      %p187 = pneg %p48
      %p188 = pneg %p45
      %p189 = pneg %p69
      %p190 = pneg %p66
      %p191 = pneg %p90
      %p192 = pneg %p87
      %p193 = pneg %p111
      %p194 = pneg %p108
      %p195 = pneg %p139
      %p196 = pneg %p136
      %s197 = smul.u32 16, %s20
      %p198 = scmp.lt.s32.totalorder %s19, 1
      %s199 = scalar_select %p198, %s19, 1
      %p200 = scmp.lt.s32.totalorder %s197, 15
      %s201 = scalar_select %p200, %s197, 15
      %s202 = smul.addr %s201, 2
      %s203 = smul.addr %s199, 32
      %s204 = sadd.s32 %s202, %s203
      %s205 = smul.addr %s204, 4
      %s206 = scalar_lea.vmem %s4, %s205
      %p207 = scmp.lt.s32.totalorder %s19, 1
      %s208 = scalar_select %p207, %s19, 1
      %s209 = smul.addr %s208, 32
      %s210 = smul.addr %s209, 4
      %s211 = scalar_lea.vmem %s0, %s210
      %s212 = smul.u32 16, %s20
      %p213 = scmp.lt.s32.totalorder %s19, 1
      %s214 = scalar_select %p213, %s19, 1
      %p215 = scmp.lt.s32.totalorder %s212, 15
      %s216 = scalar_select %p215, %s212, 15
      %s217 = smul.addr %s216, 2
      %s218 = smul.addr %s214, 32
      %s219 = sadd.s32 %s217, %s218
      %s220 = smul.addr %s219, 4
      %s221 = scalar_lea.vmem %s4, %s220
      %s222 = smul.u32 16, %s20
      %p224 = scmp.eq.s32.totalorder %s20, 0
      // Predicated region
      $region37: #{tpu_custom_call.1} parent=35 // pred_check
        %p225 = pneg %p224
      $region38: #{tpu_custom_call.1} parent=35 // pred_check_branch
        %227 = sbr.rel (%p225) target = $region40
      $region39: #{tpu_custom_call.1} parent=35 // pred_region
        %vm228 = vcmask 27648
        %229 = vst.msk [vmem:[#allocation2] sm:$0xf] %vm228, 0
        %230 = vst.msk [vmem:[#allocation2 + $0x4] sm:$0xf] %vm228, 0
        %vm231 = vcmask 24576
        %232 = vst.msk [vmem:[#allocation2 + $0x8] sm:$0x1] %vm231, 0
        %233 = vst.msk [vmem:[#allocation2 + $0xc] sm:$0xf] %vm228, 0
        %234 = vst.msk [vmem:[#allocation2 + $0x10] sm:$0xf] %vm228, 0
        %235 = vst.msk [vmem:[#allocation2 + $0x14] sm:$0x1] %vm231, 0
        %236 = vst.msk [vmem:[#allocation2 + $0x18] sm:$0xf] %vm228, 0
        %237 = vst.msk [vmem:[#allocation2 + $0x1c] sm:$0xf] %vm228, 0
        %238 = vst.msk [vmem:[#allocation2 + $0x20] sm:$0x1] %vm231, 0
        %239 = vst.msk [vmem:[#allocation2 + $0x24] sm:$0xf] %vm228, 0
        %240 = vst.msk [vmem:[#allocation2 + $0x28] sm:$0xf] %vm228, 0
        %241 = vst.msk [vmem:[#allocation2 + $0x2c] sm:$0x1] %vm231, 0
        %242 = vst.msk [vmem:[#allocation2 + $0x30] sm:$0xf] %vm228, 0
        %243 = vst.msk [vmem:[#allocation2 + $0x34] sm:$0xf] %vm228, 0
        %244 = vst.msk [vmem:[#allocation2 + $0x38] sm:$0x1] %vm231, 0
        %245 = vst.msk [vmem:[#allocation2 + $0x3c] sm:$0xf] %vm228, 0
        %246 = vst.msk [vmem:[#allocation2 + $0x40] sm:$0xf] %vm228, 0
        %247 = vst.msk [vmem:[#allocation2 + $0x44] sm:$0x1] %vm231, 0
        %248 = vst.msk [vmem:[#allocation2 + $0x48] sm:$0xf] %vm228, 0
        %249 = vst.msk [vmem:[#allocation2 + $0x4c] sm:$0xf] %vm228, 0
        %250 = vst.msk [vmem:[#allocation2 + $0x50] sm:$0x1] %vm231, 0
        %251 = vst.msk [vmem:[#allocation2 + $0x54] sm:$0xf] %vm228, 0
        %252 = vst.msk [vmem:[#allocation2 + $0x58] sm:$0xf] %vm228, 0
        %253 = vst.msk [vmem:[#allocation2 + $0x5c] sm:$0x1] %vm231, 0
        %254 = vst.msk [vmem:[#allocation2 + $0x60] sm:$0xf] %vm228, 0
        %255 = vst.msk [vmem:[#allocation2 + $0x64] sm:$0xf] %vm228, 0
        %256 = vst.msk [vmem:[#allocation2 + $0x68] sm:$0x1] %vm231, 0
        %257 = vst.msk [vmem:[#allocation2 + $0x6c] sm:$0xf] %vm228, 0
        %258 = vst.msk [vmem:[#allocation2 + $0x70] sm:$0xf] %vm228, 0
        %259 = vst.msk [vmem:[#allocation2 + $0x74] sm:$0x1] %vm231, 0
        %260 = vst.msk [vmem:[#allocation2 + $0x78] sm:$0xf] %vm228, 0
        %261 = vst.msk [vmem:[#allocation2 + $0x7c] sm:$0xf] %vm228, 0
        %262 = vst.msk [vmem:[#allocation2 + $0x80] sm:$0x1] %vm231, 0
        %263 = vst.msk [vmem:[#allocation2 + $0x84] sm:$0xf] %vm228, 0
        %264 = vst.msk [vmem:[#allocation2 + $0x88] sm:$0xf] %vm228, 0
        %265 = vst.msk [vmem:[#allocation2 + $0x8c] sm:$0x1] %vm231, 0
        %266 = vst.msk [vmem:[#allocation2 + $0x90] sm:$0xf] %vm228, 0
        %267 = vst.msk [vmem:[#allocation2 + $0x94] sm:$0xf] %vm228, 0
        %268 = vst.msk [vmem:[#allocation2 + $0x98] sm:$0x1] %vm231, 0
        %269 = vst.msk [vmem:[#allocation2 + $0x9c] sm:$0xf] %vm228, 0
        %270 = vst.msk [vmem:[#allocation2 + $0xa0] sm:$0xf] %vm228, 0
        %271 = vst.msk [vmem:[#allocation2 + $0xa4] sm:$0x1] %vm231, 0
        %272 = vst.msk [vmem:[#allocation2 + $0xa8] sm:$0xf] %vm228, 0
        %273 = vst.msk [vmem:[#allocation2 + $0xac] sm:$0xf] %vm228, 0
        %274 = vst.msk [vmem:[#allocation2 + $0xb0] sm:$0x1] %vm231, 0
        %275 = vst.msk [vmem:[#allocation2 + $0xb4] sm:$0xf] %vm228, 0
        %276 = vst.msk [vmem:[#allocation2 + $0xb8] sm:$0xf] %vm228, 0
        %277 = vst.msk [vmem:[#allocation2 + $0xbc] sm:$0x1] %vm231, 0
        %278 = vst.msk [vmem:[#allocation2 + $0xc0] sm:$0xf] %vm228, 0
        %279 = vst.msk [vmem:[#allocation2 + $0xc4] sm:$0xf] %vm228, 0
        %280 = vst.msk [vmem:[#allocation2 + $0xc8] sm:$0x1] %vm231, 0
        %281 = vst.msk [vmem:[#allocation2 + $0xcc] sm:$0xf] %vm228, 0
        %282 = vst.msk [vmem:[#allocation2 + $0xd0] sm:$0xf] %vm228, 0
        %283 = vst.msk [vmem:[#allocation2 + $0xd4] sm:$0x1] %vm231, 0
        %v284 = vld [vmem:[%s211] sm:$0xf]
        %v285 = vld [vmem:[%s211 + $0x4] sm:$0xf]
        %v286 = vld [vmem:[%s211 + $0x8] sm:$0xf]
        %v287 = vld [vmem:[%s211 + $0xc] sm:$0xf]
        %v288 = vld [vmem:[%s211 + $0x10] sm:$0xf]
        %v289 = vld [vmem:[%s211 + $0x14] sm:$0xf]
        %v290 = vld [vmem:[%s211 + $0x18] sm:$0xf]
        %v291 = vld [vmem:[%s211 + $0x1c] sm:$0xf]
        %v292 = vld [vmem:[%s211 + $0x20] sm:$0xf]
        %v293 = vld [vmem:[%s211 + $0x24] sm:$0xf]
        %v294 = vld [vmem:[%s211 + $0x28] sm:$0xf]
        %v295 = vld [vmem:[%s211 + $0x2c] sm:$0xf]
        %v296 = vld [vmem:[%s211 + $0x30] sm:$0xf]
        %v297 = vld [vmem:[%s211 + $0x34] sm:$0xf]
        %v298 = vld [vmem:[%s211 + $0x38] sm:$0xf]
        %v299 = vld [vmem:[%s211 + $0x3c] sm:$0xf]
        %v300 = vld [vmem:[%s211 + $0x40] sm:$0xf]
        %v301 = vld [vmem:[%s211 + $0x44] sm:$0xf]
        %v302 = vld [vmem:[%s211 + $0x48] sm:$0xf]
        %v303 = vld [vmem:[%s211 + $0x4c] sm:$0xf]
        %v304 = vld [vmem:[%s211 + $0x50] sm:$0xf]
        %v305 = vld [vmem:[%s211 + $0x54] sm:$0xf]
        %v306 = vld [vmem:[%s211 + $0x58] sm:$0xf]
        %v307 = vld [vmem:[%s211 + $0x5c] sm:$0xf]
        %v308 = vld [vmem:[%s211 + $0x60] sm:$0xf]
        %v309 = vld [vmem:[%s211 + $0x64] sm:$0xf]
        %v310 = vld [vmem:[%s211 + $0x68] sm:$0xf]
        %v311 = vld [vmem:[%s211 + $0x6c] sm:$0xf]
        %v312 = vld [vmem:[%s211 + $0x70] sm:$0xf]
        %v313 = vld [vmem:[%s211 + $0x74] sm:$0xf]
        %v314 = vld [vmem:[%s211 + $0x78] sm:$0xf]
        %v315 = vld [vmem:[%s211 + $0x7c] sm:$0xf]
        %vm316 = vsmask.f32 256
        %vm317 = vsmask.f32 4368
        %vm318 = vmor %vm316, %vm317
        %v320 = vshrl.u32 %v284, 16
        %v322 = vrot.slane %v320, 7
        %v323 = vshll.u32 %v284, 16
        %v325 = vor.u32 %v322, %v323
        %v326 = vrot.slane %v322, 4
        %v328 = vshrl.u32 %v285, 16
        %v330 = vrot.slane %v328, 7
        %v331 = vshll.u32 %v285, 16
        %v333 = vor.u32 %v330, %v331
        %v334 = vsel %vm318, %v326, %v333
        %v335 = vrot.slane %v330, 4
        %v337 = vshrl.u32 %v286, 16
        %v339 = vrot.slane %v337, 7
        %v340 = vshll.u32 %v286, 16
        %v342 = vor.u32 %v339, %v340
        %v343 = vrot.slane %v339, 4
        %v345 = vshrl.u32 %v287, 16
        %v347 = vrot.slane %v345, 7
        %v348 = vshll.u32 %v287, 16
        %v350 = vor.u32 %v347, %v348
        %v351 = vsel %vm318, %v343, %v350
        %v352 = vrot.slane %v347, 4
        %v354 = vshrl.u32 %v288, 16
        %v356 = vrot.slane %v354, 7
        %v357 = vshll.u32 %v288, 16
        %v359 = vor.u32 %v356, %v357
        %v360 = vrot.slane %v356, 4
        %v362 = vshrl.u32 %v289, 16
        %v364 = vrot.slane %v362, 7
        %v365 = vshll.u32 %v289, 16
        %v367 = vor.u32 %v364, %v365
        %v368 = vsel %vm318, %v360, %v367
        %v369 = vrot.slane %v364, 4
        %v371 = vshrl.u32 %v290, 16
        %v373 = vrot.slane %v371, 7
        %v374 = vshll.u32 %v290, 16
        %v376 = vor.u32 %v373, %v374
        %v377 = vrot.slane %v373, 4
        %v379 = vshrl.u32 %v291, 16
        %v381 = vrot.slane %v379, 7
        %v382 = vshll.u32 %v291, 16
        %v384 = vor.u32 %v381, %v382
        %v385 = vsel %vm318, %v377, %v384
        %v386 = vrot.slane %v381, 4
        %v388 = vshrl.u32 %v292, 16
        %v390 = vrot.slane %v388, 7
        %v391 = vshll.u32 %v292, 16
        %v393 = vor.u32 %v390, %v391
        %v394 = vrot.slane %v390, 4
        %v396 = vshrl.u32 %v293, 16
        %v398 = vrot.slane %v396, 7
        %v399 = vshll.u32 %v293, 16
        %v401 = vor.u32 %v398, %v399
        %v402 = vsel %vm318, %v394, %v401
        %v403 = vrot.slane %v398, 4
        %v405 = vshrl.u32 %v294, 16
        %v407 = vrot.slane %v405, 7
        %v408 = vshll.u32 %v294, 16
        %v410 = vor.u32 %v407, %v408
        %v411 = vrot.slane %v407, 4
        %v413 = vshrl.u32 %v295, 16
        %v415 = vrot.slane %v413, 7
        %v416 = vshll.u32 %v295, 16
        %v418 = vor.u32 %v415, %v416
        %v419 = vsel %vm318, %v411, %v418
        %v420 = vrot.slane %v415, 4
        %v422 = vshrl.u32 %v296, 16
        %v424 = vrot.slane %v422, 7
        %v425 = vshll.u32 %v296, 16
        %v427 = vor.u32 %v424, %v425
        %v428 = vrot.slane %v424, 4
        %v430 = vshrl.u32 %v297, 16
        %v432 = vrot.slane %v430, 7
        %v433 = vshll.u32 %v297, 16
        %v435 = vor.u32 %v432, %v433
        %v436 = vsel %vm318, %v428, %v435
        %v437 = vrot.slane %v432, 4
        %v439 = vshrl.u32 %v298, 16
        %v441 = vrot.slane %v439, 7
        %v442 = vshll.u32 %v298, 16
        %v444 = vor.u32 %v441, %v442
        %v445 = vrot.slane %v441, 4
        %v447 = vshrl.u32 %v299, 16
        %v449 = vrot.slane %v447, 7
        %v450 = vshll.u32 %v299, 16
        %v452 = vor.u32 %v449, %v450
        %v453 = vsel %vm318, %v445, %v452
        %v454 = vrot.slane %v449, 4
        %v456 = vshrl.u32 %v300, 16
        %v458 = vrot.slane %v456, 7
        %v459 = vshll.u32 %v300, 16
        %v461 = vor.u32 %v458, %v459
        %v462 = vrot.slane %v458, 4
        %v464 = vshrl.u32 %v301, 16
        %v466 = vrot.slane %v464, 7
        %v467 = vshll.u32 %v301, 16
        %v469 = vor.u32 %v466, %v467
        %v470 = vsel %vm318, %v462, %v469
        %v471 = vrot.slane %v466, 4
        %v473 = vshrl.u32 %v302, 16
        %v475 = vrot.slane %v473, 7
        %v476 = vshll.u32 %v302, 16
        %v478 = vor.u32 %v475, %v476
        %v479 = vrot.slane %v475, 4
        %v481 = vshrl.u32 %v303, 16
        %v483 = vrot.slane %v481, 7
        %v484 = vshll.u32 %v303, 16
        %v486 = vor.u32 %v483, %v484
        %v487 = vsel %vm318, %v479, %v486
        %v488 = vrot.slane %v483, 4
        %v490 = vshrl.u32 %v304, 16
        %v492 = vrot.slane %v490, 7
        %v493 = vshll.u32 %v304, 16
        %v495 = vor.u32 %v492, %v493
        %v496 = vrot.slane %v492, 4
        %v498 = vshrl.u32 %v305, 16
        %v500 = vrot.slane %v498, 7
        %v501 = vshll.u32 %v305, 16
        %v503 = vor.u32 %v500, %v501
        %v504 = vsel %vm318, %v496, %v503
        %v505 = vrot.slane %v500, 4
        %v507 = vshrl.u32 %v306, 16
        %v509 = vrot.slane %v507, 7
        %v510 = vshll.u32 %v306, 16
        %v512 = vor.u32 %v509, %v510
        %v513 = vrot.slane %v509, 4
        %v515 = vshrl.u32 %v307, 16
        %v517 = vrot.slane %v515, 7
        %v518 = vshll.u32 %v307, 16
        %v520 = vor.u32 %v517, %v518
        %v521 = vsel %vm318, %v513, %v520
        %v522 = vrot.slane %v517, 4
        %v524 = vshrl.u32 %v308, 16
        %v526 = vrot.slane %v524, 7
        %v527 = vshll.u32 %v308, 16
        %v529 = vor.u32 %v526, %v527
        %v530 = vrot.slane %v526, 4
        %v532 = vshrl.u32 %v309, 16
        %v534 = vrot.slane %v532, 7
        %v535 = vshll.u32 %v309, 16
        %v537 = vor.u32 %v534, %v535
        %v538 = vsel %vm318, %v530, %v537
        %v539 = vrot.slane %v534, 4
        %v541 = vshrl.u32 %v310, 16
        %v543 = vrot.slane %v541, 7
        %v544 = vshll.u32 %v310, 16
        %v546 = vor.u32 %v543, %v544
        %v547 = vrot.slane %v543, 4
        %v549 = vshrl.u32 %v311, 16
        %v551 = vrot.slane %v549, 7
        %v552 = vshll.u32 %v311, 16
        %v554 = vor.u32 %v551, %v552
        %v555 = vsel %vm318, %v547, %v554
        %v556 = vrot.slane %v551, 4
        %v558 = vshrl.u32 %v312, 16
        %v560 = vrot.slane %v558, 7
        %v561 = vshll.u32 %v312, 16
        %v563 = vor.u32 %v560, %v561
        %v564 = vrot.slane %v560, 4
        %v566 = vshrl.u32 %v313, 16
        %v568 = vrot.slane %v566, 7
        %v569 = vshll.u32 %v313, 16
        %v571 = vor.u32 %v568, %v569
        %v572 = vsel %vm318, %v564, %v571
        %v573 = vrot.slane %v568, 4
        %v575 = vshrl.u32 %v314, 16
        %v577 = vrot.slane %v575, 7
        %v578 = vshll.u32 %v314, 16
        %v580 = vor.u32 %v577, %v578
        %v581 = vrot.slane %v577, 4
        %v583 = vshrl.u32 %v315, 16
        %v585 = vrot.slane %v583, 7
        %v586 = vshll.u32 %v315, 16
        %v588 = vor.u32 %v585, %v586
        %v589 = vsel %vm318, %v581, %v588
        %v590 = vrot.slane %v585, 4
        %s639 = scalar_lea.vmem [#allocation2], 12
        %vm640 = vcmask 27648
        %vm641 = vsmask.f32 7938
        %vm642 = vmand %vm640, %vm641
        %v643 = vld [vmem:[%s639] sm:$0xf]
        %v644 = vsel %vm642, %v325, %v643
        %645 = vst [vmem:[%s639] sm:$0xf] %v644
        %646 = vst.msk [vmem:[%s639 + $0x4] sm:$0xf] %vm228, %v334
        %vm647 = vcmask 24576
        %vm648 = vmand %vm647, %vm316
        %v649 = vld [vmem:[%s639 + $0x8] sm:$0x1]
        %v650 = vsel %vm648, %v335, %v649
        %651 = vst [vmem:[%s639 + $0x8] sm:$0x1] %v650
        %v652 = vld [vmem:[%s639 + $0xc] sm:$0xf]
        %v653 = vsel %vm642, %v342, %v652
        %654 = vst [vmem:[%s639 + $0xc] sm:$0xf] %v653
        %655 = vst.msk [vmem:[%s639 + $0x10] sm:$0xf] %vm228, %v351
        %v656 = vld [vmem:[%s639 + $0x14] sm:$0x1]
        %v657 = vsel %vm648, %v352, %v656
        %658 = vst [vmem:[%s639 + $0x14] sm:$0x1] %v657
        %v659 = vld [vmem:[%s639 + $0x18] sm:$0xf]
        %v660 = vsel %vm642, %v359, %v659
        %661 = vst [vmem:[%s639 + $0x18] sm:$0xf] %v660
        %662 = vst.msk [vmem:[%s639 + $0x1c] sm:$0xf] %vm228, %v368
        %v663 = vld [vmem:[%s639 + $0x20] sm:$0x1]
        %v664 = vsel %vm648, %v369, %v663
        %665 = vst [vmem:[%s639 + $0x20] sm:$0x1] %v664
        %v666 = vld [vmem:[%s639 + $0x24] sm:$0xf]
        %v667 = vsel %vm642, %v376, %v666
        %668 = vst [vmem:[%s639 + $0x24] sm:$0xf] %v667
        %669 = vst.msk [vmem:[%s639 + $0x28] sm:$0xf] %vm228, %v385
        %v670 = vld [vmem:[%s639 + $0x2c] sm:$0x1]
        %v671 = vsel %vm648, %v386, %v670
        %672 = vst [vmem:[%s639 + $0x2c] sm:$0x1] %v671
        %v673 = vld [vmem:[%s639 + $0x30] sm:$0xf]
        %v674 = vsel %vm642, %v393, %v673
        %675 = vst [vmem:[%s639 + $0x30] sm:$0xf] %v674
        %676 = vst.msk [vmem:[%s639 + $0x34] sm:$0xf] %vm228, %v402
        %v677 = vld [vmem:[%s639 + $0x38] sm:$0x1]
        %v678 = vsel %vm648, %v403, %v677
        %679 = vst [vmem:[%s639 + $0x38] sm:$0x1] %v678
        %v680 = vld [vmem:[%s639 + $0x3c] sm:$0xf]
        %v681 = vsel %vm642, %v410, %v680
        %682 = vst [vmem:[%s639 + $0x3c] sm:$0xf] %v681
        %683 = vst.msk [vmem:[%s639 + $0x40] sm:$0xf] %vm228, %v419
        %v684 = vld [vmem:[%s639 + $0x44] sm:$0x1]
        %v685 = vsel %vm648, %v420, %v684
        %686 = vst [vmem:[%s639 + $0x44] sm:$0x1] %v685
        %v687 = vld [vmem:[%s639 + $0x48] sm:$0xf]
        %v688 = vsel %vm642, %v427, %v687
        %689 = vst [vmem:[%s639 + $0x48] sm:$0xf] %v688
        %690 = vst.msk [vmem:[%s639 + $0x4c] sm:$0xf] %vm228, %v436
        %v691 = vld [vmem:[%s639 + $0x50] sm:$0x1]
        %v692 = vsel %vm648, %v437, %v691
        %693 = vst [vmem:[%s639 + $0x50] sm:$0x1] %v692
        %v694 = vld [vmem:[%s639 + $0x54] sm:$0xf]
        %v695 = vsel %vm642, %v444, %v694
        %696 = vst [vmem:[%s639 + $0x54] sm:$0xf] %v695
        %697 = vst.msk [vmem:[%s639 + $0x58] sm:$0xf] %vm228, %v453
        %v698 = vld [vmem:[%s639 + $0x5c] sm:$0x1]
        %v699 = vsel %vm648, %v454, %v698
        %700 = vst [vmem:[%s639 + $0x5c] sm:$0x1] %v699
        %v701 = vld [vmem:[%s639 + $0x60] sm:$0xf]
        %v702 = vsel %vm642, %v461, %v701
        %703 = vst [vmem:[%s639 + $0x60] sm:$0xf] %v702
        %704 = vst.msk [vmem:[%s639 + $0x64] sm:$0xf] %vm228, %v470
        %v705 = vld [vmem:[%s639 + $0x68] sm:$0x1]
        %v706 = vsel %vm648, %v471, %v705
        %707 = vst [vmem:[%s639 + $0x68] sm:$0x1] %v706
        %v708 = vld [vmem:[%s639 + $0x6c] sm:$0xf]
        %v709 = vsel %vm642, %v478, %v708
        %710 = vst [vmem:[%s639 + $0x6c] sm:$0xf] %v709
        %711 = vst.msk [vmem:[%s639 + $0x70] sm:$0xf] %vm228, %v487
        %v712 = vld [vmem:[%s639 + $0x74] sm:$0x1]
        %v713 = vsel %vm648, %v488, %v712
        %714 = vst [vmem:[%s639 + $0x74] sm:$0x1] %v713
        %v715 = vld [vmem:[%s639 + $0x78] sm:$0xf]
        %v716 = vsel %vm642, %v495, %v715
        %717 = vst [vmem:[%s639 + $0x78] sm:$0xf] %v716
        %718 = vst.msk [vmem:[%s639 + $0x7c] sm:$0xf] %vm228, %v504
        %v719 = vld [vmem:[%s639 + $0x80] sm:$0x1]
        %v720 = vsel %vm648, %v505, %v719
        %721 = vst [vmem:[%s639 + $0x80] sm:$0x1] %v720
        %v722 = vld [vmem:[%s639 + $0x84] sm:$0xf]
        %v723 = vsel %vm642, %v512, %v722
        %724 = vst [vmem:[%s639 + $0x84] sm:$0xf] %v723
        %725 = vst.msk [vmem:[%s639 + $0x88] sm:$0xf] %vm228, %v521
        %v726 = vld [vmem:[%s639 + $0x8c] sm:$0x1]
        %v727 = vsel %vm648, %v522, %v726
        %728 = vst [vmem:[%s639 + $0x8c] sm:$0x1] %v727
        %v729 = vld [vmem:[%s639 + $0x90] sm:$0xf]
        %v730 = vsel %vm642, %v529, %v729
        %731 = vst [vmem:[%s639 + $0x90] sm:$0xf] %v730
        %732 = vst.msk [vmem:[%s639 + $0x94] sm:$0xf] %vm228, %v538
        %v733 = vld [vmem:[%s639 + $0x98] sm:$0x1]
        %v734 = vsel %vm648, %v539, %v733
        %735 = vst [vmem:[%s639 + $0x98] sm:$0x1] %v734
        %v736 = vld [vmem:[%s639 + $0x9c] sm:$0xf]
        %v737 = vsel %vm642, %v546, %v736
        %738 = vst [vmem:[%s639 + $0x9c] sm:$0xf] %v737
        %739 = vst.msk [vmem:[%s639 + $0xa0] sm:$0xf] %vm228, %v555
        %v740 = vld [vmem:[%s639 + $0xa4] sm:$0x1]
        %v741 = vsel %vm648, %v556, %v740
        %742 = vst [vmem:[%s639 + $0xa4] sm:$0x1] %v741
        %v743 = vld [vmem:[%s639 + $0xa8] sm:$0xf]
        %v744 = vsel %vm642, %v563, %v743
        %745 = vst [vmem:[%s639 + $0xa8] sm:$0xf] %v744
        %746 = vst.msk [vmem:[%s639 + $0xac] sm:$0xf] %vm228, %v572
        %v747 = vld [vmem:[%s639 + $0xb0] sm:$0x1]
        %v748 = vsel %vm648, %v573, %v747
        %749 = vst [vmem:[%s639 + $0xb0] sm:$0x1] %v748
        %v750 = vld [vmem:[%s639 + $0xb4] sm:$0xf]
        %v751 = vsel %vm642, %v580, %v750
        %752 = vst [vmem:[%s639 + $0xb4] sm:$0xf] %v751
        %753 = vst.msk [vmem:[%s639 + $0xb8] sm:$0xf] %vm228, %v589
        %v754 = vld [vmem:[%s639 + $0xbc] sm:$0x1]
        %v755 = vsel %vm648, %v590, %v754
        %756 = vst [vmem:[%s639 + $0xbc] sm:$0x1] %v755
        %vm757 = vcmask 1043744
        %758 = vst.msk [vmem:[#allocation3] sm:$0xf] %vm757, 0
        %759 = vst.msk [vmem:[#allocation3 + $0x4] sm:$0xf] %vm757, 0
        %760 = vst.msk [vmem:[#allocation3 + $0x8] sm:$0xf] %vm757, 0
        %761 = vst.msk [vmem:[#allocation3 + $0xc] sm:$0xf] %vm757, 0
        %762 = vst.msk [vmem:[#allocation3 + $0x10] sm:$0xf] %vm757, 0
        %763 = vst.msk [vmem:[#allocation3 + $0x14] sm:$0xf] %vm757, 0
        %764 = vst.msk [vmem:[#allocation3 + $0x18] sm:$0xf] %vm757, 0
        %765 = vst.msk [vmem:[#allocation3 + $0x1c] sm:$0xf] %vm757, 0
        %766 = vst.msk [vmem:[#allocation3 + $0x20] sm:$0xf] %vm757, 0
        %767 = vst.msk [vmem:[#allocation3 + $0x24] sm:$0xf] %vm757, 0
        %768 = vst.msk [vmem:[#allocation3 + $0x28] sm:$0xf] %vm757, 0
        %769 = vst.msk [vmem:[#allocation3 + $0x2c] sm:$0xf] %vm757, 0
        %770 = vst.msk [vmem:[#allocation3 + $0x30] sm:$0xf] %vm757, 0
        %771 = vst.msk [vmem:[#allocation3 + $0x34] sm:$0xf] %vm757, 0
        %772 = vst.msk [vmem:[#allocation3 + $0x38] sm:$0xf] %vm757, 0
        %773 = vst.msk [vmem:[#allocation3 + $0x3c] sm:$0xf] %vm757, 0
        %774 = vst.msk [vmem:[#allocation3 + $0x40] sm:$0xf] %vm757, 0
        %775 = vst.msk [vmem:[#allocation3 + $0x44] sm:$0xf] %vm757, 0
        %776 = vst.msk [vmem:[#allocation3 + $0x48] sm:$0xf] %vm757, 0
        %777 = vst.msk [vmem:[#allocation3 + $0x4c] sm:$0xf] %vm757, 0
        %778 = vst.msk [vmem:[#allocation3 + $0x50] sm:$0xf] %vm757, 0
        %779 = vst.msk [vmem:[#allocation3 + $0x54] sm:$0xf] %vm757, 0
        %780 = vst.msk [vmem:[#allocation3 + $0x58] sm:$0xf] %vm757, 0
        %781 = vst.msk [vmem:[#allocation3 + $0x5c] sm:$0xf] %vm757, 0
        %782 = vst.msk [vmem:[#allocation3 + $0x60] sm:$0xf] %vm757, 0
        %783 = vst.msk [vmem:[#allocation3 + $0x64] sm:$0xf] %vm757, 0
        %784 = vst.msk [vmem:[#allocation3 + $0x68] sm:$0xf] %vm757, 0
        %785 = vst.msk [vmem:[#allocation3 + $0x6c] sm:$0xf] %vm757, 0
        %786 = vst.msk [vmem:[#allocation3 + $0x70] sm:$0xf] %vm757, 0
        %787 = vst.msk [vmem:[#allocation3 + $0x74] sm:$0xf] %vm757, 0
        %788 = vst.msk [vmem:[#allocation3 + $0x78] sm:$0xf] %vm757, 0
        %789 = vst.msk [vmem:[#allocation3 + $0x7c] sm:$0xf] %vm757, 0
      $region40: #{tpu_custom_call.1} parent=35 // pred_fallthru
        _
      %s790 = smul.u32 %s20, 16
      %s791 = smul.u32 %s790, 3
      %s792 = smul.addr %s791, 4
      %s793 = scalar_lea.vmem [#allocation2], %s792
      %v794 = vld [vmem:[%s793] sm:$0xf]
      %v795 = vld [vmem:[%s793 + $0x4] sm:$0xf]
      %v796 = vld [vmem:[%s793 + $0x8] sm:$0x1]
      %v797 = vld [vmem:[%s793 + $0xc] sm:$0xf]
      %v798 = vld [vmem:[%s793 + $0x10] sm:$0xf]
      %v799 = vld [vmem:[%s793 + $0x14] sm:$0x1]
      %v800 = vld [vmem:[%s793 + $0x18] sm:$0xf]
      %v801 = vld [vmem:[%s793 + $0x1c] sm:$0xf]
      %v802 = vld [vmem:[%s793 + $0x20] sm:$0x1]
      %v803 = vld [vmem:[%s793 + $0x24] sm:$0xf]
      %v804 = vld [vmem:[%s793 + $0x28] sm:$0xf]
      %v805 = vld [vmem:[%s793 + $0x2c] sm:$0x1]
      %v806 = vld [vmem:[%s793 + $0x30] sm:$0xf]
      %v807 = vld [vmem:[%s793 + $0x34] sm:$0xf]
      %v808 = vld [vmem:[%s793 + $0x38] sm:$0x1]
      %v809 = vld [vmem:[%s793 + $0x3c] sm:$0xf]
      %v810 = vld [vmem:[%s793 + $0x40] sm:$0xf]
      %v811 = vld [vmem:[%s793 + $0x44] sm:$0x1]
      %v812 = vld [vmem:[%s793 + $0x48] sm:$0xf]
      %v813 = vld [vmem:[%s793 + $0x4c] sm:$0xf]
      %v814 = vld [vmem:[%s793 + $0x50] sm:$0x1]
      %v815 = vld [vmem:[%s793 + $0x54] sm:$0xf]
      %v816 = vld [vmem:[%s793 + $0x58] sm:$0xf]
      %v817 = vld [vmem:[%s793 + $0x5c] sm:$0x1]
      %v818 = vld [vmem:[%s793 + $0x60] sm:$0xf]
      %v819 = vld [vmem:[%s793 + $0x64] sm:$0xf]
      %v820 = vld [vmem:[%s793 + $0x68] sm:$0x1]
      %v821 = vld [vmem:[%s793 + $0x6c] sm:$0xf]
      %v822 = vld [vmem:[%s793 + $0x70] sm:$0xf]
      %v823 = vld [vmem:[%s793 + $0x74] sm:$0x1]
      %v824 = vld [vmem:[%s793 + $0x78] sm:$0xf]
      %v825 = vld [vmem:[%s793 + $0x7c] sm:$0xf]
      %v826 = vld [vmem:[%s793 + $0x80] sm:$0x1]
      %v827 = vld [vmem:[%s793 + $0x84] sm:$0xf]
      %v828 = vld [vmem:[%s793 + $0x88] sm:$0xf]
      %v829 = vld [vmem:[%s793 + $0x8c] sm:$0x1]
      %v830 = vld [vmem:[%s793 + $0x90] sm:$0xf]
      %v831 = vld [vmem:[%s793 + $0x94] sm:$0xf]
      %v832 = vld [vmem:[%s793 + $0x98] sm:$0x1]
      %v833 = vld [vmem:[%s793 + $0x9c] sm:$0xf]
      %v834 = vld [vmem:[%s793 + $0xa0] sm:$0xf]
      %v835 = vld [vmem:[%s793 + $0xa4] sm:$0x1]
      %v836 = vld [vmem:[%s793 + $0xa8] sm:$0xf]
      %v837 = vld [vmem:[%s793 + $0xac] sm:$0xf]
      %v838 = vld [vmem:[%s793 + $0xb0] sm:$0x1]
      %v839 = vld [vmem:[%s793 + $0xb4] sm:$0xf]
      %v840 = vld [vmem:[%s793 + $0xb8] sm:$0xf]
      %v841 = vld [vmem:[%s793 + $0xbc] sm:$0x1]
      %vm842 = vcmask 27648
      %843 = vst.msk [vmem:[#allocation3] sm:$0xf] %vm842, %v794
      %844 = vst.msk [vmem:[#allocation3 + $0x4] sm:$0xf] %vm842, %v795
      %845 = vst.msk [vmem:[#allocation3 + $0x8] sm:$0xf] %vm842, %v797
      %846 = vst.msk [vmem:[#allocation3 + $0xc] sm:$0xf] %vm842, %v798
      %847 = vst.msk [vmem:[#allocation3 + $0x10] sm:$0xf] %vm842, %v800
      %848 = vst.msk [vmem:[#allocation3 + $0x14] sm:$0xf] %vm842, %v801
      %849 = vst.msk [vmem:[#allocation3 + $0x18] sm:$0xf] %vm842, %v803
      %850 = vst.msk [vmem:[#allocation3 + $0x1c] sm:$0xf] %vm842, %v804
      %851 = vst.msk [vmem:[#allocation3 + $0x20] sm:$0xf] %vm842, %v806
      %852 = vst.msk [vmem:[#allocation3 + $0x24] sm:$0xf] %vm842, %v807
      %853 = vst.msk [vmem:[#allocation3 + $0x28] sm:$0xf] %vm842, %v809
      %854 = vst.msk [vmem:[#allocation3 + $0x2c] sm:$0xf] %vm842, %v810
      %855 = vst.msk [vmem:[#allocation3 + $0x30] sm:$0xf] %vm842, %v812
      %856 = vst.msk [vmem:[#allocation3 + $0x34] sm:$0xf] %vm842, %v813
      %857 = vst.msk [vmem:[#allocation3 + $0x38] sm:$0xf] %vm842, %v815
      %858 = vst.msk [vmem:[#allocation3 + $0x3c] sm:$0xf] %vm842, %v816
      %859 = vst.msk [vmem:[#allocation3 + $0x40] sm:$0xf] %vm842, %v818
      %860 = vst.msk [vmem:[#allocation3 + $0x44] sm:$0xf] %vm842, %v819
      %861 = vst.msk [vmem:[#allocation3 + $0x48] sm:$0xf] %vm842, %v821
      %862 = vst.msk [vmem:[#allocation3 + $0x4c] sm:$0xf] %vm842, %v822
      %863 = vst.msk [vmem:[#allocation3 + $0x50] sm:$0xf] %vm842, %v824
      %864 = vst.msk [vmem:[#allocation3 + $0x54] sm:$0xf] %vm842, %v825
      %865 = vst.msk [vmem:[#allocation3 + $0x58] sm:$0xf] %vm842, %v827
      %866 = vst.msk [vmem:[#allocation3 + $0x5c] sm:$0xf] %vm842, %v828
      %867 = vst.msk [vmem:[#allocation3 + $0x60] sm:$0xf] %vm842, %v830
      %868 = vst.msk [vmem:[#allocation3 + $0x64] sm:$0xf] %vm842, %v831
      %869 = vst.msk [vmem:[#allocation3 + $0x68] sm:$0xf] %vm842, %v833
      %870 = vst.msk [vmem:[#allocation3 + $0x6c] sm:$0xf] %vm842, %v834
      %871 = vst.msk [vmem:[#allocation3 + $0x70] sm:$0xf] %vm842, %v836
      %872 = vst.msk [vmem:[#allocation3 + $0x74] sm:$0xf] %vm842, %v837
      %873 = vst.msk [vmem:[#allocation3 + $0x78] sm:$0xf] %vm842, %v839
      %874 = vst.msk [vmem:[#allocation3 + $0x7c] sm:$0xf] %vm842, %v840
      %vm875 = vsmask.f32 3328
      %vm876 = vsmask.f32 7440
      %vm877 = vmor %vm875, %vm876
      %v879 = vshrl.u32 %v794, 16
      %v881 = vrot.slane %v879, 4
      %v882 = vshll.u32 %v794, 16
      %v884 = vrot.slane %v882, 5
      %v885 = vor.u32 %v881, %v884
      %v886 = vrot.slane %v885, 4
      %v888 = vshll.u32 %v795, 16
      %v890 = vrot.slane %v888, 5
      %v891 = vsel %vm877, %v886, %v890
      %v892 = vshrl.u32 %v795, 16
      %v894 = vrot.slane %v892, 4
      %v895 = vor.u32 %v894, %v890
      %v896 = vrot.slane %v895, 4
      %v898 = vshll.u32 %v796, 16
      %v900 = vrot.slane %v898, 5
      %v901 = vsel %vm877, %v896, %v900
      %v903 = vshrl.u32 %v797, 16
      %v905 = vrot.slane %v903, 4
      %v906 = vshll.u32 %v797, 16
      %v908 = vrot.slane %v906, 5
      %v909 = vor.u32 %v905, %v908
      %v910 = vrot.slane %v909, 4
      %v912 = vshll.u32 %v798, 16
      %v914 = vrot.slane %v912, 5
      %v915 = vsel %vm877, %v910, %v914
      %v916 = vshrl.u32 %v798, 16
      %v918 = vrot.slane %v916, 4
      %v919 = vor.u32 %v918, %v914
      %v920 = vrot.slane %v919, 4
      %v922 = vshll.u32 %v799, 16
      %v924 = vrot.slane %v922, 5
      %v925 = vsel %vm877, %v920, %v924
      %v927 = vshrl.u32 %v800, 16
      %v929 = vrot.slane %v927, 4
      %v930 = vshll.u32 %v800, 16
      %v932 = vrot.slane %v930, 5
      %v933 = vor.u32 %v929, %v932
      %v934 = vrot.slane %v933, 4
      %v936 = vshll.u32 %v801, 16
      %v938 = vrot.slane %v936, 5
      %v939 = vsel %vm877, %v934, %v938
      %v940 = vshrl.u32 %v801, 16
      %v942 = vrot.slane %v940, 4
      %v943 = vor.u32 %v942, %v938
      %v944 = vrot.slane %v943, 4
      %v946 = vshll.u32 %v802, 16
      %v948 = vrot.slane %v946, 5
      %v949 = vsel %vm877, %v944, %v948
      %v951 = vshrl.u32 %v803, 16
      %v953 = vrot.slane %v951, 4
      %v954 = vshll.u32 %v803, 16
      %v956 = vrot.slane %v954, 5
      %v957 = vor.u32 %v953, %v956
      %v958 = vrot.slane %v957, 4
      %v960 = vshll.u32 %v804, 16
      %v962 = vrot.slane %v960, 5
      %v963 = vsel %vm877, %v958, %v962
      %v964 = vshrl.u32 %v804, 16
      %v966 = vrot.slane %v964, 4
      %v967 = vor.u32 %v966, %v962
      %v968 = vrot.slane %v967, 4
      %v970 = vshll.u32 %v805, 16
      %v972 = vrot.slane %v970, 5
      %v973 = vsel %vm877, %v968, %v972
      %v975 = vshrl.u32 %v806, 16
      %v977 = vrot.slane %v975, 4
      %v978 = vshll.u32 %v806, 16
      %v980 = vrot.slane %v978, 5
      %v981 = vor.u32 %v977, %v980
      %v982 = vrot.slane %v981, 4
      %v984 = vshll.u32 %v807, 16
      %v986 = vrot.slane %v984, 5
      %v987 = vsel %vm877, %v982, %v986
      %v988 = vshrl.u32 %v807, 16
      %v990 = vrot.slane %v988, 4
      %v991 = vor.u32 %v990, %v986
      %v992 = vrot.slane %v991, 4
      %v994 = vshll.u32 %v808, 16
      %v996 = vrot.slane %v994, 5
      %v997 = vsel %vm877, %v992, %v996
      %v999 = vshrl.u32 %v809, 16
      %v1001 = vrot.slane %v999, 4
      %v1002 = vshll.u32 %v809, 16
      %v1004 = vrot.slane %v1002, 5
      %v1005 = vor.u32 %v1001, %v1004
      %v1006 = vrot.slane %v1005, 4
      %v1008 = vshll.u32 %v810, 16
      %v1010 = vrot.slane %v1008, 5
      %v1011 = vsel %vm877, %v1006, %v1010
      %v1012 = vshrl.u32 %v810, 16
      %v1014 = vrot.slane %v1012, 4
      %v1015 = vor.u32 %v1014, %v1010
      %v1016 = vrot.slane %v1015, 4
      %v1018 = vshll.u32 %v811, 16
      %v1020 = vrot.slane %v1018, 5
      %v1021 = vsel %vm877, %v1016, %v1020
      %v1023 = vshrl.u32 %v812, 16
      %v1025 = vrot.slane %v1023, 4
      %v1026 = vshll.u32 %v812, 16
      %v1028 = vrot.slane %v1026, 5
      %v1029 = vor.u32 %v1025, %v1028
      %v1030 = vrot.slane %v1029, 4
      %v1032 = vshll.u32 %v813, 16
      %v1034 = vrot.slane %v1032, 5
      %v1035 = vsel %vm877, %v1030, %v1034
      %v1036 = vshrl.u32 %v813, 16
      %v1038 = vrot.slane %v1036, 4
      %v1039 = vor.u32 %v1038, %v1034
      %v1040 = vrot.slane %v1039, 4
      %v1042 = vshll.u32 %v814, 16
      %v1044 = vrot.slane %v1042, 5
      %v1045 = vsel %vm877, %v1040, %v1044
      %v1047 = vshrl.u32 %v815, 16
      %v1049 = vrot.slane %v1047, 4
      %v1050 = vshll.u32 %v815, 16
      %v1052 = vrot.slane %v1050, 5
      %v1053 = vor.u32 %v1049, %v1052
      %v1054 = vrot.slane %v1053, 4
      %v1056 = vshll.u32 %v816, 16
      %v1058 = vrot.slane %v1056, 5
      %v1059 = vsel %vm877, %v1054, %v1058
      %v1060 = vshrl.u32 %v816, 16
      %v1062 = vrot.slane %v1060, 4
      %v1063 = vor.u32 %v1062, %v1058
      %v1064 = vrot.slane %v1063, 4
      %v1066 = vshll.u32 %v817, 16
      %v1068 = vrot.slane %v1066, 5
      %v1069 = vsel %vm877, %v1064, %v1068
      %v1071 = vshrl.u32 %v818, 16
      %v1073 = vrot.slane %v1071, 4
      %v1074 = vshll.u32 %v818, 16
      %v1076 = vrot.slane %v1074, 5
      %v1077 = vor.u32 %v1073, %v1076
      %v1078 = vrot.slane %v1077, 4
      %v1080 = vshll.u32 %v819, 16
      %v1082 = vrot.slane %v1080, 5
      %v1083 = vsel %vm877, %v1078, %v1082
      %v1084 = vshrl.u32 %v819, 16
      %v1086 = vrot.slane %v1084, 4
      %v1087 = vor.u32 %v1086, %v1082
      %v1088 = vrot.slane %v1087, 4
      %v1090 = vshll.u32 %v820, 16
      %v1092 = vrot.slane %v1090, 5
      %v1093 = vsel %vm877, %v1088, %v1092
      %v1095 = vshrl.u32 %v821, 16
      %v1097 = vrot.slane %v1095, 4
      %v1098 = vshll.u32 %v821, 16
      %v1100 = vrot.slane %v1098, 5
      %v1101 = vor.u32 %v1097, %v1100
      %v1102 = vrot.slane %v1101, 4
      %v1104 = vshll.u32 %v822, 16
      %v1106 = vrot.slane %v1104, 5
      %v1107 = vsel %vm877, %v1102, %v1106
      %v1108 = vshrl.u32 %v822, 16
      %v1110 = vrot.slane %v1108, 4
      %v1111 = vor.u32 %v1110, %v1106
      %v1112 = vrot.slane %v1111, 4
      %v1114 = vshll.u32 %v823, 16
      %v1116 = vrot.slane %v1114, 5
      %v1117 = vsel %vm877, %v1112, %v1116
      %v1119 = vshrl.u32 %v824, 16
      %v1121 = vrot.slane %v1119, 4
      %v1122 = vshll.u32 %v824, 16
      %v1124 = vrot.slane %v1122, 5
      %v1125 = vor.u32 %v1121, %v1124
      %v1126 = vrot.slane %v1125, 4
      %v1128 = vshll.u32 %v825, 16
      %v1130 = vrot.slane %v1128, 5
      %v1131 = vsel %vm877, %v1126, %v1130
      %v1132 = vshrl.u32 %v825, 16
      %v1134 = vrot.slane %v1132, 4
      %v1135 = vor.u32 %v1134, %v1130
      %v1136 = vrot.slane %v1135, 4
      %v1138 = vshll.u32 %v826, 16
      %v1140 = vrot.slane %v1138, 5
      %v1141 = vsel %vm877, %v1136, %v1140
      %v1143 = vshrl.u32 %v827, 16
      %v1145 = vrot.slane %v1143, 4
      %v1146 = vshll.u32 %v827, 16
      %v1148 = vrot.slane %v1146, 5
      %v1149 = vor.u32 %v1145, %v1148
      %v1150 = vrot.slane %v1149, 4
      %v1152 = vshll.u32 %v828, 16
      %v1154 = vrot.slane %v1152, 5
      %v1155 = vsel %vm877, %v1150, %v1154
      %v1156 = vshrl.u32 %v828, 16
      %v1158 = vrot.slane %v1156, 4
      %v1159 = vor.u32 %v1158, %v1154
      %v1160 = vrot.slane %v1159, 4
      %v1162 = vshll.u32 %v829, 16
      %v1164 = vrot.slane %v1162, 5
      %v1165 = vsel %vm877, %v1160, %v1164
      %v1167 = vshrl.u32 %v830, 16
      %v1169 = vrot.slane %v1167, 4
      %v1170 = vshll.u32 %v830, 16
      %v1172 = vrot.slane %v1170, 5
      %v1173 = vor.u32 %v1169, %v1172
      %v1174 = vrot.slane %v1173, 4
      %v1176 = vshll.u32 %v831, 16
      %v1178 = vrot.slane %v1176, 5
      %v1179 = vsel %vm877, %v1174, %v1178
      %v1180 = vshrl.u32 %v831, 16
      %v1182 = vrot.slane %v1180, 4
      %v1183 = vor.u32 %v1182, %v1178
      %v1184 = vrot.slane %v1183, 4
      %v1186 = vshll.u32 %v832, 16
      %v1188 = vrot.slane %v1186, 5
      %v1189 = vsel %vm877, %v1184, %v1188
      %v1191 = vshrl.u32 %v833, 16
      %v1193 = vrot.slane %v1191, 4
      %v1194 = vshll.u32 %v833, 16
      %v1196 = vrot.slane %v1194, 5
      %v1197 = vor.u32 %v1193, %v1196
      %v1198 = vrot.slane %v1197, 4
      %v1200 = vshll.u32 %v834, 16
      %v1202 = vrot.slane %v1200, 5
      %v1203 = vsel %vm877, %v1198, %v1202
      %v1204 = vshrl.u32 %v834, 16
      %v1206 = vrot.slane %v1204, 4
      %v1207 = vor.u32 %v1206, %v1202
      %v1208 = vrot.slane %v1207, 4
      %v1210 = vshll.u32 %v835, 16
      %v1212 = vrot.slane %v1210, 5
      %v1213 = vsel %vm877, %v1208, %v1212
      %v1215 = vshrl.u32 %v836, 16
      %v1217 = vrot.slane %v1215, 4
      %v1218 = vshll.u32 %v836, 16
      %v1220 = vrot.slane %v1218, 5
      %v1221 = vor.u32 %v1217, %v1220
      %v1222 = vrot.slane %v1221, 4
      %v1224 = vshll.u32 %v837, 16
      %v1226 = vrot.slane %v1224, 5
      %v1227 = vsel %vm877, %v1222, %v1226
      %v1228 = vshrl.u32 %v837, 16
      %v1230 = vrot.slane %v1228, 4
      %v1231 = vor.u32 %v1230, %v1226
      %v1232 = vrot.slane %v1231, 4
      %v1234 = vshll.u32 %v838, 16
      %v1236 = vrot.slane %v1234, 5
      %v1237 = vsel %vm877, %v1232, %v1236
      %v1239 = vshrl.u32 %v839, 16
      %v1241 = vrot.slane %v1239, 4
      %v1242 = vshll.u32 %v839, 16
      %v1244 = vrot.slane %v1242, 5
      %v1245 = vor.u32 %v1241, %v1244
      %v1246 = vrot.slane %v1245, 4
      %v1248 = vshll.u32 %v840, 16
      %v1250 = vrot.slane %v1248, 5
      %v1251 = vsel %vm877, %v1246, %v1250
      %v1252 = vshrl.u32 %v840, 16
      %v1254 = vrot.slane %v1252, 4
      %v1255 = vor.u32 %v1254, %v1250
      %v1256 = vrot.slane %v1255, 4
      %v1258 = vshll.u32 %v841, 16
      %v1260 = vrot.slane %v1258, 5
      %v1261 = vsel %vm877, %v1256, %v1260
      %1262 = vrot.lane.b32.xlu0 %v891, 4
      %v1263 = vpop.permute.xlu0 %1262
      %1264 = vrot.lane.b32.xlu0 %v901, 4
      %v1265 = vpop.permute.xlu0 %1264
      %1266 = vrot.lane.b32.xlu0 %v915, 4
      %v1267 = vpop.permute.xlu0 %1266
      %1268 = vrot.lane.b32.xlu0 %v925, 4
      %v1269 = vpop.permute.xlu0 %1268
      %1270 = vrot.lane.b32.xlu0 %v939, 4
      %v1271 = vpop.permute.xlu0 %1270
      %1272 = vrot.lane.b32.xlu0 %v949, 4
      %v1273 = vpop.permute.xlu0 %1272
      %1274 = vrot.lane.b32.xlu0 %v963, 4
      %v1275 = vpop.permute.xlu0 %1274
      %1276 = vrot.lane.b32.xlu0 %v973, 4
      %v1277 = vpop.permute.xlu0 %1276
      %1278 = vrot.lane.b32.xlu0 %v987, 4
      %v1279 = vpop.permute.xlu0 %1278
      %1280 = vrot.lane.b32.xlu0 %v997, 4
      %v1281 = vpop.permute.xlu0 %1280
      %1282 = vrot.lane.b32.xlu0 %v1011, 4
      %v1283 = vpop.permute.xlu0 %1282
      %1284 = vrot.lane.b32.xlu0 %v1021, 4
      %v1285 = vpop.permute.xlu0 %1284
      %1286 = vrot.lane.b32.xlu0 %v1035, 4
      %v1287 = vpop.permute.xlu0 %1286
      %1288 = vrot.lane.b32.xlu0 %v1045, 4
      %v1289 = vpop.permute.xlu0 %1288
      %1290 = vrot.lane.b32.xlu0 %v1059, 4
      %v1291 = vpop.permute.xlu0 %1290
      %1292 = vrot.lane.b32.xlu0 %v1069, 4
      %v1293 = vpop.permute.xlu0 %1292
      %1294 = vrot.lane.b32.xlu0 %v1083, 4
      %v1295 = vpop.permute.xlu0 %1294
      %1296 = vrot.lane.b32.xlu0 %v1093, 4
      %v1297 = vpop.permute.xlu0 %1296
      %1298 = vrot.lane.b32.xlu0 %v1107, 4
      %v1299 = vpop.permute.xlu0 %1298
      %1300 = vrot.lane.b32.xlu0 %v1117, 4
      %v1301 = vpop.permute.xlu0 %1300
      %1302 = vrot.lane.b32.xlu0 %v1131, 4
      %v1303 = vpop.permute.xlu0 %1302
      %1304 = vrot.lane.b32.xlu0 %v1141, 4
      %v1305 = vpop.permute.xlu0 %1304
      %1306 = vrot.lane.b32.xlu0 %v1155, 4
      %v1307 = vpop.permute.xlu0 %1306
      %1308 = vrot.lane.b32.xlu0 %v1165, 4
      %v1309 = vpop.permute.xlu0 %1308
      %1310 = vrot.lane.b32.xlu0 %v1179, 4
      %v1311 = vpop.permute.xlu0 %1310
      %1312 = vrot.lane.b32.xlu0 %v1189, 4
      %v1313 = vpop.permute.xlu0 %1312
      %1314 = vrot.lane.b32.xlu0 %v1203, 4
      %v1315 = vpop.permute.xlu0 %1314
      %1316 = vrot.lane.b32.xlu0 %v1213, 4
      %v1317 = vpop.permute.xlu0 %1316
      %1318 = vrot.lane.b32.xlu0 %v1227, 4
      %v1319 = vpop.permute.xlu0 %1318
      %1320 = vrot.lane.b32.xlu0 %v1237, 4
      %v1321 = vpop.permute.xlu0 %1320
      %1322 = vrot.lane.b32.xlu0 %v1251, 4
      %v1323 = vpop.permute.xlu0 %1322
      %1324 = vrot.lane.b32.xlu0 %v1261, 4
      %v1325 = vpop.permute.xlu0 %1324
      %vm1358 = vcmask 60448
      %1359 = vst.msk [vmem:[#allocation3] sm:$0xf] %vm1358, %v1263
      %1360 = vst.msk [vmem:[#allocation3 + $0x4] sm:$0xf] %vm1358, %v1265
      %1361 = vst.msk [vmem:[#allocation3 + $0x8] sm:$0xf] %vm1358, %v1267
      %1362 = vst.msk [vmem:[#allocation3 + $0xc] sm:$0xf] %vm1358, %v1269
      %1363 = vst.msk [vmem:[#allocation3 + $0x10] sm:$0xf] %vm1358, %v1271
      %1364 = vst.msk [vmem:[#allocation3 + $0x14] sm:$0xf] %vm1358, %v1273
      %1365 = vst.msk [vmem:[#allocation3 + $0x18] sm:$0xf] %vm1358, %v1275
      %1366 = vst.msk [vmem:[#allocation3 + $0x1c] sm:$0xf] %vm1358, %v1277
      %1367 = vst.msk [vmem:[#allocation3 + $0x20] sm:$0xf] %vm1358, %v1279
      %1368 = vst.msk [vmem:[#allocation3 + $0x24] sm:$0xf] %vm1358, %v1281
      %1369 = vst.msk [vmem:[#allocation3 + $0x28] sm:$0xf] %vm1358, %v1283
      %1370 = vst.msk [vmem:[#allocation3 + $0x2c] sm:$0xf] %vm1358, %v1285
      %1371 = vst.msk [vmem:[#allocation3 + $0x30] sm:$0xf] %vm1358, %v1287
      %1372 = vst.msk [vmem:[#allocation3 + $0x34] sm:$0xf] %vm1358, %v1289
      %1373 = vst.msk [vmem:[#allocation3 + $0x38] sm:$0xf] %vm1358, %v1291
      %1374 = vst.msk [vmem:[#allocation3 + $0x3c] sm:$0xf] %vm1358, %v1293
      %1375 = vst.msk [vmem:[#allocation3 + $0x40] sm:$0xf] %vm1358, %v1295
      %1376 = vst.msk [vmem:[#allocation3 + $0x44] sm:$0xf] %vm1358, %v1297
      %1377 = vst.msk [vmem:[#allocation3 + $0x48] sm:$0xf] %vm1358, %v1299
      %1378 = vst.msk [vmem:[#allocation3 + $0x4c] sm:$0xf] %vm1358, %v1301
      %1379 = vst.msk [vmem:[#allocation3 + $0x50] sm:$0xf] %vm1358, %v1303
      %1380 = vst.msk [vmem:[#allocation3 + $0x54] sm:$0xf] %vm1358, %v1305
      %1381 = vst.msk [vmem:[#allocation3 + $0x58] sm:$0xf] %vm1358, %v1307
      %1382 = vst.msk [vmem:[#allocation3 + $0x5c] sm:$0xf] %vm1358, %v1309
      %1383 = vst.msk [vmem:[#allocation3 + $0x60] sm:$0xf] %vm1358, %v1311
      %1384 = vst.msk [vmem:[#allocation3 + $0x64] sm:$0xf] %vm1358, %v1313
      %1385 = vst.msk [vmem:[#allocation3 + $0x68] sm:$0xf] %vm1358, %v1315
      %1386 = vst.msk [vmem:[#allocation3 + $0x6c] sm:$0xf] %vm1358, %v1317
      %1387 = vst.msk [vmem:[#allocation3 + $0x70] sm:$0xf] %vm1358, %v1319
      %1388 = vst.msk [vmem:[#allocation3 + $0x74] sm:$0xf] %vm1358, %v1321
      %1389 = vst.msk [vmem:[#allocation3 + $0x78] sm:$0xf] %vm1358, %v1323
      %1390 = vst.msk [vmem:[#allocation3 + $0x7c] sm:$0xf] %vm1358, %v1325
      %vm1439 = vcmask 1042432
      %vm1440 = vcmask 1046532
      %vm1441 = vmor %vm1439, %vm1440
      %v1442 = vrot.slane %v794, 5
      %v1443 = vrot.slane %v1442, 4
      %v1444 = vrot.slane %v795, 5
      %v1445 = vsel %vm1441, %v1443, %v1444
      %v1446 = vrot.slane %v1444, 4
      %v1447 = vrot.slane %v796, 5
      %v1448 = vsel %vm1441, %v1446, %v1447
      %v1449 = vrot.slane %v797, 5
      %v1450 = vrot.slane %v1449, 4
      %v1451 = vrot.slane %v798, 5
      %v1452 = vsel %vm1441, %v1450, %v1451
      %v1453 = vrot.slane %v1451, 4
      %v1454 = vrot.slane %v799, 5
      %v1455 = vsel %vm1441, %v1453, %v1454
      %v1456 = vrot.slane %v800, 5
      %v1457 = vrot.slane %v1456, 4
      %v1458 = vrot.slane %v801, 5
      %v1459 = vsel %vm1441, %v1457, %v1458
      %v1460 = vrot.slane %v1458, 4
      %v1461 = vrot.slane %v802, 5
      %v1462 = vsel %vm1441, %v1460, %v1461
      %v1463 = vrot.slane %v803, 5
      %v1464 = vrot.slane %v1463, 4
      %v1465 = vrot.slane %v804, 5
      %v1466 = vsel %vm1441, %v1464, %v1465
      %v1467 = vrot.slane %v1465, 4
      %v1468 = vrot.slane %v805, 5
      %v1469 = vsel %vm1441, %v1467, %v1468
      %v1470 = vrot.slane %v806, 5
      %v1471 = vrot.slane %v1470, 4
      %v1472 = vrot.slane %v807, 5
      %v1473 = vsel %vm1441, %v1471, %v1472
      %v1474 = vrot.slane %v1472, 4
      %v1475 = vrot.slane %v808, 5
      %v1476 = vsel %vm1441, %v1474, %v1475
      %v1477 = vrot.slane %v809, 5
      %v1478 = vrot.slane %v1477, 4
      %v1479 = vrot.slane %v810, 5
      %v1480 = vsel %vm1441, %v1478, %v1479
      %v1481 = vrot.slane %v1479, 4
      %v1482 = vrot.slane %v811, 5
      %v1483 = vsel %vm1441, %v1481, %v1482
      %v1484 = vrot.slane %v812, 5
      %v1485 = vrot.slane %v1484, 4
      %v1486 = vrot.slane %v813, 5
      %v1487 = vsel %vm1441, %v1485, %v1486
      %v1488 = vrot.slane %v1486, 4
      %v1489 = vrot.slane %v814, 5
      %v1490 = vsel %vm1441, %v1488, %v1489
      %v1491 = vrot.slane %v815, 5
      %v1492 = vrot.slane %v1491, 4
      %v1493 = vrot.slane %v816, 5
      %v1494 = vsel %vm1441, %v1492, %v1493
      %v1495 = vrot.slane %v1493, 4
      %v1496 = vrot.slane %v817, 5
      %v1497 = vsel %vm1441, %v1495, %v1496
      %v1498 = vrot.slane %v818, 5
      %v1499 = vrot.slane %v1498, 4
      %v1500 = vrot.slane %v819, 5
      %v1501 = vsel %vm1441, %v1499, %v1500
      %v1502 = vrot.slane %v1500, 4
      %v1503 = vrot.slane %v820, 5
      %v1504 = vsel %vm1441, %v1502, %v1503
      %v1505 = vrot.slane %v821, 5
      %v1506 = vrot.slane %v1505, 4
      %v1507 = vrot.slane %v822, 5
      %v1508 = vsel %vm1441, %v1506, %v1507
      %v1509 = vrot.slane %v1507, 4
      %v1510 = vrot.slane %v823, 5
      %v1511 = vsel %vm1441, %v1509, %v1510
      %v1512 = vrot.slane %v824, 5
      %v1513 = vrot.slane %v1512, 4
      %v1514 = vrot.slane %v825, 5
      %v1515 = vsel %vm1441, %v1513, %v1514
      %v1516 = vrot.slane %v1514, 4
      %v1517 = vrot.slane %v826, 5
      %v1518 = vsel %vm1441, %v1516, %v1517
      %v1519 = vrot.slane %v827, 5
      %v1520 = vrot.slane %v1519, 4
      %v1521 = vrot.slane %v828, 5
      %v1522 = vsel %vm1441, %v1520, %v1521
      %v1523 = vrot.slane %v1521, 4
      %v1524 = vrot.slane %v829, 5
      %v1525 = vsel %vm1441, %v1523, %v1524
      %v1526 = vrot.slane %v830, 5
      %v1527 = vrot.slane %v1526, 4
      %v1528 = vrot.slane %v831, 5
      %v1529 = vsel %vm1441, %v1527, %v1528
      %v1530 = vrot.slane %v1528, 4
      %v1531 = vrot.slane %v832, 5
      %v1532 = vsel %vm1441, %v1530, %v1531
      %v1533 = vrot.slane %v833, 5
      %v1534 = vrot.slane %v1533, 4
      %v1535 = vrot.slane %v834, 5
      %v1536 = vsel %vm1441, %v1534, %v1535
      %v1537 = vrot.slane %v1535, 4
      %v1538 = vrot.slane %v835, 5
      %v1539 = vsel %vm1441, %v1537, %v1538
      %v1540 = vrot.slane %v836, 5
      %v1541 = vrot.slane %v1540, 4
      %v1542 = vrot.slane %v837, 5
      %v1543 = vsel %vm1441, %v1541, %v1542
      %v1544 = vrot.slane %v1542, 4
      %v1545 = vrot.slane %v838, 5
      %v1546 = vsel %vm1441, %v1544, %v1545
      %v1547 = vrot.slane %v839, 5
      %v1548 = vrot.slane %v1547, 4
      %v1549 = vrot.slane %v840, 5
      %v1550 = vsel %vm1441, %v1548, %v1549
      %v1551 = vrot.slane %v1549, 4
      %v1552 = vrot.slane %v841, 5
      %v1553 = vsel %vm1441, %v1551, %v1552
      %1554 = vrot.lane.b32.xlu0 %v1445, 8
      %v1555 = vpop.permute.xlu0 %1554
      %1556 = vrot.lane.b32.xlu0 %v1448, 8
      %v1557 = vpop.permute.xlu0 %1556
      %1558 = vrot.lane.b32.xlu0 %v1452, 8
      %v1559 = vpop.permute.xlu0 %1558
      %1560 = vrot.lane.b32.xlu0 %v1455, 8
      %v1561 = vpop.permute.xlu0 %1560
      %1562 = vrot.lane.b32.xlu0 %v1459, 8
      %v1563 = vpop.permute.xlu0 %1562
      %1564 = vrot.lane.b32.xlu0 %v1462, 8
      %v1565 = vpop.permute.xlu0 %1564
      %1566 = vrot.lane.b32.xlu0 %v1466, 8
      %v1567 = vpop.permute.xlu0 %1566
      %1568 = vrot.lane.b32.xlu0 %v1469, 8
      %v1569 = vpop.permute.xlu0 %1568
      %1570 = vrot.lane.b32.xlu0 %v1473, 8
      %v1571 = vpop.permute.xlu0 %1570
      %1572 = vrot.lane.b32.xlu0 %v1476, 8
      %v1573 = vpop.permute.xlu0 %1572
      %1574 = vrot.lane.b32.xlu0 %v1480, 8
      %v1575 = vpop.permute.xlu0 %1574
      %1576 = vrot.lane.b32.xlu0 %v1483, 8
      %v1577 = vpop.permute.xlu0 %1576
      %1578 = vrot.lane.b32.xlu0 %v1487, 8
      %v1579 = vpop.permute.xlu0 %1578
      %1580 = vrot.lane.b32.xlu0 %v1490, 8
      %v1581 = vpop.permute.xlu0 %1580
      %1582 = vrot.lane.b32.xlu0 %v1494, 8
      %v1583 = vpop.permute.xlu0 %1582
      %1584 = vrot.lane.b32.xlu0 %v1497, 8
      %v1585 = vpop.permute.xlu0 %1584
      %1586 = vrot.lane.b32.xlu0 %v1501, 8
      %v1587 = vpop.permute.xlu0 %1586
      %1588 = vrot.lane.b32.xlu0 %v1504, 8
      %v1589 = vpop.permute.xlu0 %1588
      %1590 = vrot.lane.b32.xlu0 %v1508, 8
      %v1591 = vpop.permute.xlu0 %1590
      %1592 = vrot.lane.b32.xlu0 %v1511, 8
      %v1593 = vpop.permute.xlu0 %1592
      %1594 = vrot.lane.b32.xlu0 %v1515, 8
      %v1595 = vpop.permute.xlu0 %1594
      %1596 = vrot.lane.b32.xlu0 %v1518, 8
      %v1597 = vpop.permute.xlu0 %1596
      %1598 = vrot.lane.b32.xlu0 %v1522, 8
      %v1599 = vpop.permute.xlu0 %1598
      %1600 = vrot.lane.b32.xlu0 %v1525, 8
      %v1601 = vpop.permute.xlu0 %1600
      %1602 = vrot.lane.b32.xlu0 %v1529, 8
      %v1603 = vpop.permute.xlu0 %1602
      %1604 = vrot.lane.b32.xlu0 %v1532, 8
      %v1605 = vpop.permute.xlu0 %1604
      %1606 = vrot.lane.b32.xlu0 %v1536, 8
      %v1607 = vpop.permute.xlu0 %1606
      %1608 = vrot.lane.b32.xlu0 %v1539, 8
      %v1609 = vpop.permute.xlu0 %1608
      %1610 = vrot.lane.b32.xlu0 %v1543, 8
      %v1611 = vpop.permute.xlu0 %1610
      %1612 = vrot.lane.b32.xlu0 %v1546, 8
      %v1613 = vpop.permute.xlu0 %1612
      %1614 = vrot.lane.b32.xlu0 %v1550, 8
      %v1615 = vpop.permute.xlu0 %1614
      %1616 = vrot.lane.b32.xlu0 %v1553, 8
      %v1617 = vpop.permute.xlu0 %1616
      %vm1650 = vcmask 93248
      %1651 = vst.msk [vmem:[#allocation3] sm:$0xf] %vm1650, %v1555
      %1652 = vst.msk [vmem:[#allocation3 + $0x4] sm:$0xf] %vm1650, %v1557
      %1653 = vst.msk [vmem:[#allocation3 + $0x8] sm:$0xf] %vm1650, %v1559
      %1654 = vst.msk [vmem:[#allocation3 + $0xc] sm:$0xf] %vm1650, %v1561
      %1655 = vst.msk [vmem:[#allocation3 + $0x10] sm:$0xf] %vm1650, %v1563
      %1656 = vst.msk [vmem:[#allocation3 + $0x14] sm:$0xf] %vm1650, %v1565
      %1657 = vst.msk [vmem:[#allocation3 + $0x18] sm:$0xf] %vm1650, %v1567
      %1658 = vst.msk [vmem:[#allocation3 + $0x1c] sm:$0xf] %vm1650, %v1569
      %1659 = vst.msk [vmem:[#allocation3 + $0x20] sm:$0xf] %vm1650, %v1571
      %1660 = vst.msk [vmem:[#allocation3 + $0x24] sm:$0xf] %vm1650, %v1573
      %1661 = vst.msk [vmem:[#allocation3 + $0x28] sm:$0xf] %vm1650, %v1575
      %1662 = vst.msk [vmem:[#allocation3 + $0x2c] sm:$0xf] %vm1650, %v1577
      %1663 = vst.msk [vmem:[#allocation3 + $0x30] sm:$0xf] %vm1650, %v1579
      %1664 = vst.msk [vmem:[#allocation3 + $0x34] sm:$0xf] %vm1650, %v1581
      %1665 = vst.msk [vmem:[#allocation3 + $0x38] sm:$0xf] %vm1650, %v1583
      %1666 = vst.msk [vmem:[#allocation3 + $0x3c] sm:$0xf] %vm1650, %v1585
      %1667 = vst.msk [vmem:[#allocation3 + $0x40] sm:$0xf] %vm1650, %v1587
      %1668 = vst.msk [vmem:[#allocation3 + $0x44] sm:$0xf] %vm1650, %v1589
      %1669 = vst.msk [vmem:[#allocation3 + $0x48] sm:$0xf] %vm1650, %v1591
      %1670 = vst.msk [vmem:[#allocation3 + $0x4c] sm:$0xf] %vm1650, %v1593
      %1671 = vst.msk [vmem:[#allocation3 + $0x50] sm:$0xf] %vm1650, %v1595
      %1672 = vst.msk [vmem:[#allocation3 + $0x54] sm:$0xf] %vm1650, %v1597
      %1673 = vst.msk [vmem:[#allocation3 + $0x58] sm:$0xf] %vm1650, %v1599
      %1674 = vst.msk [vmem:[#allocation3 + $0x5c] sm:$0xf] %vm1650, %v1601
      %1675 = vst.msk [vmem:[#allocation3 + $0x60] sm:$0xf] %vm1650, %v1603
      %1676 = vst.msk [vmem:[#allocation3 + $0x64] sm:$0xf] %vm1650, %v1605
      %1677 = vst.msk [vmem:[#allocation3 + $0x68] sm:$0xf] %vm1650, %v1607
      %1678 = vst.msk [vmem:[#allocation3 + $0x6c] sm:$0xf] %vm1650, %v1609
      %1679 = vst.msk [vmem:[#allocation3 + $0x70] sm:$0xf] %vm1650, %v1611
      %1680 = vst.msk [vmem:[#allocation3 + $0x74] sm:$0xf] %vm1650, %v1613
      %1681 = vst.msk [vmem:[#allocation3 + $0x78] sm:$0xf] %vm1650, %v1615
      %1682 = vst.msk [vmem:[#allocation3 + $0x7c] sm:$0xf] %vm1650, %v1617
      %s1683 = sadd.s32 %s790, 1
      %s1684 = smul.u32 %s1683, 3
      %s1685 = smul.addr %s1684, 4
      %s1686 = scalar_lea.vmem [#allocation2], %s1685
      %v1687 = vld [vmem:[%s1686] sm:$0xf]
      %v1688 = vld [vmem:[%s1686 + $0x4] sm:$0xf]
      %v1689 = vld [vmem:[%s1686 + $0x8] sm:$0x1]
      %v1690 = vld [vmem:[%s1686 + $0xc] sm:$0xf]
      %v1691 = vld [vmem:[%s1686 + $0x10] sm:$0xf]
      %v1692 = vld [vmem:[%s1686 + $0x14] sm:$0x1]
      %v1693 = vld [vmem:[%s1686 + $0x18] sm:$0xf]
      %v1694 = vld [vmem:[%s1686 + $0x1c] sm:$0xf]
      %v1695 = vld [vmem:[%s1686 + $0x20] sm:$0x1]
      %v1696 = vld [vmem:[%s1686 + $0x24] sm:$0xf]
      %v1697 = vld [vmem:[%s1686 + $0x28] sm:$0xf]
      %v1698 = vld [vmem:[%s1686 + $0x2c] sm:$0x1]
      %v1699 = vld [vmem:[%s1686 + $0x30] sm:$0xf]
      %v1700 = vld [vmem:[%s1686 + $0x34] sm:$0xf]
      %v1701 = vld [vmem:[%s1686 + $0x38] sm:$0x1]
      %v1702 = vld [vmem:[%s1686 + $0x3c] sm:$0xf]
      %v1703 = vld [vmem:[%s1686 + $0x40] sm:$0xf]
      %v1704 = vld [vmem:[%s1686 + $0x44] sm:$0x1]
      %v1705 = vld [vmem:[%s1686 + $0x48] sm:$0xf]
      %v1706 = vld [vmem:[%s1686 + $0x4c] sm:$0xf]
      %v1707 = vld [vmem:[%s1686 + $0x50] sm:$0x1]
      %v1708 = vld [vmem:[%s1686 + $0x54] sm:$0xf]
      %v1709 = vld [vmem:[%s1686 + $0x58] sm:$0xf]
      %v1710 = vld [vmem:[%s1686 + $0x5c] sm:$0x1]
      %v1711 = vld [vmem:[%s1686 + $0x60] sm:$0xf]
      %v1712 = vld [vmem:[%s1686 + $0x64] sm:$0xf]
      %v1713 = vld [vmem:[%s1686 + $0x68] sm:$0x1]
      %v1714 = vld [vmem:[%s1686 + $0x6c] sm:$0xf]
      %v1715 = vld [vmem:[%s1686 + $0x70] sm:$0xf]
      %v1716 = vld [vmem:[%s1686 + $0x74] sm:$0x1]
      %v1717 = vld [vmem:[%s1686 + $0x78] sm:$0xf]
      %v1718 = vld [vmem:[%s1686 + $0x7c] sm:$0xf]
      %v1719 = vld [vmem:[%s1686 + $0x80] sm:$0x1]
      %v1720 = vld [vmem:[%s1686 + $0x84] sm:$0xf]
      %v1721 = vld [vmem:[%s1686 + $0x88] sm:$0xf]
      %v1722 = vld [vmem:[%s1686 + $0x8c] sm:$0x1]
      %v1723 = vld [vmem:[%s1686 + $0x90] sm:$0xf]
      %v1724 = vld [vmem:[%s1686 + $0x94] sm:$0xf]
      %v1725 = vld [vmem:[%s1686 + $0x98] sm:$0x1]
      %v1726 = vld [vmem:[%s1686 + $0x9c] sm:$0xf]
      %v1727 = vld [vmem:[%s1686 + $0xa0] sm:$0xf]
      %v1728 = vld [vmem:[%s1686 + $0xa4] sm:$0x1]
      %v1729 = vld [vmem:[%s1686 + $0xa8] sm:$0xf]
      %v1730 = vld [vmem:[%s1686 + $0xac] sm:$0xf]
      %v1731 = vld [vmem:[%s1686 + $0xb0] sm:$0x1]
      %v1732 = vld [vmem:[%s1686 + $0xb4] sm:$0xf]
      %v1733 = vld [vmem:[%s1686 + $0xb8] sm:$0xf]
      %v1734 = vld [vmem:[%s1686 + $0xbc] sm:$0x1]
      %1767 = vrot.lane.b32.xlu0 %v1687, 12
      %v1768 = vpop.permute.xlu0 %1767
      %1769 = vrot.lane.b32.xlu0 %v1688, 12
      %v1770 = vpop.permute.xlu0 %1769
      %1771 = vrot.lane.b32.xlu0 %v1690, 12
      %v1772 = vpop.permute.xlu0 %1771
      %1773 = vrot.lane.b32.xlu0 %v1691, 12
      %v1774 = vpop.permute.xlu0 %1773
      %1775 = vrot.lane.b32.xlu0 %v1693, 12
      %v1776 = vpop.permute.xlu0 %1775
      %1777 = vrot.lane.b32.xlu0 %v1694, 12
      %v1778 = vpop.permute.xlu0 %1777
      %1779 = vrot.lane.b32.xlu0 %v1696, 12
      %v1780 = vpop.permute.xlu0 %1779
      %1781 = vrot.lane.b32.xlu0 %v1697, 12
      %v1782 = vpop.permute.xlu0 %1781
      %1783 = vrot.lane.b32.xlu0 %v1699, 12
      %v1784 = vpop.permute.xlu0 %1783
      %1785 = vrot.lane.b32.xlu0 %v1700, 12
      %v1786 = vpop.permute.xlu0 %1785
      %1787 = vrot.lane.b32.xlu0 %v1702, 12
      %v1788 = vpop.permute.xlu0 %1787
      %1789 = vrot.lane.b32.xlu0 %v1703, 12
      %v1790 = vpop.permute.xlu0 %1789
      %1791 = vrot.lane.b32.xlu0 %v1705, 12
      %v1792 = vpop.permute.xlu0 %1791
      %1793 = vrot.lane.b32.xlu0 %v1706, 12
      %v1794 = vpop.permute.xlu0 %1793
      %1795 = vrot.lane.b32.xlu0 %v1708, 12
      %v1796 = vpop.permute.xlu0 %1795
      %1797 = vrot.lane.b32.xlu0 %v1709, 12
      %v1798 = vpop.permute.xlu0 %1797
      %1799 = vrot.lane.b32.xlu0 %v1711, 12
      %v1800 = vpop.permute.xlu0 %1799
      %1801 = vrot.lane.b32.xlu0 %v1712, 12
      %v1802 = vpop.permute.xlu0 %1801
      %1803 = vrot.lane.b32.xlu0 %v1714, 12
      %v1804 = vpop.permute.xlu0 %1803
      %1805 = vrot.lane.b32.xlu0 %v1715, 12
      %v1806 = vpop.permute.xlu0 %1805
      %1807 = vrot.lane.b32.xlu0 %v1717, 12
      %v1808 = vpop.permute.xlu0 %1807
      %1809 = vrot.lane.b32.xlu0 %v1718, 12
      %v1810 = vpop.permute.xlu0 %1809
      %1811 = vrot.lane.b32.xlu0 %v1720, 12
      %v1812 = vpop.permute.xlu0 %1811
      %1813 = vrot.lane.b32.xlu0 %v1721, 12
      %v1814 = vpop.permute.xlu0 %1813
      %1815 = vrot.lane.b32.xlu0 %v1723, 12
      %v1816 = vpop.permute.xlu0 %1815
      %1817 = vrot.lane.b32.xlu0 %v1724, 12
      %v1818 = vpop.permute.xlu0 %1817
      %1819 = vrot.lane.b32.xlu0 %v1726, 12
      %v1820 = vpop.permute.xlu0 %1819
      %1821 = vrot.lane.b32.xlu0 %v1727, 12
      %v1822 = vpop.permute.xlu0 %1821
      %1823 = vrot.lane.b32.xlu0 %v1729, 12
      %v1824 = vpop.permute.xlu0 %1823
      %1825 = vrot.lane.b32.xlu0 %v1730, 12
      %v1826 = vpop.permute.xlu0 %1825
      %1827 = vrot.lane.b32.xlu0 %v1732, 12
      %v1828 = vpop.permute.xlu0 %1827
      %1829 = vrot.lane.b32.xlu0 %v1733, 12
      %v1830 = vpop.permute.xlu0 %1829
      %vm1863 = vcmask 126048
      %1864 = vst.msk [vmem:[#allocation3] sm:$0xf] %vm1863, %v1768
      %1865 = vst.msk [vmem:[#allocation3 + $0x4] sm:$0xf] %vm1863, %v1770
      %1866 = vst.msk [vmem:[#allocation3 + $0x8] sm:$0xf] %vm1863, %v1772
      %1867 = vst.msk [vmem:[#allocation3 + $0xc] sm:$0xf] %vm1863, %v1774
      %1868 = vst.msk [vmem:[#allocation3 + $0x10] sm:$0xf] %vm1863, %v1776
      %1869 = vst.msk [vmem:[#allocation3 + $0x14] sm:$0xf] %vm1863, %v1778
      %1870 = vst.msk [vmem:[#allocation3 + $0x18] sm:$0xf] %vm1863, %v1780
      %1871 = vst.msk [vmem:[#allocation3 + $0x1c] sm:$0xf] %vm1863, %v1782
      %1872 = vst.msk [vmem:[#allocation3 + $0x20] sm:$0xf] %vm1863, %v1784
      %1873 = vst.msk [vmem:[#allocation3 + $0x24] sm:$0xf] %vm1863, %v1786
      %1874 = vst.msk [vmem:[#allocation3 + $0x28] sm:$0xf] %vm1863, %v1788
      %1875 = vst.msk [vmem:[#allocation3 + $0x2c] sm:$0xf] %vm1863, %v1790
      %1876 = vst.msk [vmem:[#allocation3 + $0x30] sm:$0xf] %vm1863, %v1792
      %1877 = vst.msk [vmem:[#allocation3 + $0x34] sm:$0xf] %vm1863, %v1794
      %1878 = vst.msk [vmem:[#allocation3 + $0x38] sm:$0xf] %vm1863, %v1796
      %1879 = vst.msk [vmem:[#allocation3 + $0x3c] sm:$0xf] %vm1863, %v1798
      %1880 = vst.msk [vmem:[#allocation3 + $0x40] sm:$0xf] %vm1863, %v1800
      %1881 = vst.msk [vmem:[#allocation3 + $0x44] sm:$0xf] %vm1863, %v1802
      %1882 = vst.msk [vmem:[#allocation3 + $0x48] sm:$0xf] %vm1863, %v1804
      %1883 = vst.msk [vmem:[#allocation3 + $0x4c] sm:$0xf] %vm1863, %v1806
      %1884 = vst.msk [vmem:[#allocation3 + $0x50] sm:$0xf] %vm1863, %v1808
      %1885 = vst.msk [vmem:[#allocation3 + $0x54] sm:$0xf] %vm1863, %v1810
      %1886 = vst.msk [vmem:[#allocation3 + $0x58] sm:$0xf] %vm1863, %v1812
      %1887 = vst.msk [vmem:[#allocation3 + $0x5c] sm:$0xf] %vm1863, %v1814
      %1888 = vst.msk [vmem:[#allocation3 + $0x60] sm:$0xf] %vm1863, %v1816
      %1889 = vst.msk [vmem:[#allocation3 + $0x64] sm:$0xf] %vm1863, %v1818
      %1890 = vst.msk [vmem:[#allocation3 + $0x68] sm:$0xf] %vm1863, %v1820
      %1891 = vst.msk [vmem:[#allocation3 + $0x6c] sm:$0xf] %vm1863, %v1822
      %1892 = vst.msk [vmem:[#allocation3 + $0x70] sm:$0xf] %vm1863, %v1824
      %1893 = vst.msk [vmem:[#allocation3 + $0x74] sm:$0xf] %vm1863, %v1826
      %1894 = vst.msk [vmem:[#allocation3 + $0x78] sm:$0xf] %vm1863, %v1828
      %1895 = vst.msk [vmem:[#allocation3 + $0x7c] sm:$0xf] %vm1863, %v1830
      %v1897 = vshrl.u32 %v1687, 16
      %v1899 = vrot.slane %v1897, 4
      %v1900 = vshll.u32 %v1687, 16
      %v1902 = vrot.slane %v1900, 5
      %v1903 = vor.u32 %v1899, %v1902
      %v1904 = vrot.slane %v1903, 4
      %v1906 = vshll.u32 %v1688, 16
      %v1908 = vrot.slane %v1906, 5
      %v1909 = vsel %vm877, %v1904, %v1908
      %v1910 = vshrl.u32 %v1688, 16
      %v1912 = vrot.slane %v1910, 4
      %v1913 = vor.u32 %v1912, %v1908
      %v1914 = vrot.slane %v1913, 4
      %v1916 = vshll.u32 %v1689, 16
      %v1918 = vrot.slane %v1916, 5
      %v1919 = vsel %vm877, %v1914, %v1918
      %v1921 = vshrl.u32 %v1690, 16
      %v1923 = vrot.slane %v1921, 4
      %v1924 = vshll.u32 %v1690, 16
      %v1926 = vrot.slane %v1924, 5
      %v1927 = vor.u32 %v1923, %v1926
      %v1928 = vrot.slane %v1927, 4
      %v1930 = vshll.u32 %v1691, 16
      %v1932 = vrot.slane %v1930, 5
      %v1933 = vsel %vm877, %v1928, %v1932
      %v1934 = vshrl.u32 %v1691, 16
      %v1936 = vrot.slane %v1934, 4
      %v1937 = vor.u32 %v1936, %v1932
      %v1938 = vrot.slane %v1937, 4
      %v1940 = vshll.u32 %v1692, 16
      %v1942 = vrot.slane %v1940, 5
      %v1943 = vsel %vm877, %v1938, %v1942
      %v1945 = vshrl.u32 %v1693, 16
      %v1947 = vrot.slane %v1945, 4
      %v1948 = vshll.u32 %v1693, 16
      %v1950 = vrot.slane %v1948, 5
      %v1951 = vor.u32 %v1947, %v1950
      %v1952 = vrot.slane %v1951, 4
      %v1954 = vshll.u32 %v1694, 16
      %v1956 = vrot.slane %v1954, 5
      %v1957 = vsel %vm877, %v1952, %v1956
      %v1958 = vshrl.u32 %v1694, 16
      %v1960 = vrot.slane %v1958, 4
      %v1961 = vor.u32 %v1960, %v1956
      %v1962 = vrot.slane %v1961, 4
      %v1964 = vshll.u32 %v1695, 16
      %v1966 = vrot.slane %v1964, 5
      %v1967 = vsel %vm877, %v1962, %v1966
      %v1969 = vshrl.u32 %v1696, 16
      %v1971 = vrot.slane %v1969, 4
      %v1972 = vshll.u32 %v1696, 16
      %v1974 = vrot.slane %v1972, 5
      %v1975 = vor.u32 %v1971, %v1974
      %v1976 = vrot.slane %v1975, 4
      %v1978 = vshll.u32 %v1697, 16
      %v1980 = vrot.slane %v1978, 5
      %v1981 = vsel %vm877, %v1976, %v1980
      %v1982 = vshrl.u32 %v1697, 16
      %v1984 = vrot.slane %v1982, 4
      %v1985 = vor.u32 %v1984, %v1980
      %v1986 = vrot.slane %v1985, 4
      %v1988 = vshll.u32 %v1698, 16
      %v1990 = vrot.slane %v1988, 5
      %v1991 = vsel %vm877, %v1986, %v1990
      %v1993 = vshrl.u32 %v1699, 16
      %v1995 = vrot.slane %v1993, 4
      %v1996 = vshll.u32 %v1699, 16
      %v1998 = vrot.slane %v1996, 5
      %v1999 = vor.u32 %v1995, %v1998
      %v2000 = vrot.slane %v1999, 4
      %v2002 = vshll.u32 %v1700, 16
      %v2004 = vrot.slane %v2002, 5
      %v2005 = vsel %vm877, %v2000, %v2004
      %v2006 = vshrl.u32 %v1700, 16
      %v2008 = vrot.slane %v2006, 4
      %v2009 = vor.u32 %v2008, %v2004
      %v2010 = vrot.slane %v2009, 4
      %v2012 = vshll.u32 %v1701, 16
      %v2014 = vrot.slane %v2012, 5
      %v2015 = vsel %vm877, %v2010, %v2014
      %v2017 = vshrl.u32 %v1702, 16
      %v2019 = vrot.slane %v2017, 4
      %v2020 = vshll.u32 %v1702, 16
      %v2022 = vrot.slane %v2020, 5
      %v2023 = vor.u32 %v2019, %v2022
      %v2024 = vrot.slane %v2023, 4
      %v2026 = vshll.u32 %v1703, 16
      %v2028 = vrot.slane %v2026, 5
      %v2029 = vsel %vm877, %v2024, %v2028
      %v2030 = vshrl.u32 %v1703, 16
      %v2032 = vrot.slane %v2030, 4
      %v2033 = vor.u32 %v2032, %v2028
      %v2034 = vrot.slane %v2033, 4
      %v2036 = vshll.u32 %v1704, 16
      %v2038 = vrot.slane %v2036, 5
      %v2039 = vsel %vm877, %v2034, %v2038
      %v2041 = vshrl.u32 %v1705, 16
      %v2043 = vrot.slane %v2041, 4
      %v2044 = vshll.u32 %v1705, 16
      %v2046 = vrot.slane %v2044, 5
      %v2047 = vor.u32 %v2043, %v2046
      %v2048 = vrot.slane %v2047, 4
      %v2050 = vshll.u32 %v1706, 16
      %v2052 = vrot.slane %v2050, 5
      %v2053 = vsel %vm877, %v2048, %v2052
      %v2054 = vshrl.u32 %v1706, 16
      %v2056 = vrot.slane %v2054, 4
      %v2057 = vor.u32 %v2056, %v2052
      %v2058 = vrot.slane %v2057, 4
      %v2060 = vshll.u32 %v1707, 16
      %v2062 = vrot.slane %v2060, 5
      %v2063 = vsel %vm877, %v2058, %v2062
      %v2065 = vshrl.u32 %v1708, 16
      %v2067 = vrot.slane %v2065, 4
      %v2068 = vshll.u32 %v1708, 16
      %v2070 = vrot.slane %v2068, 5
      %v2071 = vor.u32 %v2067, %v2070
      %v2072 = vrot.slane %v2071, 4
      %v2074 = vshll.u32 %v1709, 16
      %v2076 = vrot.slane %v2074, 5
      %v2077 = vsel %vm877, %v2072, %v2076
      %v2078 = vshrl.u32 %v1709, 16
      %v2080 = vrot.slane %v2078, 4
      %v2081 = vor.u32 %v2080, %v2076
      %v2082 = vrot.slane %v2081, 4
      %v2084 = vshll.u32 %v1710, 16
      %v2086 = vrot.slane %v2084, 5
      %v2087 = vsel %vm877, %v2082, %v2086
      %v2089 = vshrl.u32 %v1711, 16
      %v2091 = vrot.slane %v2089, 4
      %v2092 = vshll.u32 %v1711, 16
      %v2094 = vrot.slane %v2092, 5
      %v2095 = vor.u32 %v2091, %v2094
      %v2096 = vrot.slane %v2095, 4
      %v2098 = vshll.u32 %v1712, 16
      %v2100 = vrot.slane %v2098, 5
      %v2101 = vsel %vm877, %v2096, %v2100
      %v2102 = vshrl.u32 %v1712, 16
      %v2104 = vrot.slane %v2102, 4
      %v2105 = vor.u32 %v2104, %v2100
      %v2106 = vrot.slane %v2105, 4
      %v2108 = vshll.u32 %v1713, 16
      %v2110 = vrot.slane %v2108, 5
      %v2111 = vsel %vm877, %v2106, %v2110
      %v2113 = vshrl.u32 %v1714, 16
      %v2115 = vrot.slane %v2113, 4
      %v2116 = vshll.u32 %v1714, 16
      %v2118 = vrot.slane %v2116, 5
      %v2119 = vor.u32 %v2115, %v2118
      %v2120 = vrot.slane %v2119, 4
      %v2122 = vshll.u32 %v1715, 16
      %v2124 = vrot.slane %v2122, 5
      %v2125 = vsel %vm877, %v2120, %v2124
      %v2126 = vshrl.u32 %v1715, 16
      %v2128 = vrot.slane %v2126, 4
      %v2129 = vor.u32 %v2128, %v2124
      %v2130 = vrot.slane %v2129, 4
      %v2132 = vshll.u32 %v1716, 16
      %v2134 = vrot.slane %v2132, 5
      %v2135 = vsel %vm877, %v2130, %v2134
      %v2137 = vshrl.u32 %v1717, 16
      %v2139 = vrot.slane %v2137, 4
      %v2140 = vshll.u32 %v1717, 16
      %v2142 = vrot.slane %v2140, 5
      %v2143 = vor.u32 %v2139, %v2142
      %v2144 = vrot.slane %v2143, 4
      %v2146 = vshll.u32 %v1718, 16
      %v2148 = vrot.slane %v2146, 5
      %v2149 = vsel %vm877, %v2144, %v2148
      %v2150 = vshrl.u32 %v1718, 16
      %v2152 = vrot.slane %v2150, 4
      %v2153 = vor.u32 %v2152, %v2148
      %v2154 = vrot.slane %v2153, 4
      %v2156 = vshll.u32 %v1719, 16
      %v2158 = vrot.slane %v2156, 5
      %v2159 = vsel %vm877, %v2154, %v2158
      %v2161 = vshrl.u32 %v1720, 16
      %v2163 = vrot.slane %v2161, 4
      %v2164 = vshll.u32 %v1720, 16
      %v2166 = vrot.slane %v2164, 5
      %v2167 = vor.u32 %v2163, %v2166
      %v2168 = vrot.slane %v2167, 4
      %v2170 = vshll.u32 %v1721, 16
      %v2172 = vrot.slane %v2170, 5
      %v2173 = vsel %vm877, %v2168, %v2172
      %v2174 = vshrl.u32 %v1721, 16
      %v2176 = vrot.slane %v2174, 4
      %v2177 = vor.u32 %v2176, %v2172
      %v2178 = vrot.slane %v2177, 4
      %v2180 = vshll.u32 %v1722, 16
      %v2182 = vrot.slane %v2180, 5
      %v2183 = vsel %vm877, %v2178, %v2182
      %v2185 = vshrl.u32 %v1723, 16
      %v2187 = vrot.slane %v2185, 4
      %v2188 = vshll.u32 %v1723, 16
      %v2190 = vrot.slane %v2188, 5
      %v2191 = vor.u32 %v2187, %v2190
      %v2192 = vrot.slane %v2191, 4
      %v2194 = vshll.u32 %v1724, 16
      %v2196 = vrot.slane %v2194, 5
      %v2197 = vsel %vm877, %v2192, %v2196
      %v2198 = vshrl.u32 %v1724, 16
      %v2200 = vrot.slane %v2198, 4
      %v2201 = vor.u32 %v2200, %v2196
      %v2202 = vrot.slane %v2201, 4
      %v2204 = vshll.u32 %v1725, 16
      %v2206 = vrot.slane %v2204, 5
      %v2207 = vsel %vm877, %v2202, %v2206
      %v2209 = vshrl.u32 %v1726, 16
      %v2211 = vrot.slane %v2209, 4
      %v2212 = vshll.u32 %v1726, 16
      %v2214 = vrot.slane %v2212, 5
      %v2215 = vor.u32 %v2211, %v2214
      %v2216 = vrot.slane %v2215, 4
      %v2218 = vshll.u32 %v1727, 16
      %v2220 = vrot.slane %v2218, 5
      %v2221 = vsel %vm877, %v2216, %v2220
      %v2222 = vshrl.u32 %v1727, 16
      %v2224 = vrot.slane %v2222, 4
      %v2225 = vor.u32 %v2224, %v2220
      %v2226 = vrot.slane %v2225, 4
      %v2228 = vshll.u32 %v1728, 16
      %v2230 = vrot.slane %v2228, 5
      %v2231 = vsel %vm877, %v2226, %v2230
      %v2233 = vshrl.u32 %v1729, 16
      %v2235 = vrot.slane %v2233, 4
      %v2236 = vshll.u32 %v1729, 16
      %v2238 = vrot.slane %v2236, 5
      %v2239 = vor.u32 %v2235, %v2238
      %v2240 = vrot.slane %v2239, 4
      %v2242 = vshll.u32 %v1730, 16
      %v2244 = vrot.slane %v2242, 5
      %v2245 = vsel %vm877, %v2240, %v2244
      %v2246 = vshrl.u32 %v1730, 16
      %v2248 = vrot.slane %v2246, 4
      %v2249 = vor.u32 %v2248, %v2244
      %v2250 = vrot.slane %v2249, 4
      %v2252 = vshll.u32 %v1731, 16
      %v2254 = vrot.slane %v2252, 5
      %v2255 = vsel %vm877, %v2250, %v2254
      %v2257 = vshrl.u32 %v1732, 16
      %v2259 = vrot.slane %v2257, 4
      %v2260 = vshll.u32 %v1732, 16
      %v2262 = vrot.slane %v2260, 5
      %v2263 = vor.u32 %v2259, %v2262
      %v2264 = vrot.slane %v2263, 4
      %v2266 = vshll.u32 %v1733, 16
      %v2268 = vrot.slane %v2266, 5
      %v2269 = vsel %vm877, %v2264, %v2268
      %v2270 = vshrl.u32 %v1733, 16
      %v2272 = vrot.slane %v2270, 4
      %v2273 = vor.u32 %v2272, %v2268
      %v2274 = vrot.slane %v2273, 4
      %v2276 = vshll.u32 %v1734, 16
      %v2278 = vrot.slane %v2276, 5
      %v2279 = vsel %vm877, %v2274, %v2278
      %2280 = vrot.lane.b32.xlu0 %v1909, 16
      %v2281 = vpop.permute.xlu0 %2280
      %2282 = vrot.lane.b32.xlu0 %v1919, 16
      %v2283 = vpop.permute.xlu0 %2282
      %2284 = vrot.lane.b32.xlu0 %v1933, 16
      %v2285 = vpop.permute.xlu0 %2284
      %2286 = vrot.lane.b32.xlu0 %v1943, 16
      %v2287 = vpop.permute.xlu0 %2286
      %2288 = vrot.lane.b32.xlu0 %v1957, 16
      %v2289 = vpop.permute.xlu0 %2288
      %2290 = vrot.lane.b32.xlu0 %v1967, 16
      %v2291 = vpop.permute.xlu0 %2290
      %2292 = vrot.lane.b32.xlu0 %v1981, 16
      %v2293 = vpop.permute.xlu0 %2292
      %2294 = vrot.lane.b32.xlu0 %v1991, 16
      %v2295 = vpop.permute.xlu0 %2294
      %2296 = vrot.lane.b32.xlu0 %v2005, 16
      %v2297 = vpop.permute.xlu0 %2296
      %2298 = vrot.lane.b32.xlu0 %v2015, 16
      %v2299 = vpop.permute.xlu0 %2298
      %2300 = vrot.lane.b32.xlu0 %v2029, 16
      %v2301 = vpop.permute.xlu0 %2300
      %2302 = vrot.lane.b32.xlu0 %v2039, 16
      %v2303 = vpop.permute.xlu0 %2302
      %2304 = vrot.lane.b32.xlu0 %v2053, 16
      %v2305 = vpop.permute.xlu0 %2304
      %2306 = vrot.lane.b32.xlu0 %v2063, 16
      %v2307 = vpop.permute.xlu0 %2306
      %2308 = vrot.lane.b32.xlu0 %v2077, 16
      %v2309 = vpop.permute.xlu0 %2308
      %2310 = vrot.lane.b32.xlu0 %v2087, 16
      %v2311 = vpop.permute.xlu0 %2310
      %2312 = vrot.lane.b32.xlu0 %v2101, 16
      %v2313 = vpop.permute.xlu0 %2312
      %2314 = vrot.lane.b32.xlu0 %v2111, 16
      %v2315 = vpop.permute.xlu0 %2314
      %2316 = vrot.lane.b32.xlu0 %v2125, 16
      %v2317 = vpop.permute.xlu0 %2316
      %2318 = vrot.lane.b32.xlu0 %v2135, 16
      %v2319 = vpop.permute.xlu0 %2318
      %2320 = vrot.lane.b32.xlu0 %v2149, 16
      %v2321 = vpop.permute.xlu0 %2320
      %2322 = vrot.lane.b32.xlu0 %v2159, 16
      %v2323 = vpop.permute.xlu0 %2322
      %2324 = vrot.lane.b32.xlu0 %v2173, 16
      %v2325 = vpop.permute.xlu0 %2324
      %2326 = vrot.lane.b32.xlu0 %v2183, 16
      %v2327 = vpop.permute.xlu0 %2326
      %2328 = vrot.lane.b32.xlu0 %v2197, 16
      %v2329 = vpop.permute.xlu0 %2328
      %2330 = vrot.lane.b32.xlu0 %v2207, 16
      %v2331 = vpop.permute.xlu0 %2330
      %2332 = vrot.lane.b32.xlu0 %v2221, 16
      %v2333 = vpop.permute.xlu0 %2332
      %2334 = vrot.lane.b32.xlu0 %v2231, 16
      %v2335 = vpop.permute.xlu0 %2334
      %2336 = vrot.lane.b32.xlu0 %v2245, 16
      %v2337 = vpop.permute.xlu0 %2336
      %2338 = vrot.lane.b32.xlu0 %v2255, 16
      %v2339 = vpop.permute.xlu0 %2338
      %2340 = vrot.lane.b32.xlu0 %v2269, 16
      %v2341 = vpop.permute.xlu0 %2340
      %2342 = vrot.lane.b32.xlu0 %v2279, 16
      %v2343 = vpop.permute.xlu0 %2342
      %vm2376 = vcmask 158848
      %2377 = vst.msk [vmem:[#allocation3] sm:$0xf] %vm2376, %v2281
      %2378 = vst.msk [vmem:[#allocation3 + $0x4] sm:$0xf] %vm2376, %v2283
      %2379 = vst.msk [vmem:[#allocation3 + $0x8] sm:$0xf] %vm2376, %v2285
      %2380 = vst.msk [vmem:[#allocation3 + $0xc] sm:$0xf] %vm2376, %v2287
      %2381 = vst.msk [vmem:[#allocation3 + $0x10] sm:$0xf] %vm2376, %v2289
      %2382 = vst.msk [vmem:[#allocation3 + $0x14] sm:$0xf] %vm2376, %v2291
      %2383 = vst.msk [vmem:[#allocation3 + $0x18] sm:$0xf] %vm2376, %v2293
      %2384 = vst.msk [vmem:[#allocation3 + $0x1c] sm:$0xf] %vm2376, %v2295
      %2385 = vst.msk [vmem:[#allocation3 + $0x20] sm:$0xf] %vm2376, %v2297
      %2386 = vst.msk [vmem:[#allocation3 + $0x24] sm:$0xf] %vm2376, %v2299
      %2387 = vst.msk [vmem:[#allocation3 + $0x28] sm:$0xf] %vm2376, %v2301
      %2388 = vst.msk [vmem:[#allocation3 + $0x2c] sm:$0xf] %vm2376, %v2303
      %2389 = vst.msk [vmem:[#allocation3 + $0x30] sm:$0xf] %vm2376, %v2305
      %2390 = vst.msk [vmem:[#allocation3 + $0x34] sm:$0xf] %vm2376, %v2307
      %2391 = vst.msk [vmem:[#allocation3 + $0x38] sm:$0xf] %vm2376, %v2309
      %2392 = vst.msk [vmem:[#allocation3 + $0x3c] sm:$0xf] %vm2376, %v2311
      %2393 = vst.msk [vmem:[#allocation3 + $0x40] sm:$0xf] %vm2376, %v2313
      %2394 = vst.msk [vmem:[#allocation3 + $0x44] sm:$0xf] %vm2376, %v2315
      %2395 = vst.msk [vmem:[#allocation3 + $0x48] sm:$0xf] %vm2376, %v2317
      %2396 = vst.msk [vmem:[#allocation3 + $0x4c] sm:$0xf] %vm2376, %v2319
      %2397 = vst.msk [vmem:[#allocation3 + $0x50] sm:$0xf] %vm2376, %v2321
      %2398 = vst.msk [vmem:[#allocation3 + $0x54] sm:$0xf] %vm2376, %v2323
      %2399 = vst.msk [vmem:[#allocation3 + $0x58] sm:$0xf] %vm2376, %v2325
      %2400 = vst.msk [vmem:[#allocation3 + $0x5c] sm:$0xf] %vm2376, %v2327
      %2401 = vst.msk [vmem:[#allocation3 + $0x60] sm:$0xf] %vm2376, %v2329
      %2402 = vst.msk [vmem:[#allocation3 + $0x64] sm:$0xf] %vm2376, %v2331
      %2403 = vst.msk [vmem:[#allocation3 + $0x68] sm:$0xf] %vm2376, %v2333
      %2404 = vst.msk [vmem:[#allocation3 + $0x6c] sm:$0xf] %vm2376, %v2335
      %2405 = vst.msk [vmem:[#allocation3 + $0x70] sm:$0xf] %vm2376, %v2337
      %2406 = vst.msk [vmem:[#allocation3 + $0x74] sm:$0xf] %vm2376, %v2339
      %2407 = vst.msk [vmem:[#allocation3 + $0x78] sm:$0xf] %vm2376, %v2341
      %2408 = vst.msk [vmem:[#allocation3 + $0x7c] sm:$0xf] %vm2376, %v2343
      %v2425 = vrot.slane %v1687, 5
      %v2426 = vrot.slane %v2425, 4
      %v2427 = vrot.slane %v1688, 5
      %v2428 = vsel %vm1441, %v2426, %v2427
      %v2429 = vrot.slane %v2427, 4
      %v2430 = vrot.slane %v1689, 5
      %v2431 = vsel %vm1441, %v2429, %v2430
      %v2432 = vrot.slane %v1690, 5
      %v2433 = vrot.slane %v2432, 4
      %v2434 = vrot.slane %v1691, 5
      %v2435 = vsel %vm1441, %v2433, %v2434
      %v2436 = vrot.slane %v2434, 4
      %v2437 = vrot.slane %v1692, 5
      %v2438 = vsel %vm1441, %v2436, %v2437
      %v2439 = vrot.slane %v1693, 5
      %v2440 = vrot.slane %v2439, 4
      %v2441 = vrot.slane %v1694, 5
      %v2442 = vsel %vm1441, %v2440, %v2441
      %v2443 = vrot.slane %v2441, 4
      %v2444 = vrot.slane %v1695, 5
      %v2445 = vsel %vm1441, %v2443, %v2444
      %v2446 = vrot.slane %v1696, 5
      %v2447 = vrot.slane %v2446, 4
      %v2448 = vrot.slane %v1697, 5
      %v2449 = vsel %vm1441, %v2447, %v2448
      %v2450 = vrot.slane %v2448, 4
      %v2451 = vrot.slane %v1698, 5
      %v2452 = vsel %vm1441, %v2450, %v2451
      %v2453 = vrot.slane %v1699, 5
      %v2454 = vrot.slane %v2453, 4
      %v2455 = vrot.slane %v1700, 5
      %v2456 = vsel %vm1441, %v2454, %v2455
      %v2457 = vrot.slane %v2455, 4
      %v2458 = vrot.slane %v1701, 5
      %v2459 = vsel %vm1441, %v2457, %v2458
      %v2460 = vrot.slane %v1702, 5
      %v2461 = vrot.slane %v2460, 4
      %v2462 = vrot.slane %v1703, 5
      %v2463 = vsel %vm1441, %v2461, %v2462
      %v2464 = vrot.slane %v2462, 4
      %v2465 = vrot.slane %v1704, 5
      %v2466 = vsel %vm1441, %v2464, %v2465
      %v2467 = vrot.slane %v1705, 5
      %v2468 = vrot.slane %v2467, 4
      %v2469 = vrot.slane %v1706, 5
      %v2470 = vsel %vm1441, %v2468, %v2469
      %v2471 = vrot.slane %v2469, 4
      %v2472 = vrot.slane %v1707, 5
      %v2473 = vsel %vm1441, %v2471, %v2472
      %v2474 = vrot.slane %v1708, 5
      %v2475 = vrot.slane %v2474, 4
      %v2476 = vrot.slane %v1709, 5
      %v2477 = vsel %vm1441, %v2475, %v2476
      %v2478 = vrot.slane %v2476, 4
      %v2479 = vrot.slane %v1710, 5
      %v2480 = vsel %vm1441, %v2478, %v2479
      %v2481 = vrot.slane %v1711, 5
      %v2482 = vrot.slane %v2481, 4
      %v2483 = vrot.slane %v1712, 5
      %v2484 = vsel %vm1441, %v2482, %v2483
      %v2485 = vrot.slane %v2483, 4
      %v2486 = vrot.slane %v1713, 5
      %v2487 = vsel %vm1441, %v2485, %v2486
      %v2488 = vrot.slane %v1714, 5
      %v2489 = vrot.slane %v2488, 4
      %v2490 = vrot.slane %v1715, 5
      %v2491 = vsel %vm1441, %v2489, %v2490
      %v2492 = vrot.slane %v2490, 4
      %v2493 = vrot.slane %v1716, 5
      %v2494 = vsel %vm1441, %v2492, %v2493
      %v2495 = vrot.slane %v1717, 5
      %v2496 = vrot.slane %v2495, 4
      %v2497 = vrot.slane %v1718, 5
      %v2498 = vsel %vm1441, %v2496, %v2497
      %v2499 = vrot.slane %v2497, 4
      %v2500 = vrot.slane %v1719, 5
      %v2501 = vsel %vm1441, %v2499, %v2500
      %v2502 = vrot.slane %v1720, 5
      %v2503 = vrot.slane %v2502, 4
      %v2504 = vrot.slane %v1721, 5
      %v2505 = vsel %vm1441, %v2503, %v2504
      %v2506 = vrot.slane %v2504, 4
      %v2507 = vrot.slane %v1722, 5
      %v2508 = vsel %vm1441, %v2506, %v2507
      %v2509 = vrot.slane %v1723, 5
      %v2510 = vrot.slane %v2509, 4
      %v2511 = vrot.slane %v1724, 5
      %v2512 = vsel %vm1441, %v2510, %v2511
      %v2513 = vrot.slane %v2511, 4
      %v2514 = vrot.slane %v1725, 5
      %v2515 = vsel %vm1441, %v2513, %v2514
      %v2516 = vrot.slane %v1726, 5
      %v2517 = vrot.slane %v2516, 4
      %v2518 = vrot.slane %v1727, 5
      %v2519 = vsel %vm1441, %v2517, %v2518
      %v2520 = vrot.slane %v2518, 4
      %v2521 = vrot.slane %v1728, 5
      %v2522 = vsel %vm1441, %v2520, %v2521
      %v2523 = vrot.slane %v1729, 5
      %v2524 = vrot.slane %v2523, 4
      %v2525 = vrot.slane %v1730, 5
      %v2526 = vsel %vm1441, %v2524, %v2525
      %v2527 = vrot.slane %v2525, 4
      %v2528 = vrot.slane %v1731, 5
      %v2529 = vsel %vm1441, %v2527, %v2528
      %v2530 = vrot.slane %v1732, 5
      %v2531 = vrot.slane %v2530, 4
      %v2532 = vrot.slane %v1733, 5
      %v2533 = vsel %vm1441, %v2531, %v2532
      %v2534 = vrot.slane %v2532, 4
      %v2535 = vrot.slane %v1734, 5
      %v2536 = vsel %vm1441, %v2534, %v2535
      %2537 = vrot.lane.b32.xlu0 %v2428, 20
      %v2538 = vpop.permute.xlu0 %2537
      %2539 = vrot.lane.b32.xlu0 %v2431, 20
      %v2540 = vpop.permute.xlu0 %2539
      %2541 = vrot.lane.b32.xlu0 %v2435, 20
      %v2542 = vpop.permute.xlu0 %2541
      %2543 = vrot.lane.b32.xlu0 %v2438, 20
      %v2544 = vpop.permute.xlu0 %2543
      %2545 = vrot.lane.b32.xlu0 %v2442, 20
      %v2546 = vpop.permute.xlu0 %2545
      %2547 = vrot.lane.b32.xlu0 %v2445, 20
      %v2548 = vpop.permute.xlu0 %2547
      %2549 = vrot.lane.b32.xlu0 %v2449, 20
      %v2550 = vpop.permute.xlu0 %2549
      %2551 = vrot.lane.b32.xlu0 %v2452, 20
      %v2552 = vpop.permute.xlu0 %2551
      %2553 = vrot.lane.b32.xlu0 %v2456, 20
      %v2554 = vpop.permute.xlu0 %2553
      %2555 = vrot.lane.b32.xlu0 %v2459, 20
      %v2556 = vpop.permute.xlu0 %2555
      %2557 = vrot.lane.b32.xlu0 %v2463, 20
      %v2558 = vpop.permute.xlu0 %2557
      %2559 = vrot.lane.b32.xlu0 %v2466, 20
      %v2560 = vpop.permute.xlu0 %2559
      %2561 = vrot.lane.b32.xlu0 %v2470, 20
      %v2562 = vpop.permute.xlu0 %2561
      %2563 = vrot.lane.b32.xlu0 %v2473, 20
      %v2564 = vpop.permute.xlu0 %2563
      %2565 = vrot.lane.b32.xlu0 %v2477, 20
      %v2566 = vpop.permute.xlu0 %2565
      %2567 = vrot.lane.b32.xlu0 %v2480, 20
      %v2568 = vpop.permute.xlu0 %2567
      %2569 = vrot.lane.b32.xlu0 %v2484, 20
      %v2570 = vpop.permute.xlu0 %2569
      %2571 = vrot.lane.b32.xlu0 %v2487, 20
      %v2572 = vpop.permute.xlu0 %2571
      %2573 = vrot.lane.b32.xlu0 %v2491, 20
      %v2574 = vpop.permute.xlu0 %2573
      %2575 = vrot.lane.b32.xlu0 %v2494, 20
      %v2576 = vpop.permute.xlu0 %2575
      %2577 = vrot.lane.b32.xlu0 %v2498, 20
      %v2578 = vpop.permute.xlu0 %2577
      %2579 = vrot.lane.b32.xlu0 %v2501, 20
      %v2580 = vpop.permute.xlu0 %2579
      %2581 = vrot.lane.b32.xlu0 %v2505, 20
      %v2582 = vpop.permute.xlu0 %2581
      %2583 = vrot.lane.b32.xlu0 %v2508, 20
      %v2584 = vpop.permute.xlu0 %2583
      %2585 = vrot.lane.b32.xlu0 %v2512, 20
      %v2586 = vpop.permute.xlu0 %2585
      %2587 = vrot.lane.b32.xlu0 %v2515, 20
      %v2588 = vpop.permute.xlu0 %2587
      %2589 = vrot.lane.b32.xlu0 %v2519, 20
      %v2590 = vpop.permute.xlu0 %2589
      %2591 = vrot.lane.b32.xlu0 %v2522, 20
      %v2592 = vpop.permute.xlu0 %2591
      %2593 = vrot.lane.b32.xlu0 %v2526, 20
      %v2594 = vpop.permute.xlu0 %2593
      %2595 = vrot.lane.b32.xlu0 %v2529, 20
      %v2596 = vpop.permute.xlu0 %2595
      %2597 = vrot.lane.b32.xlu0 %v2533, 20
      %v2598 = vpop.permute.xlu0 %2597
      %2599 = vrot.lane.b32.xlu0 %v2536, 20
      %v2600 = vpop.permute.xlu0 %2599
      %vm2633 = vcmask 191648
      %2634 = vst.msk [vmem:[#allocation3] sm:$0xf] %vm2633, %v2538
      %2635 = vst.msk [vmem:[#allocation3 + $0x4] sm:$0xf] %vm2633, %v2540
      %2636 = vst.msk [vmem:[#allocation3 + $0x8] sm:$0xf] %vm2633, %v2542
      %2637 = vst.msk [vmem:[#allocation3 + $0xc] sm:$0xf] %vm2633, %v2544
      %2638 = vst.msk [vmem:[#allocation3 + $0x10] sm:$0xf] %vm2633, %v2546
      %2639 = vst.msk [vmem:[#allocation3 + $0x14] sm:$0xf] %vm2633, %v2548
      %2640 = vst.msk [vmem:[#allocation3 + $0x18] sm:$0xf] %vm2633, %v2550
      %2641 = vst.msk [vmem:[#allocation3 + $0x1c] sm:$0xf] %vm2633, %v2552
      %2642 = vst.msk [vmem:[#allocation3 + $0x20] sm:$0xf] %vm2633, %v2554
      %2643 = vst.msk [vmem:[#allocation3 + $0x24] sm:$0xf] %vm2633, %v2556
      %2644 = vst.msk [vmem:[#allocation3 + $0x28] sm:$0xf] %vm2633, %v2558
      %2645 = vst.msk [vmem:[#allocation3 + $0x2c] sm:$0xf] %vm2633, %v2560
      %2646 = vst.msk [vmem:[#allocation3 + $0x30] sm:$0xf] %vm2633, %v2562
      %2647 = vst.msk [vmem:[#allocation3 + $0x34] sm:$0xf] %vm2633, %v2564
      %2648 = vst.msk [vmem:[#allocation3 + $0x38] sm:$0xf] %vm2633, %v2566
      %2649 = vst.msk [vmem:[#allocation3 + $0x3c] sm:$0xf] %vm2633, %v2568
      %2650 = vst.msk [vmem:[#allocation3 + $0x40] sm:$0xf] %vm2633, %v2570
      %2651 = vst.msk [vmem:[#allocation3 + $0x44] sm:$0xf] %vm2633, %v2572
      %2652 = vst.msk [vmem:[#allocation3 + $0x48] sm:$0xf] %vm2633, %v2574
      %2653 = vst.msk [vmem:[#allocation3 + $0x4c] sm:$0xf] %vm2633, %v2576
      %2654 = vst.msk [vmem:[#allocation3 + $0x50] sm:$0xf] %vm2633, %v2578
      %2655 = vst.msk [vmem:[#allocation3 + $0x54] sm:$0xf] %vm2633, %v2580
      %2656 = vst.msk [vmem:[#allocation3 + $0x58] sm:$0xf] %vm2633, %v2582
      %2657 = vst.msk [vmem:[#allocation3 + $0x5c] sm:$0xf] %vm2633, %v2584
      %2658 = vst.msk [vmem:[#allocation3 + $0x60] sm:$0xf] %vm2633, %v2586
      %2659 = vst.msk [vmem:[#allocation3 + $0x64] sm:$0xf] %vm2633, %v2588
      %2660 = vst.msk [vmem:[#allocation3 + $0x68] sm:$0xf] %vm2633, %v2590
      %2661 = vst.msk [vmem:[#allocation3 + $0x6c] sm:$0xf] %vm2633, %v2592
      %2662 = vst.msk [vmem:[#allocation3 + $0x70] sm:$0xf] %vm2633, %v2594
      %2663 = vst.msk [vmem:[#allocation3 + $0x74] sm:$0xf] %vm2633, %v2596
      %2664 = vst.msk [vmem:[#allocation3 + $0x78] sm:$0xf] %vm2633, %v2598
      %2665 = vst.msk [vmem:[#allocation3 + $0x7c] sm:$0xf] %vm2633, %v2600
      %s2666 = sadd.s32 %s790, 2
      %s2667 = smul.u32 %s2666, 3
      %s2668 = smul.addr %s2667, 4
      %s2669 = scalar_lea.vmem [#allocation2], %s2668
      %v2670 = vld [vmem:[%s2669] sm:$0xf]
      %v2671 = vld [vmem:[%s2669 + $0x4] sm:$0xf]
      %v2672 = vld [vmem:[%s2669 + $0x8] sm:$0x1]
      %v2673 = vld [vmem:[%s2669 + $0xc] sm:$0xf]
      %v2674 = vld [vmem:[%s2669 + $0x10] sm:$0xf]
      %v2675 = vld [vmem:[%s2669 + $0x14] sm:$0x1]
      %v2676 = vld [vmem:[%s2669 + $0x18] sm:$0xf]
      %v2677 = vld [vmem:[%s2669 + $0x1c] sm:$0xf]
      %v2678 = vld [vmem:[%s2669 + $0x20] sm:$0x1]
      %v2679 = vld [vmem:[%s2669 + $0x24] sm:$0xf]
      %v2680 = vld [vmem:[%s2669 + $0x28] sm:$0xf]
      %v2681 = vld [vmem:[%s2669 + $0x2c] sm:$0x1]
      %v2682 = vld [vmem:[%s2669 + $0x30] sm:$0xf]
      %v2683 = vld [vmem:[%s2669 + $0x34] sm:$0xf]
      %v2684 = vld [vmem:[%s2669 + $0x38] sm:$0x1]
      %v2685 = vld [vmem:[%s2669 + $0x3c] sm:$0xf]
      %v2686 = vld [vmem:[%s2669 + $0x40] sm:$0xf]
      %v2687 = vld [vmem:[%s2669 + $0x44] sm:$0x1]
      %v2688 = vld [vmem:[%s2669 + $0x48] sm:$0xf]
      %v2689 = vld [vmem:[%s2669 + $0x4c] sm:$0xf]
      %v2690 = vld [vmem:[%s2669 + $0x50] sm:$0x1]
      %v2691 = vld [vmem:[%s2669 + $0x54] sm:$0xf]
      %v2692 = vld [vmem:[%s2669 + $0x58] sm:$0xf]
      %v2693 = vld [vmem:[%s2669 + $0x5c] sm:$0x1]
      %v2694 = vld [vmem:[%s2669 + $0x60] sm:$0xf]
      %v2695 = vld [vmem:[%s2669 + $0x64] sm:$0xf]
      %v2696 = vld [vmem:[%s2669 + $0x68] sm:$0x1]
      %v2697 = vld [vmem:[%s2669 + $0x6c] sm:$0xf]
      %v2698 = vld [vmem:[%s2669 + $0x70] sm:$0xf]
      %v2699 = vld [vmem:[%s2669 + $0x74] sm:$0x1]
      %v2700 = vld [vmem:[%s2669 + $0x78] sm:$0xf]
      %v2701 = vld [vmem:[%s2669 + $0x7c] sm:$0xf]
      %v2702 = vld [vmem:[%s2669 + $0x80] sm:$0x1]
      %v2703 = vld [vmem:[%s2669 + $0x84] sm:$0xf]
      %v2704 = vld [vmem:[%s2669 + $0x88] sm:$0xf]
      %v2705 = vld [vmem:[%s2669 + $0x8c] sm:$0x1]
      %v2706 = vld [vmem:[%s2669 + $0x90] sm:$0xf]
      %v2707 = vld [vmem:[%s2669 + $0x94] sm:$0xf]
      %v2708 = vld [vmem:[%s2669 + $0x98] sm:$0x1]
      %v2709 = vld [vmem:[%s2669 + $0x9c] sm:$0xf]
      %v2710 = vld [vmem:[%s2669 + $0xa0] sm:$0xf]
      %v2711 = vld [vmem:[%s2669 + $0xa4] sm:$0x1]
      %v2712 = vld [vmem:[%s2669 + $0xa8] sm:$0xf]
      %v2713 = vld [vmem:[%s2669 + $0xac] sm:$0xf]
      %v2714 = vld [vmem:[%s2669 + $0xb0] sm:$0x1]
      %v2715 = vld [vmem:[%s2669 + $0xb4] sm:$0xf]
      %v2716 = vld [vmem:[%s2669 + $0xb8] sm:$0xf]
      %v2717 = vld [vmem:[%s2669 + $0xbc] sm:$0x1]
      %2750 = vrot.lane.b32.xlu0 %v2670, 24
      %v2751 = vpop.permute.xlu0 %2750
      %2752 = vrot.lane.b32.xlu0 %v2671, 24
      %v2753 = vpop.permute.xlu0 %2752
      %2754 = vrot.lane.b32.xlu0 %v2673, 24
      %v2755 = vpop.permute.xlu0 %2754
      %2756 = vrot.lane.b32.xlu0 %v2674, 24
      %v2757 = vpop.permute.xlu0 %2756
      %2758 = vrot.lane.b32.xlu0 %v2676, 24
      %v2759 = vpop.permute.xlu0 %2758
      %2760 = vrot.lane.b32.xlu0 %v2677, 24
      %v2761 = vpop.permute.xlu0 %2760
      %2762 = vrot.lane.b32.xlu0 %v2679, 24
      %v2763 = vpop.permute.xlu0 %2762
      %2764 = vrot.lane.b32.xlu0 %v2680, 24
      %v2765 = vpop.permute.xlu0 %2764
      %2766 = vrot.lane.b32.xlu0 %v2682, 24
      %v2767 = vpop.permute.xlu0 %2766
      %2768 = vrot.lane.b32.xlu0 %v2683, 24
      %v2769 = vpop.permute.xlu0 %2768
      %2770 = vrot.lane.b32.xlu0 %v2685, 24
      %v2771 = vpop.permute.xlu0 %2770
      %2772 = vrot.lane.b32.xlu0 %v2686, 24
      %v2773 = vpop.permute.xlu0 %2772
      %2774 = vrot.lane.b32.xlu0 %v2688, 24
      %v2775 = vpop.permute.xlu0 %2774
      %2776 = vrot.lane.b32.xlu0 %v2689, 24
      %v2777 = vpop.permute.xlu0 %2776
      %2778 = vrot.lane.b32.xlu0 %v2691, 24
      %v2779 = vpop.permute.xlu0 %2778
      %2780 = vrot.lane.b32.xlu0 %v2692, 24
      %v2781 = vpop.permute.xlu0 %2780
      %2782 = vrot.lane.b32.xlu0 %v2694, 24
      %v2783 = vpop.permute.xlu0 %2782
      %2784 = vrot.lane.b32.xlu0 %v2695, 24
      %v2785 = vpop.permute.xlu0 %2784
      %2786 = vrot.lane.b32.xlu0 %v2697, 24
      %v2787 = vpop.permute.xlu0 %2786
      %2788 = vrot.lane.b32.xlu0 %v2698, 24
      %v2789 = vpop.permute.xlu0 %2788
      %2790 = vrot.lane.b32.xlu0 %v2700, 24
      %v2791 = vpop.permute.xlu0 %2790
      %2792 = vrot.lane.b32.xlu0 %v2701, 24
      %v2793 = vpop.permute.xlu0 %2792
      %2794 = vrot.lane.b32.xlu0 %v2703, 24
      %v2795 = vpop.permute.xlu0 %2794
      %2796 = vrot.lane.b32.xlu0 %v2704, 24
      %v2797 = vpop.permute.xlu0 %2796
      %2798 = vrot.lane.b32.xlu0 %v2706, 24
      %v2799 = vpop.permute.xlu0 %2798
      %2800 = vrot.lane.b32.xlu0 %v2707, 24
      %v2801 = vpop.permute.xlu0 %2800
      %2802 = vrot.lane.b32.xlu0 %v2709, 24
      %v2803 = vpop.permute.xlu0 %2802
      %2804 = vrot.lane.b32.xlu0 %v2710, 24
      %v2805 = vpop.permute.xlu0 %2804
      %2806 = vrot.lane.b32.xlu0 %v2712, 24
      %v2807 = vpop.permute.xlu0 %2806
      %2808 = vrot.lane.b32.xlu0 %v2713, 24
      %v2809 = vpop.permute.xlu0 %2808
      %2810 = vrot.lane.b32.xlu0 %v2715, 24
      %v2811 = vpop.permute.xlu0 %2810
      %2812 = vrot.lane.b32.xlu0 %v2716, 24
      %v2813 = vpop.permute.xlu0 %2812
      %vm2846 = vcmask 224448
      %2847 = vst.msk [vmem:[#allocation3] sm:$0xf] %vm2846, %v2751
      %2848 = vst.msk [vmem:[#allocation3 + $0x4] sm:$0xf] %vm2846, %v2753
      %2849 = vst.msk [vmem:[#allocation3 + $0x8] sm:$0xf] %vm2846, %v2755
      %2850 = vst.msk [vmem:[#allocation3 + $0xc] sm:$0xf] %vm2846, %v2757
      %2851 = vst.msk [vmem:[#allocation3 + $0x10] sm:$0xf] %vm2846, %v2759
      %2852 = vst.msk [vmem:[#allocation3 + $0x14] sm:$0xf] %vm2846, %v2761
      %2853 = vst.msk [vmem:[#allocation3 + $0x18] sm:$0xf] %vm2846, %v2763
      %2854 = vst.msk [vmem:[#allocation3 + $0x1c] sm:$0xf] %vm2846, %v2765
      %2855 = vst.msk [vmem:[#allocation3 + $0x20] sm:$0xf] %vm2846, %v2767
      %2856 = vst.msk [vmem:[#allocation3 + $0x24] sm:$0xf] %vm2846, %v2769
      %2857 = vst.msk [vmem:[#allocation3 + $0x28] sm:$0xf] %vm2846, %v2771
      %2858 = vst.msk [vmem:[#allocation3 + $0x2c] sm:$0xf] %vm2846, %v2773
      %2859 = vst.msk [vmem:[#allocation3 + $0x30] sm:$0xf] %vm2846, %v2775
      %2860 = vst.msk [vmem:[#allocation3 + $0x34] sm:$0xf] %vm2846, %v2777
      %2861 = vst.msk [vmem:[#allocation3 + $0x38] sm:$0xf] %vm2846, %v2779
      %2862 = vst.msk [vmem:[#allocation3 + $0x3c] sm:$0xf] %vm2846, %v2781
      %2863 = vst.msk [vmem:[#allocation3 + $0x40] sm:$0xf] %vm2846, %v2783
      %2864 = vst.msk [vmem:[#allocation3 + $0x44] sm:$0xf] %vm2846, %v2785
      %2865 = vst.msk [vmem:[#allocation3 + $0x48] sm:$0xf] %vm2846, %v2787
      %2866 = vst.msk [vmem:[#allocation3 + $0x4c] sm:$0xf] %vm2846, %v2789
      %2867 = vst.msk [vmem:[#allocation3 + $0x50] sm:$0xf] %vm2846, %v2791
      %2868 = vst.msk [vmem:[#allocation3 + $0x54] sm:$0xf] %vm2846, %v2793
      %2869 = vst.msk [vmem:[#allocation3 + $0x58] sm:$0xf] %vm2846, %v2795
      %2870 = vst.msk [vmem:[#allocation3 + $0x5c] sm:$0xf] %vm2846, %v2797
      %2871 = vst.msk [vmem:[#allocation3 + $0x60] sm:$0xf] %vm2846, %v2799
      %2872 = vst.msk [vmem:[#allocation3 + $0x64] sm:$0xf] %vm2846, %v2801
      %2873 = vst.msk [vmem:[#allocation3 + $0x68] sm:$0xf] %vm2846, %v2803
      %2874 = vst.msk [vmem:[#allocation3 + $0x6c] sm:$0xf] %vm2846, %v2805
      %2875 = vst.msk [vmem:[#allocation3 + $0x70] sm:$0xf] %vm2846, %v2807
      %2876 = vst.msk [vmem:[#allocation3 + $0x74] sm:$0xf] %vm2846, %v2809
      %2877 = vst.msk [vmem:[#allocation3 + $0x78] sm:$0xf] %vm2846, %v2811
      %2878 = vst.msk [vmem:[#allocation3 + $0x7c] sm:$0xf] %vm2846, %v2813
      %v2880 = vshrl.u32 %v2670, 16
      %v2882 = vrot.slane %v2880, 4
      %v2883 = vshll.u32 %v2670, 16
      %v2885 = vrot.slane %v2883, 5
      %v2886 = vor.u32 %v2882, %v2885
      %v2887 = vrot.slane %v2886, 4
      %v2889 = vshll.u32 %v2671, 16
      %v2891 = vrot.slane %v2889, 5
      %v2892 = vsel %vm877, %v2887, %v2891
      %v2893 = vshrl.u32 %v2671, 16
      %v2895 = vrot.slane %v2893, 4
      %v2896 = vor.u32 %v2895, %v2891
      %v2897 = vrot.slane %v2896, 4
      %v2899 = vshll.u32 %v2672, 16
      %v2901 = vrot.slane %v2899, 5
      %v2902 = vsel %vm877, %v2897, %v2901
      %v2904 = vshrl.u32 %v2673, 16
      %v2906 = vrot.slane %v2904, 4
      %v2907 = vshll.u32 %v2673, 16
      %v2909 = vrot.slane %v2907, 5
      %v2910 = vor.u32 %v2906, %v2909
      %v2911 = vrot.slane %v2910, 4
      %v2913 = vshll.u32 %v2674, 16
      %v2915 = vrot.slane %v2913, 5
      %v2916 = vsel %vm877, %v2911, %v2915
      %v2917 = vshrl.u32 %v2674, 16
      %v2919 = vrot.slane %v2917, 4
      %v2920 = vor.u32 %v2919, %v2915
      %v2921 = vrot.slane %v2920, 4
      %v2923 = vshll.u32 %v2675, 16
      %v2925 = vrot.slane %v2923, 5
      %v2926 = vsel %vm877, %v2921, %v2925
      %v2928 = vshrl.u32 %v2676, 16
      %v2930 = vrot.slane %v2928, 4
      %v2931 = vshll.u32 %v2676, 16
      %v2933 = vrot.slane %v2931, 5
      %v2934 = vor.u32 %v2930, %v2933
      %v2935 = vrot.slane %v2934, 4
      %v2937 = vshll.u32 %v2677, 16
      %v2939 = vrot.slane %v2937, 5
      %v2940 = vsel %vm877, %v2935, %v2939
      %v2941 = vshrl.u32 %v2677, 16
      %v2943 = vrot.slane %v2941, 4
      %v2944 = vor.u32 %v2943, %v2939
      %v2945 = vrot.slane %v2944, 4
      %v2947 = vshll.u32 %v2678, 16
      %v2949 = vrot.slane %v2947, 5
      %v2950 = vsel %vm877, %v2945, %v2949
      %v2952 = vshrl.u32 %v2679, 16
      %v2954 = vrot.slane %v2952, 4
      %v2955 = vshll.u32 %v2679, 16
      %v2957 = vrot.slane %v2955, 5
      %v2958 = vor.u32 %v2954, %v2957
      %v2959 = vrot.slane %v2958, 4
      %v2961 = vshll.u32 %v2680, 16
      %v2963 = vrot.slane %v2961, 5
      %v2964 = vsel %vm877, %v2959, %v2963
      %v2965 = vshrl.u32 %v2680, 16
      %v2967 = vrot.slane %v2965, 4
      %v2968 = vor.u32 %v2967, %v2963
      %v2969 = vrot.slane %v2968, 4
      %v2971 = vshll.u32 %v2681, 16
      %v2973 = vrot.slane %v2971, 5
      %v2974 = vsel %vm877, %v2969, %v2973
      %v2976 = vshrl.u32 %v2682, 16
      %v2978 = vrot.slane %v2976, 4
      %v2979 = vshll.u32 %v2682, 16
      %v2981 = vrot.slane %v2979, 5
      %v2982 = vor.u32 %v2978, %v2981
      %v2983 = vrot.slane %v2982, 4
      %v2985 = vshll.u32 %v2683, 16
      %v2987 = vrot.slane %v2985, 5
      %v2988 = vsel %vm877, %v2983, %v2987
      %v2989 = vshrl.u32 %v2683, 16
      %v2991 = vrot.slane %v2989, 4
      %v2992 = vor.u32 %v2991, %v2987
      %v2993 = vrot.slane %v2992, 4
      %v2995 = vshll.u32 %v2684, 16
      %v2997 = vrot.slane %v2995, 5
      %v2998 = vsel %vm877, %v2993, %v2997
      %v3000 = vshrl.u32 %v2685, 16
      %v3002 = vrot.slane %v3000, 4
      %v3003 = vshll.u32 %v2685, 16
      %v3005 = vrot.slane %v3003, 5
      %v3006 = vor.u32 %v3002, %v3005
      %v3007 = vrot.slane %v3006, 4
      %v3009 = vshll.u32 %v2686, 16
      %v3011 = vrot.slane %v3009, 5
      %v3012 = vsel %vm877, %v3007, %v3011
      %v3013 = vshrl.u32 %v2686, 16
      %v3015 = vrot.slane %v3013, 4
      %v3016 = vor.u32 %v3015, %v3011
      %v3017 = vrot.slane %v3016, 4
      %v3019 = vshll.u32 %v2687, 16
      %v3021 = vrot.slane %v3019, 5
      %v3022 = vsel %vm877, %v3017, %v3021
      %v3024 = vshrl.u32 %v2688, 16
      %v3026 = vrot.slane %v3024, 4
      %v3027 = vshll.u32 %v2688, 16
      %v3029 = vrot.slane %v3027, 5
      %v3030 = vor.u32 %v3026, %v3029
      %v3031 = vrot.slane %v3030, 4
      %v3033 = vshll.u32 %v2689, 16
      %v3035 = vrot.slane %v3033, 5
      %v3036 = vsel %vm877, %v3031, %v3035
      %v3037 = vshrl.u32 %v2689, 16
      %v3039 = vrot.slane %v3037, 4
      %v3040 = vor.u32 %v3039, %v3035
      %v3041 = vrot.slane %v3040, 4
      %v3043 = vshll.u32 %v2690, 16
      %v3045 = vrot.slane %v3043, 5
      %v3046 = vsel %vm877, %v3041, %v3045
      %v3048 = vshrl.u32 %v2691, 16
      %v3050 = vrot.slane %v3048, 4
      %v3051 = vshll.u32 %v2691, 16
      %v3053 = vrot.slane %v3051, 5
      %v3054 = vor.u32 %v3050, %v3053
      %v3055 = vrot.slane %v3054, 4
      %v3057 = vshll.u32 %v2692, 16
      %v3059 = vrot.slane %v3057, 5
      %v3060 = vsel %vm877, %v3055, %v3059
      %v3061 = vshrl.u32 %v2692, 16
      %v3063 = vrot.slane %v3061, 4
      %v3064 = vor.u32 %v3063, %v3059
      %v3065 = vrot.slane %v3064, 4
      %v3067 = vshll.u32 %v2693, 16
      %v3069 = vrot.slane %v3067, 5
      %v3070 = vsel %vm877, %v3065, %v3069
      %v3072 = vshrl.u32 %v2694, 16
      %v3074 = vrot.slane %v3072, 4
      %v3075 = vshll.u32 %v2694, 16
      %v3077 = vrot.slane %v3075, 5
      %v3078 = vor.u32 %v3074, %v3077
      %v3079 = vrot.slane %v3078, 4
      %v3081 = vshll.u32 %v2695, 16
      %v3083 = vrot.slane %v3081, 5
      %v3084 = vsel %vm877, %v3079, %v3083
      %v3085 = vshrl.u32 %v2695, 16
      %v3087 = vrot.slane %v3085, 4
      %v3088 = vor.u32 %v3087, %v3083
      %v3089 = vrot.slane %v3088, 4
      %v3091 = vshll.u32 %v2696, 16
      %v3093 = vrot.slane %v3091, 5
      %v3094 = vsel %vm877, %v3089, %v3093
      %v3096 = vshrl.u32 %v2697, 16
      %v3098 = vrot.slane %v3096, 4
      %v3099 = vshll.u32 %v2697, 16
      %v3101 = vrot.slane %v3099, 5
      %v3102 = vor.u32 %v3098, %v3101
      %v3103 = vrot.slane %v3102, 4
      %v3105 = vshll.u32 %v2698, 16
      %v3107 = vrot.slane %v3105, 5
      %v3108 = vsel %vm877, %v3103, %v3107
      %v3109 = vshrl.u32 %v2698, 16
      %v3111 = vrot.slane %v3109, 4
      %v3112 = vor.u32 %v3111, %v3107
      %v3113 = vrot.slane %v3112, 4
      %v3115 = vshll.u32 %v2699, 16
      %v3117 = vrot.slane %v3115, 5
      %v3118 = vsel %vm877, %v3113, %v3117
      %v3120 = vshrl.u32 %v2700, 16
      %v3122 = vrot.slane %v3120, 4
      %v3123 = vshll.u32 %v2700, 16
      %v3125 = vrot.slane %v3123, 5
      %v3126 = vor.u32 %v3122, %v3125
      %v3127 = vrot.slane %v3126, 4
      %v3129 = vshll.u32 %v2701, 16
      %v3131 = vrot.slane %v3129, 5
      %v3132 = vsel %vm877, %v3127, %v3131
      %v3133 = vshrl.u32 %v2701, 16
      %v3135 = vrot.slane %v3133, 4
      %v3136 = vor.u32 %v3135, %v3131
      %v3137 = vrot.slane %v3136, 4
      %v3139 = vshll.u32 %v2702, 16
      %v3141 = vrot.slane %v3139, 5
      %v3142 = vsel %vm877, %v3137, %v3141
      %v3144 = vshrl.u32 %v2703, 16
      %v3146 = vrot.slane %v3144, 4
      %v3147 = vshll.u32 %v2703, 16
      %v3149 = vrot.slane %v3147, 5
      %v3150 = vor.u32 %v3146, %v3149
      %v3151 = vrot.slane %v3150, 4
      %v3153 = vshll.u32 %v2704, 16
      %v3155 = vrot.slane %v3153, 5
      %v3156 = vsel %vm877, %v3151, %v3155
      %v3157 = vshrl.u32 %v2704, 16
      %v3159 = vrot.slane %v3157, 4
      %v3160 = vor.u32 %v3159, %v3155
      %v3161 = vrot.slane %v3160, 4
      %v3163 = vshll.u32 %v2705, 16
      %v3165 = vrot.slane %v3163, 5
      %v3166 = vsel %vm877, %v3161, %v3165
      %v3168 = vshrl.u32 %v2706, 16
      %v3170 = vrot.slane %v3168, 4
      %v3171 = vshll.u32 %v2706, 16
      %v3173 = vrot.slane %v3171, 5
      %v3174 = vor.u32 %v3170, %v3173
      %v3175 = vrot.slane %v3174, 4
      %v3177 = vshll.u32 %v2707, 16
      %v3179 = vrot.slane %v3177, 5
      %v3180 = vsel %vm877, %v3175, %v3179
      %v3181 = vshrl.u32 %v2707, 16
      %v3183 = vrot.slane %v3181, 4
      %v3184 = vor.u32 %v3183, %v3179
      %v3185 = vrot.slane %v3184, 4
      %v3187 = vshll.u32 %v2708, 16
      %v3189 = vrot.slane %v3187, 5
      %v3190 = vsel %vm877, %v3185, %v3189
      %v3192 = vshrl.u32 %v2709, 16
      %v3194 = vrot.slane %v3192, 4
      %v3195 = vshll.u32 %v2709, 16
      %v3197 = vrot.slane %v3195, 5
      %v3198 = vor.u32 %v3194, %v3197
      %v3199 = vrot.slane %v3198, 4
      %v3201 = vshll.u32 %v2710, 16
      %v3203 = vrot.slane %v3201, 5
      %v3204 = vsel %vm877, %v3199, %v3203
      %v3205 = vshrl.u32 %v2710, 16
      %v3207 = vrot.slane %v3205, 4
      %v3208 = vor.u32 %v3207, %v3203
      %v3209 = vrot.slane %v3208, 4
      %v3211 = vshll.u32 %v2711, 16
      %v3213 = vrot.slane %v3211, 5
      %v3214 = vsel %vm877, %v3209, %v3213
      %v3216 = vshrl.u32 %v2712, 16
      %v3218 = vrot.slane %v3216, 4
      %v3219 = vshll.u32 %v2712, 16
      %v3221 = vrot.slane %v3219, 5
      %v3222 = vor.u32 %v3218, %v3221
      %v3223 = vrot.slane %v3222, 4
      %v3225 = vshll.u32 %v2713, 16
      %v3227 = vrot.slane %v3225, 5
      %v3228 = vsel %vm877, %v3223, %v3227
      %v3229 = vshrl.u32 %v2713, 16
      %v3231 = vrot.slane %v3229, 4
      %v3232 = vor.u32 %v3231, %v3227
      %v3233 = vrot.slane %v3232, 4
      %v3235 = vshll.u32 %v2714, 16
      %v3237 = vrot.slane %v3235, 5
      %v3238 = vsel %vm877, %v3233, %v3237
      %v3240 = vshrl.u32 %v2715, 16
      %v3242 = vrot.slane %v3240, 4
      %v3243 = vshll.u32 %v2715, 16
      %v3245 = vrot.slane %v3243, 5
      %v3246 = vor.u32 %v3242, %v3245
      %v3247 = vrot.slane %v3246, 4
      %v3249 = vshll.u32 %v2716, 16
      %v3251 = vrot.slane %v3249, 5
      %v3252 = vsel %vm877, %v3247, %v3251
      %v3253 = vshrl.u32 %v2716, 16
      %v3255 = vrot.slane %v3253, 4
      %v3256 = vor.u32 %v3255, %v3251
      %v3257 = vrot.slane %v3256, 4
      %v3259 = vshll.u32 %v2717, 16
      %v3261 = vrot.slane %v3259, 5
      %v3262 = vsel %vm877, %v3257, %v3261
      %3263 = vrot.lane.b32.xlu0 %v2892, 28
      %v3264 = vpop.permute.xlu0 %3263
      %3265 = vrot.lane.b32.xlu0 %v2902, 28
      %v3266 = vpop.permute.xlu0 %3265
      %3267 = vrot.lane.b32.xlu0 %v2916, 28
      %v3268 = vpop.permute.xlu0 %3267
      %3269 = vrot.lane.b32.xlu0 %v2926, 28
      %v3270 = vpop.permute.xlu0 %3269
      %3271 = vrot.lane.b32.xlu0 %v2940, 28
      %v3272 = vpop.permute.xlu0 %3271
      %3273 = vrot.lane.b32.xlu0 %v2950, 28
      %v3274 = vpop.permute.xlu0 %3273
      %3275 = vrot.lane.b32.xlu0 %v2964, 28
      %v3276 = vpop.permute.xlu0 %3275
      %3277 = vrot.lane.b32.xlu0 %v2974, 28
      %v3278 = vpop.permute.xlu0 %3277
      %3279 = vrot.lane.b32.xlu0 %v2988, 28
      %v3280 = vpop.permute.xlu0 %3279
      %3281 = vrot.lane.b32.xlu0 %v2998, 28
      %v3282 = vpop.permute.xlu0 %3281
      %3283 = vrot.lane.b32.xlu0 %v3012, 28
      %v3284 = vpop.permute.xlu0 %3283
      %3285 = vrot.lane.b32.xlu0 %v3022, 28
      %v3286 = vpop.permute.xlu0 %3285
      %3287 = vrot.lane.b32.xlu0 %v3036, 28
      %v3288 = vpop.permute.xlu0 %3287
      %3289 = vrot.lane.b32.xlu0 %v3046, 28
      %v3290 = vpop.permute.xlu0 %3289
      %3291 = vrot.lane.b32.xlu0 %v3060, 28
      %v3292 = vpop.permute.xlu0 %3291
      %3293 = vrot.lane.b32.xlu0 %v3070, 28
      %v3294 = vpop.permute.xlu0 %3293
      %3295 = vrot.lane.b32.xlu0 %v3084, 28
      %v3296 = vpop.permute.xlu0 %3295
      %3297 = vrot.lane.b32.xlu0 %v3094, 28
      %v3298 = vpop.permute.xlu0 %3297
      %3299 = vrot.lane.b32.xlu0 %v3108, 28
      %v3300 = vpop.permute.xlu0 %3299
      %3301 = vrot.lane.b32.xlu0 %v3118, 28
      %v3302 = vpop.permute.xlu0 %3301
      %3303 = vrot.lane.b32.xlu0 %v3132, 28
      %v3304 = vpop.permute.xlu0 %3303
      %3305 = vrot.lane.b32.xlu0 %v3142, 28
      %v3306 = vpop.permute.xlu0 %3305
      %3307 = vrot.lane.b32.xlu0 %v3156, 28
      %v3308 = vpop.permute.xlu0 %3307
      %3309 = vrot.lane.b32.xlu0 %v3166, 28
      %v3310 = vpop.permute.xlu0 %3309
      %3311 = vrot.lane.b32.xlu0 %v3180, 28
      %v3312 = vpop.permute.xlu0 %3311
      %3313 = vrot.lane.b32.xlu0 %v3190, 28
      %v3314 = vpop.permute.xlu0 %3313
      %3315 = vrot.lane.b32.xlu0 %v3204, 28
      %v3316 = vpop.permute.xlu0 %3315
      %3317 = vrot.lane.b32.xlu0 %v3214, 28
      %v3318 = vpop.permute.xlu0 %3317
      %3319 = vrot.lane.b32.xlu0 %v3228, 28
      %v3320 = vpop.permute.xlu0 %3319
      %3321 = vrot.lane.b32.xlu0 %v3238, 28
      %v3322 = vpop.permute.xlu0 %3321
      %3323 = vrot.lane.b32.xlu0 %v3252, 28
      %v3324 = vpop.permute.xlu0 %3323
      %3325 = vrot.lane.b32.xlu0 %v3262, 28
      %v3326 = vpop.permute.xlu0 %3325
      %vm3359 = vcmask 257248
      %3360 = vst.msk [vmem:[#allocation3] sm:$0xf] %vm3359, %v3264
      %3361 = vst.msk [vmem:[#allocation3 + $0x4] sm:$0xf] %vm3359, %v3266
      %3362 = vst.msk [vmem:[#allocation3 + $0x8] sm:$0xf] %vm3359, %v3268
      %3363 = vst.msk [vmem:[#allocation3 + $0xc] sm:$0xf] %vm3359, %v3270
      %3364 = vst.msk [vmem:[#allocation3 + $0x10] sm:$0xf] %vm3359, %v3272
      %3365 = vst.msk [vmem:[#allocation3 + $0x14] sm:$0xf] %vm3359, %v3274
      %3366 = vst.msk [vmem:[#allocation3 + $0x18] sm:$0xf] %vm3359, %v3276
      %3367 = vst.msk [vmem:[#allocation3 + $0x1c] sm:$0xf] %vm3359, %v3278
      %3368 = vst.msk [vmem:[#allocation3 + $0x20] sm:$0xf] %vm3359, %v3280
      %3369 = vst.msk [vmem:[#allocation3 + $0x24] sm:$0xf] %vm3359, %v3282
      %3370 = vst.msk [vmem:[#allocation3 + $0x28] sm:$0xf] %vm3359, %v3284
      %3371 = vst.msk [vmem:[#allocation3 + $0x2c] sm:$0xf] %vm3359, %v3286
      %3372 = vst.msk [vmem:[#allocation3 + $0x30] sm:$0xf] %vm3359, %v3288
      %3373 = vst.msk [vmem:[#allocation3 + $0x34] sm:$0xf] %vm3359, %v3290
      %3374 = vst.msk [vmem:[#allocation3 + $0x38] sm:$0xf] %vm3359, %v3292
      %3375 = vst.msk [vmem:[#allocation3 + $0x3c] sm:$0xf] %vm3359, %v3294
      %3376 = vst.msk [vmem:[#allocation3 + $0x40] sm:$0xf] %vm3359, %v3296
      %3377 = vst.msk [vmem:[#allocation3 + $0x44] sm:$0xf] %vm3359, %v3298
      %3378 = vst.msk [vmem:[#allocation3 + $0x48] sm:$0xf] %vm3359, %v3300
      %3379 = vst.msk [vmem:[#allocation3 + $0x4c] sm:$0xf] %vm3359, %v3302
      %3380 = vst.msk [vmem:[#allocation3 + $0x50] sm:$0xf] %vm3359, %v3304
      %3381 = vst.msk [vmem:[#allocation3 + $0x54] sm:$0xf] %vm3359, %v3306
      %3382 = vst.msk [vmem:[#allocation3 + $0x58] sm:$0xf] %vm3359, %v3308
      %3383 = vst.msk [vmem:[#allocation3 + $0x5c] sm:$0xf] %vm3359, %v3310
      %3384 = vst.msk [vmem:[#allocation3 + $0x60] sm:$0xf] %vm3359, %v3312
      %3385 = vst.msk [vmem:[#allocation3 + $0x64] sm:$0xf] %vm3359, %v3314
      %3386 = vst.msk [vmem:[#allocation3 + $0x68] sm:$0xf] %vm3359, %v3316
      %3387 = vst.msk [vmem:[#allocation3 + $0x6c] sm:$0xf] %vm3359, %v3318
      %3388 = vst.msk [vmem:[#allocation3 + $0x70] sm:$0xf] %vm3359, %v3320
      %3389 = vst.msk [vmem:[#allocation3 + $0x74] sm:$0xf] %vm3359, %v3322
      %3390 = vst.msk [vmem:[#allocation3 + $0x78] sm:$0xf] %vm3359, %v3324
      %3391 = vst.msk [vmem:[#allocation3 + $0x7c] sm:$0xf] %vm3359, %v3326
      %v3408 = vrot.slane %v2670, 5
      %v3409 = vrot.slane %v3408, 4
      %v3410 = vrot.slane %v2671, 5
      %v3411 = vsel %vm1441, %v3409, %v3410
      %v3412 = vrot.slane %v3410, 4
      %v3413 = vrot.slane %v2672, 5
      %v3414 = vsel %vm1441, %v3412, %v3413
      %v3415 = vrot.slane %v2673, 5
      %v3416 = vrot.slane %v3415, 4
      %v3417 = vrot.slane %v2674, 5
      %v3418 = vsel %vm1441, %v3416, %v3417
      %v3419 = vrot.slane %v3417, 4
      %v3420 = vrot.slane %v2675, 5
      %v3421 = vsel %vm1441, %v3419, %v3420
      %v3422 = vrot.slane %v2676, 5
      %v3423 = vrot.slane %v3422, 4
      %v3424 = vrot.slane %v2677, 5
      %v3425 = vsel %vm1441, %v3423, %v3424
      %v3426 = vrot.slane %v3424, 4
      %v3427 = vrot.slane %v2678, 5
      %v3428 = vsel %vm1441, %v3426, %v3427
      %v3429 = vrot.slane %v2679, 5
      %v3430 = vrot.slane %v3429, 4
      %v3431 = vrot.slane %v2680, 5
      %v3432 = vsel %vm1441, %v3430, %v3431
      %v3433 = vrot.slane %v3431, 4
      %v3434 = vrot.slane %v2681, 5
      %v3435 = vsel %vm1441, %v3433, %v3434
      %v3436 = vrot.slane %v2682, 5
      %v3437 = vrot.slane %v3436, 4
      %v3438 = vrot.slane %v2683, 5
      %v3439 = vsel %vm1441, %v3437, %v3438
      %v3440 = vrot.slane %v3438, 4
      %v3441 = vrot.slane %v2684, 5
      %v3442 = vsel %vm1441, %v3440, %v3441
      %v3443 = vrot.slane %v2685, 5
      %v3444 = vrot.slane %v3443, 4
      %v3445 = vrot.slane %v2686, 5
      %v3446 = vsel %vm1441, %v3444, %v3445
      %v3447 = vrot.slane %v3445, 4
      %v3448 = vrot.slane %v2687, 5
      %v3449 = vsel %vm1441, %v3447, %v3448
      %v3450 = vrot.slane %v2688, 5
      %v3451 = vrot.slane %v3450, 4
      %v3452 = vrot.slane %v2689, 5
      %v3453 = vsel %vm1441, %v3451, %v3452
      %v3454 = vrot.slane %v3452, 4
      %v3455 = vrot.slane %v2690, 5
      %v3456 = vsel %vm1441, %v3454, %v3455
      %v3457 = vrot.slane %v2691, 5
      %v3458 = vrot.slane %v3457, 4
      %v3459 = vrot.slane %v2692, 5
      %v3460 = vsel %vm1441, %v3458, %v3459
      %v3461 = vrot.slane %v3459, 4
      %v3462 = vrot.slane %v2693, 5
      %v3463 = vsel %vm1441, %v3461, %v3462
      %v3464 = vrot.slane %v2694, 5
      %v3465 = vrot.slane %v3464, 4
      %v3466 = vrot.slane %v2695, 5
      %v3467 = vsel %vm1441, %v3465, %v3466
      %v3468 = vrot.slane %v3466, 4
      %v3469 = vrot.slane %v2696, 5
      %v3470 = vsel %vm1441, %v3468, %v3469
      %v3471 = vrot.slane %v2697, 5
      %v3472 = vrot.slane %v3471, 4
      %v3473 = vrot.slane %v2698, 5
      %v3474 = vsel %vm1441, %v3472, %v3473
      %v3475 = vrot.slane %v3473, 4
      %v3476 = vrot.slane %v2699, 5
      %v3477 = vsel %vm1441, %v3475, %v3476
      %v3478 = vrot.slane %v2700, 5
      %v3479 = vrot.slane %v3478, 4
      %v3480 = vrot.slane %v2701, 5
      %v3481 = vsel %vm1441, %v3479, %v3480
      %v3482 = vrot.slane %v3480, 4
      %v3483 = vrot.slane %v2702, 5
      %v3484 = vsel %vm1441, %v3482, %v3483
      %v3485 = vrot.slane %v2703, 5
      %v3486 = vrot.slane %v3485, 4
      %v3487 = vrot.slane %v2704, 5
      %v3488 = vsel %vm1441, %v3486, %v3487
      %v3489 = vrot.slane %v3487, 4
      %v3490 = vrot.slane %v2705, 5
      %v3491 = vsel %vm1441, %v3489, %v3490
      %v3492 = vrot.slane %v2706, 5
      %v3493 = vrot.slane %v3492, 4
      %v3494 = vrot.slane %v2707, 5
      %v3495 = vsel %vm1441, %v3493, %v3494
      %v3496 = vrot.slane %v3494, 4
      %v3497 = vrot.slane %v2708, 5
      %v3498 = vsel %vm1441, %v3496, %v3497
      %v3499 = vrot.slane %v2709, 5
      %v3500 = vrot.slane %v3499, 4
      %v3501 = vrot.slane %v2710, 5
      %v3502 = vsel %vm1441, %v3500, %v3501
      %v3503 = vrot.slane %v3501, 4
      %v3504 = vrot.slane %v2711, 5
      %v3505 = vsel %vm1441, %v3503, %v3504
      %v3506 = vrot.slane %v2712, 5
      %v3507 = vrot.slane %v3506, 4
      %v3508 = vrot.slane %v2713, 5
      %v3509 = vsel %vm1441, %v3507, %v3508
      %v3510 = vrot.slane %v3508, 4
      %v3511 = vrot.slane %v2714, 5
      %v3512 = vsel %vm1441, %v3510, %v3511
      %v3513 = vrot.slane %v2715, 5
      %v3514 = vrot.slane %v3513, 4
      %v3515 = vrot.slane %v2716, 5
      %v3516 = vsel %vm1441, %v3514, %v3515
      %v3517 = vrot.slane %v3515, 4
      %v3518 = vrot.slane %v2717, 5
      %v3519 = vsel %vm1441, %v3517, %v3518
      %3520 = vrot.lane.b32.xlu0 %v3411, 32
      %v3521 = vpop.permute.xlu0 %3520
      %3522 = vrot.lane.b32.xlu0 %v3414, 32
      %v3523 = vpop.permute.xlu0 %3522
      %3524 = vrot.lane.b32.xlu0 %v3418, 32
      %v3525 = vpop.permute.xlu0 %3524
      %3526 = vrot.lane.b32.xlu0 %v3421, 32
      %v3527 = vpop.permute.xlu0 %3526
      %3528 = vrot.lane.b32.xlu0 %v3425, 32
      %v3529 = vpop.permute.xlu0 %3528
      %3530 = vrot.lane.b32.xlu0 %v3428, 32
      %v3531 = vpop.permute.xlu0 %3530
      %3532 = vrot.lane.b32.xlu0 %v3432, 32
      %v3533 = vpop.permute.xlu0 %3532
      %3534 = vrot.lane.b32.xlu0 %v3435, 32
      %v3535 = vpop.permute.xlu0 %3534
      %3536 = vrot.lane.b32.xlu0 %v3439, 32
      %v3537 = vpop.permute.xlu0 %3536
      %3538 = vrot.lane.b32.xlu0 %v3442, 32
      %v3539 = vpop.permute.xlu0 %3538
      %3540 = vrot.lane.b32.xlu0 %v3446, 32
      %v3541 = vpop.permute.xlu0 %3540
      %3542 = vrot.lane.b32.xlu0 %v3449, 32
      %v3543 = vpop.permute.xlu0 %3542
      %3544 = vrot.lane.b32.xlu0 %v3453, 32
      %v3545 = vpop.permute.xlu0 %3544
      %3546 = vrot.lane.b32.xlu0 %v3456, 32
      %v3547 = vpop.permute.xlu0 %3546
      %3548 = vrot.lane.b32.xlu0 %v3460, 32
      %v3549 = vpop.permute.xlu0 %3548
      %3550 = vrot.lane.b32.xlu0 %v3463, 32
      %v3551 = vpop.permute.xlu0 %3550
      %3552 = vrot.lane.b32.xlu0 %v3467, 32
      %v3553 = vpop.permute.xlu0 %3552
      %3554 = vrot.lane.b32.xlu0 %v3470, 32
      %v3555 = vpop.permute.xlu0 %3554
      %3556 = vrot.lane.b32.xlu0 %v3474, 32
      %v3557 = vpop.permute.xlu0 %3556
      %3558 = vrot.lane.b32.xlu0 %v3477, 32
      %v3559 = vpop.permute.xlu0 %3558
      %3560 = vrot.lane.b32.xlu0 %v3481, 32
      %v3561 = vpop.permute.xlu0 %3560
      %3562 = vrot.lane.b32.xlu0 %v3484, 32
      %v3563 = vpop.permute.xlu0 %3562
      %3564 = vrot.lane.b32.xlu0 %v3488, 32
      %v3565 = vpop.permute.xlu0 %3564
      %3566 = vrot.lane.b32.xlu0 %v3491, 32
      %v3567 = vpop.permute.xlu0 %3566
      %3568 = vrot.lane.b32.xlu0 %v3495, 32
      %v3569 = vpop.permute.xlu0 %3568
      %3570 = vrot.lane.b32.xlu0 %v3498, 32
      %v3571 = vpop.permute.xlu0 %3570
      %3572 = vrot.lane.b32.xlu0 %v3502, 32
      %v3573 = vpop.permute.xlu0 %3572
      %3574 = vrot.lane.b32.xlu0 %v3505, 32
      %v3575 = vpop.permute.xlu0 %3574
      %3576 = vrot.lane.b32.xlu0 %v3509, 32
      %v3577 = vpop.permute.xlu0 %3576
      %3578 = vrot.lane.b32.xlu0 %v3512, 32
      %v3579 = vpop.permute.xlu0 %3578
      %3580 = vrot.lane.b32.xlu0 %v3516, 32
      %v3581 = vpop.permute.xlu0 %3580
      %3582 = vrot.lane.b32.xlu0 %v3519, 32
      %v3583 = vpop.permute.xlu0 %3582
      %vm3616 = vcmask 290048
      %3617 = vst.msk [vmem:[#allocation3] sm:$0xf] %vm3616, %v3521
      %3618 = vst.msk [vmem:[#allocation3 + $0x4] sm:$0xf] %vm3616, %v3523
      %3619 = vst.msk [vmem:[#allocation3 + $0x8] sm:$0xf] %vm3616, %v3525
      %3620 = vst.msk [vmem:[#allocation3 + $0xc] sm:$0xf] %vm3616, %v3527
      %3621 = vst.msk [vmem:[#allocation3 + $0x10] sm:$0xf] %vm3616, %v3529
      %3622 = vst.msk [vmem:[#allocation3 + $0x14] sm:$0xf] %vm3616, %v3531
      %3623 = vst.msk [vmem:[#allocation3 + $0x18] sm:$0xf] %vm3616, %v3533
      %3624 = vst.msk [vmem:[#allocation3 + $0x1c] sm:$0xf] %vm3616, %v3535
      %3625 = vst.msk [vmem:[#allocation3 + $0x20] sm:$0xf] %vm3616, %v3537
      %3626 = vst.msk [vmem:[#allocation3 + $0x24] sm:$0xf] %vm3616, %v3539
      %3627 = vst.msk [vmem:[#allocation3 + $0x28] sm:$0xf] %vm3616, %v3541
      %3628 = vst.msk [vmem:[#allocation3 + $0x2c] sm:$0xf] %vm3616, %v3543
      %3629 = vst.msk [vmem:[#allocation3 + $0x30] sm:$0xf] %vm3616, %v3545
      %3630 = vst.msk [vmem:[#allocation3 + $0x34] sm:$0xf] %vm3616, %v3547
      %3631 = vst.msk [vmem:[#allocation3 + $0x38] sm:$0xf] %vm3616, %v3549
      %3632 = vst.msk [vmem:[#allocation3 + $0x3c] sm:$0xf] %vm3616, %v3551
      %3633 = vst.msk [vmem:[#allocation3 + $0x40] sm:$0xf] %vm3616, %v3553
      %3634 = vst.msk [vmem:[#allocation3 + $0x44] sm:$0xf] %vm3616, %v3555
      %3635 = vst.msk [vmem:[#allocation3 + $0x48] sm:$0xf] %vm3616, %v3557
      %3636 = vst.msk [vmem:[#allocation3 + $0x4c] sm:$0xf] %vm3616, %v3559
      %3637 = vst.msk [vmem:[#allocation3 + $0x50] sm:$0xf] %vm3616, %v3561
      %3638 = vst.msk [vmem:[#allocation3 + $0x54] sm:$0xf] %vm3616, %v3563
      %3639 = vst.msk [vmem:[#allocation3 + $0x58] sm:$0xf] %vm3616, %v3565
      %3640 = vst.msk [vmem:[#allocation3 + $0x5c] sm:$0xf] %vm3616, %v3567
      %3641 = vst.msk [vmem:[#allocation3 + $0x60] sm:$0xf] %vm3616, %v3569
      %3642 = vst.msk [vmem:[#allocation3 + $0x64] sm:$0xf] %vm3616, %v3571
      %3643 = vst.msk [vmem:[#allocation3 + $0x68] sm:$0xf] %vm3616, %v3573
      %3644 = vst.msk [vmem:[#allocation3 + $0x6c] sm:$0xf] %vm3616, %v3575
      %3645 = vst.msk [vmem:[#allocation3 + $0x70] sm:$0xf] %vm3616, %v3577
      %3646 = vst.msk [vmem:[#allocation3 + $0x74] sm:$0xf] %vm3616, %v3579
      %3647 = vst.msk [vmem:[#allocation3 + $0x78] sm:$0xf] %vm3616, %v3581
      %3648 = vst.msk [vmem:[#allocation3 + $0x7c] sm:$0xf] %vm3616, %v3583
      %v3649 = vld [vmem:[#allocation3] sm:$0xf]
      %v3650 = vld [vmem:[#allocation3 + $0x4] sm:$0xf]
      %v3651 = vld [vmem:[#allocation3 + $0x8] sm:$0xf]
      %v3652 = vld [vmem:[#allocation3 + $0xc] sm:$0xf]
      %v3653 = vld [vmem:[#allocation3 + $0x10] sm:$0xf]
      %v3654 = vld [vmem:[#allocation3 + $0x14] sm:$0xf]
      %v3655 = vld [vmem:[#allocation3 + $0x18] sm:$0xf]
      %v3656 = vld [vmem:[#allocation3 + $0x1c] sm:$0xf]
      %v3657 = vld [vmem:[#allocation3 + $0x20] sm:$0xf]
      %v3658 = vld [vmem:[#allocation3 + $0x24] sm:$0xf]
      %v3659 = vld [vmem:[#allocation3 + $0x28] sm:$0xf]
      %v3660 = vld [vmem:[#allocation3 + $0x2c] sm:$0xf]
      %v3661 = vld [vmem:[#allocation3 + $0x30] sm:$0xf]
      %v3662 = vld [vmem:[#allocation3 + $0x34] sm:$0xf]
      %v3663 = vld [vmem:[#allocation3 + $0x38] sm:$0xf]
      %v3664 = vld [vmem:[#allocation3 + $0x3c] sm:$0xf]
      %v3665 = vld [vmem:[#allocation3 + $0x40] sm:$0xf]
      %v3666 = vld [vmem:[#allocation3 + $0x44] sm:$0xf]
      %v3667 = vld [vmem:[#allocation3 + $0x48] sm:$0xf]
      %v3668 = vld [vmem:[#allocation3 + $0x4c] sm:$0xf]
      %v3669 = vld [vmem:[#allocation3 + $0x50] sm:$0xf]
      %v3670 = vld [vmem:[#allocation3 + $0x54] sm:$0xf]
      %v3671 = vld [vmem:[#allocation3 + $0x58] sm:$0xf]
      %v3672 = vld [vmem:[#allocation3 + $0x5c] sm:$0xf]
      %v3673 = vld [vmem:[#allocation3 + $0x60] sm:$0xf]
      %v3674 = vld [vmem:[#allocation3 + $0x64] sm:$0xf]
      %v3675 = vld [vmem:[#allocation3 + $0x68] sm:$0xf]
      %v3676 = vld [vmem:[#allocation3 + $0x6c] sm:$0xf]
      %v3677 = vld [vmem:[#allocation3 + $0x70] sm:$0xf]
      %v3678 = vld [vmem:[#allocation3 + $0x74] sm:$0xf]
      %v3679 = vld [vmem:[#allocation3 + $0x78] sm:$0xf]
      %v3680 = vld [vmem:[#allocation3 + $0x7c] sm:$0xf]
      %v3681 = vld [vmem:[%s1] sm:$0xf]
      %v3682 = vld [vmem:[%s1 + $0x4] sm:$0xf]
      %v3683 = vld [vmem:[%s1 + $0x8] sm:$0xf]
      %v3684 = vld [vmem:[%s1 + $0xc] sm:$0xf]
      %v3685 = vld [vmem:[%s1 + $0x10] sm:$0xf]
      %v3686 = vld [vmem:[%s1 + $0x14] sm:$0xf]
      %v3687 = vld [vmem:[%s1 + $0x18] sm:$0xf]
      %v3688 = vld [vmem:[%s1 + $0x1c] sm:$0xf]
      %v3689 = vld [vmem:[%s1 + $0x20] sm:$0xf]
      %v3690 = vld [vmem:[%s1 + $0x24] sm:$0xf]
      %v3691 = vld [vmem:[%s1 + $0x28] sm:$0xf]
      %v3692 = vld [vmem:[%s1 + $0x2c] sm:$0xf]
      %v3693 = vld [vmem:[%s1 + $0x30] sm:$0xf]
      %v3694 = vld [vmem:[%s1 + $0x34] sm:$0xf]
      %v3695 = vld [vmem:[%s1 + $0x38] sm:$0xf]
      %v3696 = vld [vmem:[%s1 + $0x3c] sm:$0xf]
      %v3729 = vunpack.c.l.b16 %v3649
      %v3730 = vunpack.c.l.b16 %v3650
      %v3731 = vunpack.c.l.b16 %v3651
      %v3732 = vunpack.c.l.b16 %v3652
      %v3733 = vunpack.c.l.b16 %v3653
      %v3734 = vunpack.c.l.b16 %v3654
      %v3735 = vunpack.c.l.b16 %v3655
      %v3736 = vunpack.c.l.b16 %v3656
      %v3737 = vunpack.c.l.b16 %v3657
      %v3738 = vunpack.c.l.b16 %v3658
      %v3739 = vunpack.c.l.b16 %v3659
      %v3740 = vunpack.c.l.b16 %v3660
      %v3741 = vunpack.c.l.b16 %v3661
      %v3742 = vunpack.c.l.b16 %v3662
      %v3743 = vunpack.c.l.b16 %v3663
      %v3744 = vunpack.c.l.b16 %v3664
      %v3745 = vunpack.c.l.b16 %v3665
      %v3746 = vunpack.c.l.b16 %v3666
      %v3747 = vunpack.c.l.b16 %v3667
      %v3748 = vunpack.c.l.b16 %v3668
      %v3749 = vunpack.c.l.b16 %v3669
      %v3750 = vunpack.c.l.b16 %v3670
      %v3751 = vunpack.c.l.b16 %v3671
      %v3752 = vunpack.c.l.b16 %v3672
      %v3753 = vunpack.c.l.b16 %v3673
      %v3754 = vunpack.c.l.b16 %v3674
      %v3755 = vunpack.c.l.b16 %v3675
      %v3756 = vunpack.c.l.b16 %v3676
      %v3757 = vunpack.c.l.b16 %v3677
      %v3758 = vunpack.c.l.b16 %v3678
      %v3759 = vunpack.c.l.b16 %v3679
      %v3760 = vunpack.c.l.b16 %v3680
      %v3761 = vpack.c.b16 %v3730, %v3729
      %v3762 = vpack.c.b16 %v3732, %v3731
      %v3763 = vpack.c.b16 %v3734, %v3733
      %v3764 = vpack.c.b16 %v3736, %v3735
      %v3765 = vpack.c.b16 %v3738, %v3737
      %v3766 = vpack.c.b16 %v3740, %v3739
      %v3767 = vpack.c.b16 %v3742, %v3741
      %v3768 = vpack.c.b16 %v3744, %v3743
      %v3769 = vpack.c.b16 %v3746, %v3745
      %v3770 = vpack.c.b16 %v3748, %v3747
      %v3771 = vpack.c.b16 %v3750, %v3749
      %v3772 = vpack.c.b16 %v3752, %v3751
      %v3773 = vpack.c.b16 %v3754, %v3753
      %v3774 = vpack.c.b16 %v3756, %v3755
      %v3775 = vpack.c.b16 %v3758, %v3757
      %v3776 = vpack.c.b16 %v3760, %v3759
      %v3809 = vunpack.c.l.b16 %v3681
      %v3810 = vunpack.c.l.b16 %v3682
      %v3811 = vunpack.c.l.b16 %v3683
      %v3812 = vunpack.c.l.b16 %v3684
      %v3813 = vunpack.c.l.b16 %v3685
      %v3814 = vunpack.c.l.b16 %v3686
      %v3815 = vunpack.c.l.b16 %v3687
      %v3816 = vunpack.c.l.b16 %v3688
      %v3817 = vunpack.c.l.b16 %v3689
      %v3818 = vunpack.c.l.b16 %v3690
      %v3819 = vunpack.c.l.b16 %v3691
      %v3820 = vunpack.c.l.b16 %v3692
      %v3821 = vunpack.c.l.b16 %v3693
      %v3822 = vunpack.c.l.b16 %v3694
      %v3823 = vunpack.c.l.b16 %v3695
      %v3824 = vunpack.c.l.b16 %v3696
      %v3825 = vpack.c.b16 %v3810, %v3809
      %v3826 = vpack.c.b16 %v3812, %v3811
      %v3827 = vpack.c.b16 %v3814, %v3813
      %v3828 = vpack.c.b16 %v3816, %v3815
      %v3829 = vpack.c.b16 %v3818, %v3817
      %v3830 = vpack.c.b16 %v3820, %v3819
      %v3831 = vpack.c.b16 %v3822, %v3821
      %v3832 = vpack.c.b16 %v3824, %v3823
      %3841 = vmatprep.subr.bf16.mxu0 0
      %3842 = vmatpush1.bf16.msra.mxu0 %v3832
      %3843 = vmatprep.subr.bf16.mxu0 0
      %3844 = vmatpush1.bf16.msra.mxu0 %v3831
      %3845 = vmatprep.subr.bf16.mxu0 0
      %3846 = vmatpush1.bf16.msra.mxu0 %v3830
      %3847 = vmatprep.subr.bf16.mxu0 0
      %3848 = vmatpush1.bf16.msra.mxu0 %v3829
      %3849 = vmatprep.subr.bf16.mxu0 0
      %3850 = vmatpush1.bf16.msra.mxu0 %v3828
      %3851 = vmatprep.subr.bf16.mxu0 0
      %3852 = vmatpush1.bf16.msra.mxu0 %v3827
      %3853 = vmatprep.subr.bf16.mxu0 0
      %3854 = vmatpush1.bf16.msra.mxu0 %v3826
      %3855 = vmatprep.subr.bf16.mxu0 0
      %3856 = vmatpush1.bf16.msra.mxu0 %v3825
      %3857 = vmatprep.subr.bf16.mxu0 0
      %3858 = vmatpush2.bf16.msra.mxu0 0
      %3859 = vmatprep.subr.bf16.mxu0 0
      %3860 = vmatpush2.bf16.msra.mxu0 0
      %3861 = vmatprep.subr.bf16.mxu0 0
      %3862 = vmatpush2.bf16.msra.mxu0 0
      %3863 = vmatprep.subr.bf16.mxu0 0
      %3864 = vmatpush2.bf16.msra.mxu0 0
      %3865 = vmatprep.subr.bf16.mxu0 0
      %3866 = vmatpush2.bf16.msra.mxu0 0
      %3867 = vmatprep.subr.bf16.mxu0 0
      %3868 = vmatpush2.bf16.msra.mxu0 0
      %3869 = vmatprep.subr.bf16.mxu0 0
      %3870 = vmatpush2.bf16.msra.mxu0 0
      %3871 = vmatprep.subr.bf16.mxu0 0
      %3872 = vmatpush2.bf16.msra.mxu0 0
      %3873 = vmatprep.mubr.bf16.mxu0 0
      %3874 = vmatmul.mubr.bf16.gmra.mxu0 %v3761
      %v3875 = vpop.f32.mrf.mxu0
      %v3876 = vadd.f32 0.0, %v3875
      %v3877 = vpop.f32.mrf.mxu0
      %v3878 = vpop.f32.mrf.mxu0
      %v3879 = vadd.f32 0.0, %v3878
      %v3880 = vpop.f32.mrf.mxu0
      %3881 = vmatprep.mubr.bf16.mxu0 0
      %3882 = vmatmul.mubr.bf16.gmra.mxu0 %v3762
      %v3883 = vpop.f32.mrf.mxu0
      %v3884 = vadd.f32 0.0, %v3883
      %v3885 = vpop.f32.mrf.mxu0
      %v3886 = vpop.f32.mrf.mxu0
      %v3887 = vadd.f32 0.0, %v3886
      %v3888 = vpop.f32.mrf.mxu0
      %3889 = vmatprep.mubr.bf16.mxu0 0
      %3890 = vmatmul.mubr.bf16.gmra.mxu0 %v3763
      %v3891 = vpop.f32.mrf.mxu0
      %v3892 = vadd.f32 0.0, %v3891
      %v3893 = vpop.f32.mrf.mxu0
      %v3894 = vpop.f32.mrf.mxu0
      %v3895 = vadd.f32 0.0, %v3894
      %v3896 = vpop.f32.mrf.mxu0
      %3897 = vmatprep.mubr.bf16.mxu0 0
      %3898 = vmatmul.mubr.bf16.gmra.mxu0 %v3764
      %v3899 = vpop.f32.mrf.mxu0
      %v3900 = vadd.f32 0.0, %v3899
      %v3901 = vpop.f32.mrf.mxu0
      %v3902 = vpop.f32.mrf.mxu0
      %v3903 = vadd.f32 0.0, %v3902
      %v3904 = vpop.f32.mrf.mxu0
      %3905 = vmatprep.mubr.bf16.mxu0 0
      %3906 = vmatmul.mubr.bf16.gmra.mxu0 %v3765
      %v3907 = vpop.f32.mrf.mxu0
      %v3908 = vadd.f32 0.0, %v3907
      %v3909 = vpop.f32.mrf.mxu0
      %v3910 = vpop.f32.mrf.mxu0
      %v3911 = vadd.f32 0.0, %v3910
      %v3912 = vpop.f32.mrf.mxu0
      %3913 = vmatprep.mubr.bf16.mxu0 0
      %3914 = vmatmul.mubr.bf16.gmra.mxu0 %v3766
      %v3915 = vpop.f32.mrf.mxu0
      %v3916 = vadd.f32 0.0, %v3915
      %v3917 = vpop.f32.mrf.mxu0
      %v3918 = vpop.f32.mrf.mxu0
      %v3919 = vadd.f32 0.0, %v3918
      %v3920 = vpop.f32.mrf.mxu0
      %3921 = vmatprep.mubr.bf16.mxu0 0
      %3922 = vmatmul.mubr.bf16.gmra.mxu0 %v3767
      %v3923 = vpop.f32.mrf.mxu0
      %v3924 = vadd.f32 0.0, %v3923
      %v3925 = vpop.f32.mrf.mxu0
      %v3926 = vpop.f32.mrf.mxu0
      %v3927 = vadd.f32 0.0, %v3926
      %v3928 = vpop.f32.mrf.mxu0
      %3929 = vmatprep.mubr.bf16.mxu0 0
      %3930 = vmatmul.mubr.bf16.gmra.mxu0 %v3768
      %v3931 = vpop.f32.mrf.mxu0
      %v3932 = vadd.f32 0.0, %v3931
      %v3933 = vpop.f32.mrf.mxu0
      %v3934 = vpop.f32.mrf.mxu0
      %v3935 = vadd.f32 0.0, %v3934
      %v3936 = vpop.f32.mrf.mxu0
      %3937 = vmatprep.mubr.bf16.mxu0 0
      %3938 = vmatmul.mubr.bf16.gmra.mxu0 %v3769
      %v3939 = vpop.f32.mrf.mxu0
      %v3940 = vadd.f32 0.0, %v3939
      %v3941 = vpop.f32.mrf.mxu0
      %v3942 = vpop.f32.mrf.mxu0
      %v3943 = vadd.f32 0.0, %v3942
      %v3944 = vpop.f32.mrf.mxu0
      %3945 = vmatprep.mubr.bf16.mxu0 0
      %3946 = vmatmul.mubr.bf16.gmra.mxu0 %v3770
      %v3947 = vpop.f32.mrf.mxu0
      %v3948 = vadd.f32 0.0, %v3947
      %v3949 = vpop.f32.mrf.mxu0
      %v3950 = vpop.f32.mrf.mxu0
      %v3951 = vadd.f32 0.0, %v3950
      %v3952 = vpop.f32.mrf.mxu0
      %3953 = vmatprep.mubr.bf16.mxu0 0
      %3954 = vmatmul.mubr.bf16.gmra.mxu0 %v3771
      %v3955 = vpop.f32.mrf.mxu0
      %v3956 = vadd.f32 0.0, %v3955
      %v3957 = vpop.f32.mrf.mxu0
      %v3958 = vpop.f32.mrf.mxu0
      %v3959 = vadd.f32 0.0, %v3958
      %v3960 = vpop.f32.mrf.mxu0
      %3961 = vmatprep.mubr.bf16.mxu0 0
      %3962 = vmatmul.mubr.bf16.gmra.mxu0 %v3772
      %v3963 = vpop.f32.mrf.mxu0
      %v3964 = vadd.f32 0.0, %v3963
      %v3965 = vpop.f32.mrf.mxu0
      %v3966 = vpop.f32.mrf.mxu0
      %v3967 = vadd.f32 0.0, %v3966
      %v3968 = vpop.f32.mrf.mxu0
      %3969 = vmatprep.mubr.bf16.mxu0 0
      %3970 = vmatmul.mubr.bf16.gmra.mxu0 %v3773
      %v3971 = vpop.f32.mrf.mxu0
      %v3972 = vadd.f32 0.0, %v3971
      %v3973 = vpop.f32.mrf.mxu0
      %v3974 = vpop.f32.mrf.mxu0
      %v3975 = vadd.f32 0.0, %v3974
      %v3976 = vpop.f32.mrf.mxu0
      %3977 = vmatprep.mubr.bf16.mxu0 0
      %3978 = vmatmul.mubr.bf16.gmra.mxu0 %v3774
      %v3979 = vpop.f32.mrf.mxu0
      %v3980 = vadd.f32 0.0, %v3979
      %v3981 = vpop.f32.mrf.mxu0
      %v3982 = vpop.f32.mrf.mxu0
      %v3983 = vadd.f32 0.0, %v3982
      %v3984 = vpop.f32.mrf.mxu0
      %3985 = vmatprep.mubr.bf16.mxu0 0
      %3986 = vmatmul.mubr.bf16.gmra.mxu0 %v3775
      %v3987 = vpop.f32.mrf.mxu0
      %v3988 = vadd.f32 0.0, %v3987
      %v3989 = vpop.f32.mrf.mxu0
      %v3990 = vpop.f32.mrf.mxu0
      %v3991 = vadd.f32 0.0, %v3990
      %v3992 = vpop.f32.mrf.mxu0
      %3993 = vmatprep.mubr.bf16.mxu0 0
      %3994 = vmatmul.mubr.bf16.gmra.mxu0 %v3776
      %v3995 = vpop.f32.mrf.mxu0
      %v3996 = vadd.f32 0.0, %v3995
      %v3997 = vpop.f32.mrf.mxu0
      %v3998 = vpop.f32.mrf.mxu0
      %v3999 = vadd.f32 0.0, %v3998
      %v4000 = vpop.f32.mrf.mxu0
      %4001 = vdwg.mxu0
      %v4002 = vld [vmem:[%s2] sm:$0x1]
      %v4004 = vlaneseq
      %v4005 = vshrl.u32 %v4004, 7
      %v4006 = vsub.s32 0, %v4005
      %v4007 = vrot.slane %v4002, %v4006
      %v4009 = vmul.f32 %v3876, %v4007
      %v4010 = vmul.f32 %v3879, %v4007
      %v4011 = vmul.f32 %v3884, %v4007
      %v4012 = vmul.f32 %v3887, %v4007
      %v4013 = vmul.f32 %v3892, %v4007
      %v4014 = vmul.f32 %v3895, %v4007
      %v4015 = vmul.f32 %v3900, %v4007
      %v4016 = vmul.f32 %v3903, %v4007
      %v4017 = vmul.f32 %v3908, %v4007
      %v4018 = vmul.f32 %v3911, %v4007
      %v4019 = vmul.f32 %v3916, %v4007
      %v4020 = vmul.f32 %v3919, %v4007
      %v4021 = vmul.f32 %v3924, %v4007
      %v4022 = vmul.f32 %v3927, %v4007
      %v4023 = vmul.f32 %v3932, %v4007
      %v4024 = vmul.f32 %v3935, %v4007
      %v4025 = vmul.f32 %v3940, %v4007
      %v4026 = vmul.f32 %v3943, %v4007
      %v4027 = vmul.f32 %v3948, %v4007
      %v4028 = vmul.f32 %v3951, %v4007
      %v4029 = vmul.f32 %v3956, %v4007
      %v4030 = vmul.f32 %v3959, %v4007
      %v4031 = vmul.f32 %v3964, %v4007
      %v4032 = vmul.f32 %v3967, %v4007
      %v4033 = vmul.f32 %v3972, %v4007
      %v4034 = vmul.f32 %v3975, %v4007
      %v4035 = vmul.f32 %v3980, %v4007
      %v4036 = vmul.f32 %v3983, %v4007
      %v4037 = vmul.f32 %v3988, %v4007
      %v4038 = vmul.f32 %v3991, %v4007
      %v4039 = vmul.f32 %v3996, %v4007
      %v4040 = vmul.f32 %v3999, %v4007
      %v4041 = vld [vmem:[%s3] sm:$0x1]
      %v4043 = vlaneseq
      %v4044 = vshrl.u32 %v4043, 7
      %v4045 = vsub.s32 0, %v4044
      %v4046 = vrot.slane %v4041, %v4045
      %v4048 = vadd.f32 %v4009, %v4046
      %v4049 = vadd.f32 %v4010, %v4046
      %v4050 = vadd.f32 %v4011, %v4046
      %v4051 = vadd.f32 %v4012, %v4046
      %v4052 = vadd.f32 %v4013, %v4046
      %v4053 = vadd.f32 %v4014, %v4046
      %v4054 = vadd.f32 %v4015, %v4046
      %v4055 = vadd.f32 %v4016, %v4046
      %v4056 = vadd.f32 %v4017, %v4046
      %v4057 = vadd.f32 %v4018, %v4046
      %v4058 = vadd.f32 %v4019, %v4046
      %v4059 = vadd.f32 %v4020, %v4046
      %v4060 = vadd.f32 %v4021, %v4046
      %v4061 = vadd.f32 %v4022, %v4046
      %v4062 = vadd.f32 %v4023, %v4046
      %v4063 = vadd.f32 %v4024, %v4046
      %v4064 = vadd.f32 %v4025, %v4046
      %v4065 = vadd.f32 %v4026, %v4046
      %v4066 = vadd.f32 %v4027, %v4046
      %v4067 = vadd.f32 %v4028, %v4046
      %v4068 = vadd.f32 %v4029, %v4046
      %v4069 = vadd.f32 %v4030, %v4046
      %v4070 = vadd.f32 %v4031, %v4046
      %v4071 = vadd.f32 %v4032, %v4046
      %v4072 = vadd.f32 %v4033, %v4046
      %v4073 = vadd.f32 %v4034, %v4046
      %v4074 = vadd.f32 %v4035, %v4046
      %v4075 = vadd.f32 %v4036, %v4046
      %v4076 = vadd.f32 %v4037, %v4046
      %v4077 = vadd.f32 %v4038, %v4046
      %v4078 = vadd.f32 %v4039, %v4046
      %v4079 = vadd.f32 %v4040, %v4046
      %v4080 = vmax.f32 %v4048, 0.0
      %v4081 = vmax.f32 %v4049, 0.0
      %v4082 = vmax.f32 %v4050, 0.0
      %v4083 = vmax.f32 %v4051, 0.0
      %v4084 = vmax.f32 %v4052, 0.0
      %v4085 = vmax.f32 %v4053, 0.0
      %v4086 = vmax.f32 %v4054, 0.0
      %v4087 = vmax.f32 %v4055, 0.0
      %v4088 = vmax.f32 %v4056, 0.0
      %v4089 = vmax.f32 %v4057, 0.0
      %v4090 = vmax.f32 %v4058, 0.0
      %v4091 = vmax.f32 %v4059, 0.0
      %v4092 = vmax.f32 %v4060, 0.0
      %v4093 = vmax.f32 %v4061, 0.0
      %v4094 = vmax.f32 %v4062, 0.0
      %v4095 = vmax.f32 %v4063, 0.0
      %v4096 = vmax.f32 %v4064, 0.0
      %v4097 = vmax.f32 %v4065, 0.0
      %v4098 = vmax.f32 %v4066, 0.0
      %v4099 = vmax.f32 %v4067, 0.0
      %v4100 = vmax.f32 %v4068, 0.0
      %v4101 = vmax.f32 %v4069, 0.0
      %v4102 = vmax.f32 %v4070, 0.0
      %v4103 = vmax.f32 %v4071, 0.0
      %v4104 = vmax.f32 %v4072, 0.0
      %v4105 = vmax.f32 %v4073, 0.0
      %v4106 = vmax.f32 %v4074, 0.0
      %v4107 = vmax.f32 %v4075, 0.0
      %v4108 = vmax.f32 %v4076, 0.0
      %v4109 = vmax.f32 %v4077, 0.0
      %v4110 = vmax.f32 %v4078, 0.0
      %v4111 = vmax.f32 %v4079, 0.0
      %v4112 = vpack.c.bf16 %v4081, %v4080
      %v4113 = vpack.c.bf16 %v4083, %v4082
      %v4114 = vpack.c.bf16 %v4085, %v4084
      %v4115 = vpack.c.bf16 %v4087, %v4086
      %v4116 = vpack.c.bf16 %v4089, %v4088
      %v4117 = vpack.c.bf16 %v4091, %v4090
      %v4118 = vpack.c.bf16 %v4093, %v4092
      %v4119 = vpack.c.bf16 %v4095, %v4094
      %v4120 = vpack.c.bf16 %v4097, %v4096
      %v4121 = vpack.c.bf16 %v4099, %v4098
      %v4122 = vpack.c.bf16 %v4101, %v4100
      %v4123 = vpack.c.bf16 %v4103, %v4102
      %v4124 = vpack.c.bf16 %v4105, %v4104
      %v4125 = vpack.c.bf16 %v4107, %v4106
      %v4126 = vpack.c.bf16 %v4109, %v4108
      %v4127 = vpack.c.bf16 %v4111, %v4110
      %v4144 = vunpack.c.l.b16 %v4112
      %v4145 = vunpack.c.h.b16 %v4112
      %v4146 = vunpack.c.l.b16 %v4113
      %v4147 = vunpack.c.h.b16 %v4113
      %v4148 = vunpack.c.l.b16 %v4114
      %v4149 = vunpack.c.h.b16 %v4114
      %v4150 = vunpack.c.l.b16 %v4115
      %v4151 = vunpack.c.h.b16 %v4115
      %v4152 = vunpack.c.l.b16 %v4116
      %v4153 = vunpack.c.h.b16 %v4116
      %v4154 = vunpack.c.l.b16 %v4117
      %v4155 = vunpack.c.h.b16 %v4117
      %v4156 = vunpack.c.l.b16 %v4118
      %v4157 = vunpack.c.h.b16 %v4118
      %v4158 = vunpack.c.l.b16 %v4119
      %v4159 = vunpack.c.h.b16 %v4119
      %v4160 = vunpack.c.l.b16 %v4120
      %v4161 = vunpack.c.h.b16 %v4120
      %v4162 = vunpack.c.l.b16 %v4121
      %v4163 = vunpack.c.h.b16 %v4121
      %v4164 = vunpack.c.l.b16 %v4122
      %v4165 = vunpack.c.h.b16 %v4122
      %v4166 = vunpack.c.l.b16 %v4123
      %v4167 = vunpack.c.h.b16 %v4123
      %v4168 = vunpack.c.l.b16 %v4124
      %v4169 = vunpack.c.h.b16 %v4124
      %v4170 = vunpack.c.l.b16 %v4125
      %v4171 = vunpack.c.h.b16 %v4125
      %v4172 = vunpack.c.l.b16 %v4126
      %v4173 = vunpack.c.h.b16 %v4126
      %v4174 = vunpack.c.l.b16 %v4127
      %v4175 = vunpack.c.h.b16 %v4127
      %v4176 = vpack.c.b16 %v4144, %v4144
      %v4177 = vpack.c.b16 %v4145, %v4145
      %v4178 = vpack.c.b16 %v4146, %v4146
      %v4179 = vpack.c.b16 %v4147, %v4147
      %v4180 = vpack.c.b16 %v4148, %v4148
      %v4181 = vpack.c.b16 %v4149, %v4149
      %v4182 = vpack.c.b16 %v4150, %v4150
      %v4183 = vpack.c.b16 %v4151, %v4151
      %v4184 = vpack.c.b16 %v4152, %v4152
      %v4185 = vpack.c.b16 %v4153, %v4153
      %v4186 = vpack.c.b16 %v4154, %v4154
      %v4187 = vpack.c.b16 %v4155, %v4155
      %v4188 = vpack.c.b16 %v4156, %v4156
      %v4189 = vpack.c.b16 %v4157, %v4157
      %v4190 = vpack.c.b16 %v4158, %v4158
      %v4191 = vpack.c.b16 %v4159, %v4159
      %v4192 = vpack.c.b16 %v4160, %v4160
      %v4193 = vpack.c.b16 %v4161, %v4161
      %v4194 = vpack.c.b16 %v4162, %v4162
      %v4195 = vpack.c.b16 %v4163, %v4163
      %v4196 = vpack.c.b16 %v4164, %v4164
      %v4197 = vpack.c.b16 %v4165, %v4165
      %v4198 = vpack.c.b16 %v4166, %v4166
      %v4199 = vpack.c.b16 %v4167, %v4167
      %v4200 = vpack.c.b16 %v4168, %v4168
      %v4201 = vpack.c.b16 %v4169, %v4169
      %v4202 = vpack.c.b16 %v4170, %v4170
      %v4203 = vpack.c.b16 %v4171, %v4171
      %v4204 = vpack.c.b16 %v4172, %v4172
      %v4205 = vpack.c.b16 %v4173, %v4173
      %v4206 = vpack.c.b16 %v4174, %v4174
      %v4207 = vpack.c.b16 %v4175, %v4175
      %vm4240 = vcmask 60416
      %4241 = vst.msk [vmem:[%s221] sm:$0xf] %vm4240, %v4176
      %4242 = vst.msk [vmem:[%s221 + $0x4] sm:$0xf] %vm4240, %v4177
      %4243 = vst.msk [vmem:[%s221 + $0x8] sm:$0xf] %vm4240, %v4178
      %4244 = vst.msk [vmem:[%s221 + $0xc] sm:$0xf] %vm4240, %v4179
      %4245 = vst.msk [vmem:[%s221 + $0x10] sm:$0xf] %vm4240, %v4180
      %4246 = vst.msk [vmem:[%s221 + $0x14] sm:$0xf] %vm4240, %v4181
      %4247 = vst.msk [vmem:[%s221 + $0x18] sm:$0xf] %vm4240, %v4182
      %4248 = vst.msk [vmem:[%s221 + $0x1c] sm:$0xf] %vm4240, %v4183
      %4249 = vst.msk [vmem:[%s221 + $0x20] sm:$0xf] %vm4240, %v4184
      %4250 = vst.msk [vmem:[%s221 + $0x24] sm:$0xf] %vm4240, %v4185
      %4251 = vst.msk [vmem:[%s221 + $0x28] sm:$0xf] %vm4240, %v4186
      %4252 = vst.msk [vmem:[%s221 + $0x2c] sm:$0xf] %vm4240, %v4187
      %4253 = vst.msk [vmem:[%s221 + $0x30] sm:$0xf] %vm4240, %v4188
      %4254 = vst.msk [vmem:[%s221 + $0x34] sm:$0xf] %vm4240, %v4189
      %4255 = vst.msk [vmem:[%s221 + $0x38] sm:$0xf] %vm4240, %v4190
      %4256 = vst.msk [vmem:[%s221 + $0x3c] sm:$0xf] %vm4240, %v4191
      %4257 = vst.msk [vmem:[%s221 + $0x40] sm:$0xf] %vm4240, %v4192
      %4258 = vst.msk [vmem:[%s221 + $0x44] sm:$0xf] %vm4240, %v4193
      %4259 = vst.msk [vmem:[%s221 + $0x48] sm:$0xf] %vm4240, %v4194
      %4260 = vst.msk [vmem:[%s221 + $0x4c] sm:$0xf] %vm4240, %v4195
      %4261 = vst.msk [vmem:[%s221 + $0x50] sm:$0xf] %vm4240, %v4196
      %4262 = vst.msk [vmem:[%s221 + $0x54] sm:$0xf] %vm4240, %v4197
      %4263 = vst.msk [vmem:[%s221 + $0x58] sm:$0xf] %vm4240, %v4198
      %4264 = vst.msk [vmem:[%s221 + $0x5c] sm:$0xf] %vm4240, %v4199
      %4265 = vst.msk [vmem:[%s221 + $0x60] sm:$0xf] %vm4240, %v4200
      %4266 = vst.msk [vmem:[%s221 + $0x64] sm:$0xf] %vm4240, %v4201
      %4267 = vst.msk [vmem:[%s221 + $0x68] sm:$0xf] %vm4240, %v4202
      %4268 = vst.msk [vmem:[%s221 + $0x6c] sm:$0xf] %vm4240, %v4203
      %4269 = vst.msk [vmem:[%s221 + $0x70] sm:$0xf] %vm4240, %v4204
      %4270 = vst.msk [vmem:[%s221 + $0x74] sm:$0xf] %vm4240, %v4205
      %4271 = vst.msk [vmem:[%s221 + $0x78] sm:$0xf] %vm4240, %v4206
      %4272 = vst.msk [vmem:[%s221 + $0x7c] sm:$0xf] %vm4240, %v4207
      %s4273 = smul.u32 16, %s20
      %p4274 = scmp.lt.s32.totalorder %s19, 1
      %s4275 = scalar_select %p4274, %s19, 1
      %p4276 = scmp.lt.s32.totalorder %s4273, 15
      %s4277 = scalar_select %p4276, %s4273, 15
      %s4278 = smul.addr %s4277, 2
      %s4279 = smul.addr %s4275, 32
      %s4280 = sadd.s32 %s4278, %s4279
      %s4281 = smul.addr %s4280, 4
      %s4282 = scalar_lea.vmem %s4, %s4281
      // Predicated region
      $region41: #{tpu_custom_call.1} parent=35 // pred_check
        %p4283 = pneg %p136
      $region42: #{tpu_custom_call.1} parent=35 // pred_check_branch
        %4285 = sbr.rel (%p4283) target = $region44
      $region43: #{tpu_custom_call.1} parent=35 // pred_region
        %s4286 = smul.u32 16, %s20
      $region44: #{tpu_custom_call.1} parent=35 // pred_fallthru
        _
    $region36: #{tpu_custom_call.1} parent=5 // pred_fallthru
      _
    %p4287 = scmp.le.s32.totalorder 2, %s10
    // Predicated region
    $region45: #{tpu_custom_call.1} parent=5 // pred_check
      %p4288 = pneg %p4287
    $region46: #{tpu_custom_call.1} parent=5 // pred_check_branch
      %4290 = sbr.rel (%p4288) target = $region48
    $region47: #{tpu_custom_call.1} parent=5 // pred_region
      %s4291 = ssub.s32 %s10, 2
      // Predicated region
      $region49: #{tpu_custom_call.1} parent=47 // pred_check
        %p4292 = pneg %p142
      $region50: #{tpu_custom_call.1} parent=47 // pred_check_branch
        %4294 = sbr.rel (%p4292) target = $region52
      $region51: #{tpu_custom_call.1} parent=47 // pred_region
        %s4295 = smul.u32 16, %s22
        %p4296 = scmp.lt.s32.totalorder %s21, 1
        %s4297 = scalar_select %p4296, %s21, 1
        %p4298 = scmp.lt.s32.totalorder %s4295, 15
        %s4299 = scalar_select %p4298, %s4295, 15
        %s4300 = smul.addr %s4299, 2
        %s4301 = smul.addr %s4297, 32
        %s4302 = sadd.s32 %s4300, %s4301
        %s4303 = smul.addr %s4302, 4
        %s4304 = scalar_lea.vmem %s4, %s4303
      $region52: #{tpu_custom_call.1} parent=47 // pred_fallthru
        _
    $region48: #{tpu_custom_call.1} parent=5 // pred_fallthru
      _
  $region6: #{tpu_custom_call.1} parent=0 // loop_footer
    %s14 = sadd.s32 1, %s10
  $region7: #{tpu_custom_call.1} parent=0 // loop_footer_branch
    %9 = sbr.rel target = $region3
  $region8: #{tpu_custom_call.1} parent=0 // loop_exit
    _

</llo_original>
